<compile_context>
chip_gen: v7x
topology: tpu7x:2x2x1
jax: 0.10.0
libtpu: 0.0.40
codegen_flags: <defaults>
</compile_context>

<pallas_src>
import jax
import jax.numpy as jnp
from jax import lax
from jax.experimental import pallas as pl
from jax.experimental.pallas import tpu as pltpu

# ----------------------------- model dims -----------------------------------
N_FEATURE = 4
N_HIDDEN = 32
N_OUTPUT = 1
LAYER_NUM = 3

BATCH = 256     # demo batch size (any batch works; tile adapts below)
MAX_TB = 512    # vreg-pressure cap: two live (32, TB) f32 activations


# ----------------------------- Pallas kernel --------------------------------
def dnn_kernel(x_ref, w1_ref, b1_ref, wm_ref, bm_ref, wp_ref, bp_ref, o_ref):
    # Shapes inside the kernel:
    #   x_ref:  (TB, N_FEATURE)                      row-major input tile
    #   w1_ref: (N_HIDDEN, N_FEATURE)                b1_ref: (N_HIDDEN, 1)
    #   wm_ref: (LAYER_NUM, N_HIDDEN, N_HIDDEN)      bm_ref: (LAYER_NUM, N_HIDDEN, 1)
    #   wp_ref: (N_OUTPUT, N_HIDDEN)                 bp_ref: (N_OUTPUT, 1)
    #   o_ref:  (N_OUTPUT, TB)                       lane-dense output store
    #
    # First layer: contract the feature axis of BOTH operands (trans_b dot),
    # so the batch lands on the lane axis with no explicit transpose:
    #   h = w1 @ x.T  -> (N_HIDDEN, TB)
    h = lax.dot_general(
        w1_ref[...], x_ref[...],
        dimension_numbers=(((1,), (1,)), ((), ())),
        preferred_element_type=jnp.float32,
    ) + b1_ref[...]
    h = jnp.sin(h)

    # Static layer count -> unrolled Python loop inside the kernel.
    # NOTE: implements the intended forward (distinct mid layers); the original
    # PyTorch source contains the `layer(out)` typo.
    for l in range(LAYER_NUM):
        h = jnp.sin(
            jnp.dot(wm_ref[l], h, preferred_element_type=jnp.float32)
            + bm_ref[l]
        )

    out = (
        jnp.dot(wp_ref[...], h, preferred_element_type=jnp.float32)
        + bp_ref[...]
    )
    o_ref[...] = out.astype(o_ref.dtype)


# ----------------------------- wrapper ---------------------------------------
def _batch_tile(n):
    """Lane tile: multiple of 256 (full v6e/v7x MXU width), capped at MAX_TB."""
    return min(MAX_TB, pl.cdiv(n, 256) * 256)


@jax.jit
def dnn_forward(x, w1, b1, wm, bm, wp, bp):
    """x: (N, n_feature) -> (N, n_output).  Matches nn.Linear semantics."""
    n = x.shape[0]
    tb = _batch_tile(n)
    grid = (pl.cdiv(n, tb),)           # partial last tile handled by Pallas

    full = lambda shape: pl.BlockSpec(shape, lambda i: (0,) * len(shape))

    out_t = pl.pallas_call(
        dnn_kernel,
        out_shape=jax.ShapeDtypeStruct((N_OUTPUT, n), x.dtype),
        grid_spec=pltpu.PrefetchScalarGridSpec(
            num_scalar_prefetch=0,
            grid=grid,
            in_specs=[
                pl.BlockSpec((tb, N_FEATURE), lambda i: (i, 0)),   # x tile
                full((N_HIDDEN, N_FEATURE)),                       # w1 (resident)
                full((N_HIDDEN, 1)),                               # b1
                full((LAYER_NUM, N_HIDDEN, N_HIDDEN)),             # wm
                full((LAYER_NUM, N_HIDDEN, 1)),                    # bm
                full((N_OUTPUT, N_HIDDEN)),                        # wp
                full((N_OUTPUT, 1)),                               # bp
            ],
            out_specs=pl.BlockSpec((N_OUTPUT, tb), lambda i: (0, i)),
        ),
        compiler_params=pltpu.CompilerParams(
            dimension_semantics=("parallel",)
        ),
    )(x, w1, b1, wm, bm, wp, bp)

    # (N_OUTPUT, N) -> (N, N_OUTPUT); for N_OUTPUT=1 this is just a reshape.
    return out_t.T


# ----------------------------- param init ------------------------------------
def init_params(key):
    """PyTorch-style Linear init, PyTorch layout W:(out_features, in_features)."""
    ks = jax.random.split(key, 4 + 2 * LAYER_NUM)

    def linear(kw, kb, fan_in, fan_out):
        bound = 1.0 / jnp.sqrt(fan_in)
        w = jax.random.uniform(kw, (fan_out, fan_in), jnp.float32, -bound, bound)
        b = jax.random.uniform(kb, (fan_out, 1), jnp.float32, -bound, bound)
        return w, b

    w1, b1 = linear(ks[0], ks[1], N_FEATURE, N_HIDDEN)

    wms, bms = [], []
    for l in range(LAYER_NUM):
        w, b = linear(ks[2 + 2 * l], ks[3 + 2 * l], N_HIDDEN, N_HIDDEN)
        wms.append(w)
        bms.append(b)
    wm = jnp.stack(wms, axis=0)                      # (LAYER_NUM, H, H)
    bm = jnp.stack(bms, axis=0)                      # (LAYER_NUM, H, 1)

    wp, bp = linear(ks[2 + 2 * LAYER_NUM], ks[3 + 2 * LAYER_NUM],
                    N_HIDDEN, N_OUTPUT)
    return w1, b1, wm, bm, wp, bp


# ----------------------------- reference -------------------------------------
def dnn_ref(x, w1, b1, wm, bm, wp, bp):
    """Pure-JAX reference in the PyTorch (row-major) orientation."""
    h = jnp.sin(x @ w1.T + b1[:, 0])
    for l in range(LAYER_NUM):
        h = jnp.sin(h @ wm[l].T + bm[l][:, 0])
    return h @ wp.T + bp[:, 0]


# ----------------------------- main -------------------------------------------
if __name__ == "__main__":
    key = jax.random.PRNGKey(0)
    kx, kp = jax.random.split(key)

    x = jax.random.normal(kx, (BATCH, N_FEATURE), jnp.float32)
    params = init_params(kp)

    out = dnn_forward(x, *params)
    out = jax.block_until_ready(out)

    ref = dnn_ref(x, *params)
    assert out.shape == (BATCH, N_OUTPUT), out.shape
    assert jnp.allclose(out, ref, atol=1e-4, rtol=1e-4), (
        "Pallas result mismatch vs reference"
    )

    print("KERNEL_OK")
</pallas_src>

<mosaic_0001>
module attributes {stable_mosaic.version = 11 : i64} {
  func.func @dnn_kernel(%arg0: i32, %arg1: memref<256x4xf32, #tpu.memory_space<vmem>>, %arg2: memref<32x4xf32, #tpu.memory_space<vmem>>, %arg3: memref<32x1xf32, #tpu.memory_space<vmem>>, %arg4: memref<3x32x32xf32, #tpu.memory_space<vmem>>, %arg5: memref<3x32x1xf32, #tpu.memory_space<vmem>>, %arg6: memref<1x32xf32, #tpu.memory_space<vmem>>, %arg7: memref<1x1xf32, #tpu.memory_space<vmem>>, %arg8: memref<1x256xf32, #tpu.memory_space<vmem>>) attributes {dimension_semantics = [#tpu.dimension_semantics<parallel>], iteration_bounds = array<i64: 1>, scalar_prefetch = 0 : i64, scratch_operands = 0 : i64, tpu.core_type = #tpu.core_type<tc>, window_params = [{transform_indices = @transform_0, window_bounds = array<i64: 256, 4>}, {pipeline_mode = #tpu.pipeline_mode<synchronous>, transform_indices = @transform_1, window_bounds = array<i64: 32, 4>}, {pipeline_mode = #tpu.pipeline_mode<synchronous>, transform_indices = @transform_2, window_bounds = array<i64: 32, 1>}, {pipeline_mode = #tpu.pipeline_mode<synchronous>, transform_indices = @transform_3, window_bounds = array<i64: 3, 32, 32>}, {pipeline_mode = #tpu.pipeline_mode<synchronous>, transform_indices = @transform_4, window_bounds = array<i64: 3, 32, 1>}, {pipeline_mode = #tpu.pipeline_mode<synchronous>, transform_indices = @transform_5, window_bounds = array<i64: 1, 32>}, {pipeline_mode = #tpu.pipeline_mode<synchronous>, transform_indices = @transform_6, window_bounds = array<i64: 1, 1>}, {transform_indices = @transform_7, window_bounds = array<i64: 1, 256>}]} {
    %c0 = arith.constant 0 : index
    %c0_0 = arith.constant 0 : index
    %0 = vector.load %arg2[%c0, %c0_0] : memref<32x4xf32, #tpu.memory_space<vmem>>, vector<32x4xf32>
    %c0_1 = arith.constant 0 : index
    %c0_2 = arith.constant 0 : index
    %1 = vector.load %arg1[%c0_1, %c0_2] : memref<256x4xf32, #tpu.memory_space<vmem>>, vector<256x4xf32>
    %cst = arith.constant dense<0.000000e+00> : vector<32x256xf32>
    %2 = tpu.matmul %0, %1, %cst {dimension_numbers = #tpu.dot_dimension_numbers<[1], [1], [0], [0], [0, 0, 1, 0], [], []>} : vector<32x4xf32>, vector<256x4xf32>, vector<32x256xf32> -> vector<32x256xf32>
    %c0_3 = arith.constant 0 : index
    %c0_4 = arith.constant 0 : index
    %3 = vector.load %arg3[%c0_3, %c0_4] : memref<32x1xf32, #tpu.memory_space<vmem>>, vector<32x1xf32>
    %4 = vector.broadcast %3 : vector<32x1xf32> to vector<32x256xf32>
    %5 = arith.addf %2, %4 : vector<32x256xf32>
    %6 = math.sin %5 : vector<32x256xf32>
    %c0_5 = arith.constant 0 : index
    %c0_6 = arith.constant 0 : index
    %c0_7 = arith.constant 0 : index
    %7 = vector.load %arg4[%c0_5, %c0_6, %c0_7] : memref<3x32x32xf32, #tpu.memory_space<vmem>>, vector<1x32x32xf32>
    %8 = vector.shape_cast %7 : vector<1x32x32xf32> to vector<32x32xf32>
    %cst_8 = arith.constant dense<0.000000e+00> : vector<32x256xf32>
    %9 = tpu.matmul %8, %6, %cst_8 {dimension_numbers = #tpu.dot_dimension_numbers<[1], [0], [0], [1], [0, 0, 1, 1], [], []>} : vector<32x32xf32>, vector<32x256xf32>, vector<32x256xf32> -> vector<32x256xf32>
    %c0_9 = arith.constant 0 : index
    %c0_10 = arith.constant 0 : index
    %c0_11 = arith.constant 0 : index
    %10 = vector.load %arg5[%c0_9, %c0_10, %c0_11] : memref<3x32x1xf32, #tpu.memory_space<vmem>>, vector<1x32x1xf32>
    %11 = vector.shape_cast %10 : vector<1x32x1xf32> to vector<32x1xf32>
    %12 = vector.broadcast %11 : vector<32x1xf32> to vector<32x256xf32>
    %13 = arith.addf %9, %12 : vector<32x256xf32>
    %14 = math.sin %13 : vector<32x256xf32>
    %c1 = arith.constant 1 : index
    %c0_12 = arith.constant 0 : index
    %c0_13 = arith.constant 0 : index
    %15 = vector.load %arg4[%c1, %c0_12, %c0_13] : memref<3x32x32xf32, #tpu.memory_space<vmem>>, vector<1x32x32xf32>
    %16 = vector.shape_cast %15 : vector<1x32x32xf32> to vector<32x32xf32>
    %cst_14 = arith.constant dense<0.000000e+00> : vector<32x256xf32>
    %17 = tpu.matmul %16, %14, %cst_14 {dimension_numbers = #tpu.dot_dimension_numbers<[1], [0], [0], [1], [0, 0, 1, 1], [], []>} : vector<32x32xf32>, vector<32x256xf32>, vector<32x256xf32> -> vector<32x256xf32>
    %c1_15 = arith.constant 1 : index
    %c0_16 = arith.constant 0 : index
    %c0_17 = arith.constant 0 : index
    %18 = vector.load %arg5[%c1_15, %c0_16, %c0_17] : memref<3x32x1xf32, #tpu.memory_space<vmem>>, vector<1x32x1xf32>
    %19 = vector.shape_cast %18 : vector<1x32x1xf32> to vector<32x1xf32>
    %20 = vector.broadcast %19 : vector<32x1xf32> to vector<32x256xf32>
    %21 = arith.addf %17, %20 : vector<32x256xf32>
    %22 = math.sin %21 : vector<32x256xf32>
    %c2 = arith.constant 2 : index
    %c0_18 = arith.constant 0 : index
    %c0_19 = arith.constant 0 : index
    %23 = vector.load %arg4[%c2, %c0_18, %c0_19] : memref<3x32x32xf32, #tpu.memory_space<vmem>>, vector<1x32x32xf32>
    %24 = vector.shape_cast %23 : vector<1x32x32xf32> to vector<32x32xf32>
    %cst_20 = arith.constant dense<0.000000e+00> : vector<32x256xf32>
    %25 = tpu.matmul %24, %22, %cst_20 {dimension_numbers = #tpu.dot_dimension_numbers<[1], [0], [0], [1], [0, 0, 1, 1], [], []>} : vector<32x32xf32>, vector<32x256xf32>, vector<32x256xf32> -> vector<32x256xf32>
    %c2_21 = arith.constant 2 : index
    %c0_22 = arith.constant 0 : index
    %c0_23 = arith.constant 0 : index
    %26 = vector.load %arg5[%c2_21, %c0_22, %c0_23] : memref<3x32x1xf32, #tpu.memory_space<vmem>>, vector<1x32x1xf32>
    %27 = vector.shape_cast %26 : vector<1x32x1xf32> to vector<32x1xf32>
    %28 = vector.broadcast %27 : vector<32x1xf32> to vector<32x256xf32>
    %29 = arith.addf %25, %28 : vector<32x256xf32>
    %30 = math.sin %29 : vector<32x256xf32>
    %c0_24 = arith.constant 0 : index
    %c0_25 = arith.constant 0 : index
    %31 = vector.load %arg6[%c0_24, %c0_25] : memref<1x32xf32, #tpu.memory_space<vmem>>, vector<1x32xf32>
    %cst_26 = arith.constant dense<0.000000e+00> : vector<1x256xf32>
    %32 = tpu.matmul %31, %30, %cst_26 {dimension_numbers = #tpu.dot_dimension_numbers<[1], [0], [0], [1], [0, 0, 1, 1], [], []>} : vector<1x32xf32>, vector<32x256xf32>, vector<1x256xf32> -> vector<1x256xf32>
    %c0_27 = arith.constant 0 : index
    %c0_28 = arith.constant 0 : index
    %33 = vector.load %arg7[%c0_27, %c0_28] : memref<1x1xf32, #tpu.memory_space<vmem>>, vector<1x1xf32>
    %34 = vector.broadcast %33 : vector<1x1xf32> to vector<1x256xf32>
    %35 = arith.addf %32, %34 : vector<1x256xf32>
    %c0_29 = arith.constant 0 : index
    %c0_30 = arith.constant 0 : index
    %36 = vector.load %arg8[%c0_29, %c0_30] : memref<1x256xf32, #tpu.memory_space<vmem>>, vector<1x256xf32>
    tpu.vector_store %arg8[%c0_29, %c0_30], %35 {strides = array<i32>} : memref<1x256xf32, #tpu.memory_space<vmem>>, vector<1x256xf32>,
    return
  }
  func.func @transform_0(%arg0: i32) -> (i32, i32) {
    %c0_i32 = arith.constant 0 : i32
    %c0_i32_0 = arith.constant 0 : i32
    return %arg0, %c0_i32 : i32, i32
  }
  func.func @transform_1(%arg0: i32) -> (i32, i32) {
    %c0_i32 = arith.constant 0 : i32
    %c0_i32_0 = arith.constant 0 : i32
    %c0_i32_1 = arith.constant 0 : i32
    return %c0_i32, %c0_i32_0 : i32, i32
  }
  func.func @transform_2(%arg0: i32) -> (i32, i32) {
    %c0_i32 = arith.constant 0 : i32
    %c0_i32_0 = arith.constant 0 : i32
    %c0_i32_1 = arith.constant 0 : i32
    return %c0_i32, %c0_i32_0 : i32, i32
  }
  func.func @transform_3(%arg0: i32) -> (i32, i32, i32) {
    %c0_i32 = arith.constant 0 : i32
    %c0_i32_0 = arith.constant 0 : i32
    %c0_i32_1 = arith.constant 0 : i32
    %c0_i32_2 = arith.constant 0 : i32
    return %c0_i32, %c0_i32_0, %c0_i32_1 : i32, i32, i32
  }
  func.func @transform_4(%arg0: i32) -> (i32, i32, i32) {
    %c0_i32 = arith.constant 0 : i32
    %c0_i32_0 = arith.constant 0 : i32
    %c0_i32_1 = arith.constant 0 : i32
    %c0_i32_2 = arith.constant 0 : i32
    return %c0_i32, %c0_i32_0, %c0_i32_1 : i32, i32, i32
  }
  func.func @transform_5(%arg0: i32) -> (i32, i32) {
    %c0_i32 = arith.constant 0 : i32
    %c0_i32_0 = arith.constant 0 : i32
    %c0_i32_1 = arith.constant 0 : i32
    return %c0_i32, %c0_i32_0 : i32, i32
  }
  func.func @transform_6(%arg0: i32) -> (i32, i32) {
    %c0_i32 = arith.constant 0 : i32
    %c0_i32_0 = arith.constant 0 : i32
    %c0_i32_1 = arith.constant 0 : i32
    return %c0_i32, %c0_i32_0 : i32, i32
  }
  func.func @transform_7(%arg0: i32) -> (i32, i32) {
    %c0_i32 = arith.constant 0 : i32
    %c0_i32_0 = arith.constant 0 : i32
    return %c0_i32, %arg0 : i32, i32
  }
}

</mosaic_0001>

<llo_original>
// kernel: dnn_forward.1
$region0: #{dnn_forward.1}
  #allocation0 [shape = 'u32[]', space=smem, size = 0x4, offset = 0x4, fixed_abs, tag = 'smem constant byte address 0x4 - core index']
  #allocation1 [shape = 'u32[144,128]{1,0:T(1,128)}', space=vmem, size = 0x12000, scoped, tag = 'internal scratch']
  #allocation2 [shape = 'f32[1,1]{1,0:T(1,128)S(1)}', space=vmem, size = 0x200, scoped, tag = 'scoped memory for dnn_forward.1']
  %s0 = inlined_call_operand.vmem [shape: f32[256,4], index: 0, kind: input, shape index: {}]
  %s1 = inlined_call_operand.vmem [shape: f32[32,4], index: 1, kind: input, shape index: {}]
  %s2 = inlined_call_operand.vmem [shape: f32[32,1], index: 2, kind: input, shape index: {}]
  %s3 = inlined_call_operand.vmem [shape: f32[3,32,32], index: 3, kind: input, shape index: {}]
  %s4 = inlined_call_operand.vmem [shape: f32[3,32,1], index: 4, kind: input, shape index: {}]
  %s5 = inlined_call_operand.vmem [shape: f32[1,32], index: 5, kind: input, shape index: {}]
  %s6 = inlined_call_operand.<no memory space> [shape: f32[1,1], index: 6, kind: input, shape index: {}]
  %s7 = inlined_call_operand.hbm [shape: f32[1,256], index: 7, kind: output, shape index: {}]
  %s8 = sld [smem:[#allocation0]]
  $region38: #{dnn_forward.1} parent=0
    _
  %s10 = ssub.s32 1, %s8
  %s11 = scalar_select 0, %s10, %s8
  %v12 = vstv %s6
  %13 = vst [vmem:[#allocation2] sm:$0x1] %v12
  $region1: #{dnn_forward.1} parent=0
    #allocation3 [shape = 'u8[1024]{0}', space=vmem, size = 0x400, scoped, tag = 'output window, operand 0, single buffered']
    #allocation4 [shape = 's32[1]{0}', space=sflag, size = 0x4, scoped, tag = 'scoped memory for dnn_forward.1']
    %14 = vsyncpa [#allocation4], 0
    // Predicated region
    $region2: #{dnn_forward.1} parent=1 // pred_check
      _
    $region3: #{dnn_forward.1} parent=1 // pred_check_branch
      %16 = sbr.rel (0) target = $region5
    $region4: #{dnn_forward.1} parent=1 // pred_region
      _
    $region5: #{dnn_forward.1} parent=1 // pred_fallthru
      _
    // Predicated region
    $region6: #{dnn_forward.1} parent=1 // pred_check
      _
    $region7: #{dnn_forward.1} parent=1 // pred_check_branch
      %18 = sbr.rel (0) target = $region9
    $region8: #{dnn_forward.1} parent=1 // pred_region
      _
    $region9: #{dnn_forward.1} parent=1 // pred_fallthru
      _
    // Predicated region
    $region10: #{dnn_forward.1} parent=1 // pred_check
      _
    $region11: #{dnn_forward.1} parent=1 // pred_check_branch
      %20 = sbr.rel (0) target = $region13
    $region12: #{dnn_forward.1} parent=1 // pred_region
      _
    $region13: #{dnn_forward.1} parent=1 // pred_fallthru
      _
    // Predicated region
    $region14: #{dnn_forward.1} parent=1 // pred_check
      _
    $region15: #{dnn_forward.1} parent=1 // pred_check_branch
      %22 = sbr.rel (0) target = $region17
    $region16: #{dnn_forward.1} parent=1 // pred_region
      _
    $region17: #{dnn_forward.1} parent=1 // pred_fallthru
      _
    // Predicated region
    $region18: #{dnn_forward.1} parent=1 // pred_check
      _
    $region19: #{dnn_forward.1} parent=1 // pred_check_branch
      %24 = sbr.rel (0) target = $region21
    $region20: #{dnn_forward.1} parent=1 // pred_region
      _
    $region21: #{dnn_forward.1} parent=1 // pred_fallthru
      _
    // Predicated region
    $region22: #{dnn_forward.1} parent=1 // pred_check
      _
    $region23: #{dnn_forward.1} parent=1 // pred_check_branch
      %26 = sbr.rel (0) target = $region25
    $region24: #{dnn_forward.1} parent=1 // pred_region
      _
    $region25: #{dnn_forward.1} parent=1 // pred_fallthru
      _
    // Predicated region
    $region26: #{dnn_forward.1} parent=1 // pred_check
      _
    $region27: #{dnn_forward.1} parent=1 // pred_check_branch
      %28 = sbr.rel (0) target = $region29
    $region28: #{dnn_forward.1} parent=1 // pred_region
      _
    $region29: #{dnn_forward.1} parent=1 // pred_fallthru
      _
    %v29 = vld [vmem:[%s1] sm:$0xff]
    %v30 = vld [vmem:[%s1 + $0x8] sm:$0xff]
    %v31 = vld [vmem:[%s1 + $0x10] sm:$0xff]
    %v32 = vld [vmem:[%s1 + $0x18] sm:$0xff]
    %v33 = vld [vmem:[%s0] sm:$0xff]
    %v34 = vld [vmem:[%s0 + $0x8] sm:$0xff]
    %v35 = vld [vmem:[%s0 + $0x10] sm:$0xff]
    %v36 = vld [vmem:[%s0 + $0x18] sm:$0xff]
    %v37 = vld [vmem:[%s0 + $0x20] sm:$0xff]
    %v38 = vld [vmem:[%s0 + $0x28] sm:$0xff]
    %v39 = vld [vmem:[%s0 + $0x30] sm:$0xff]
    %v40 = vld [vmem:[%s0 + $0x38] sm:$0xff]
    %v41 = vld [vmem:[%s0 + $0x40] sm:$0xff]
    %v42 = vld [vmem:[%s0 + $0x48] sm:$0xff]
    %v43 = vld [vmem:[%s0 + $0x50] sm:$0xff]
    %v44 = vld [vmem:[%s0 + $0x58] sm:$0xff]
    %v45 = vld [vmem:[%s0 + $0x60] sm:$0xff]
    %v46 = vld [vmem:[%s0 + $0x68] sm:$0xff]
    %v47 = vld [vmem:[%s0 + $0x70] sm:$0xff]
    %v48 = vld [vmem:[%s0 + $0x78] sm:$0xff]
    %v49 = vld [vmem:[%s0 + $0x80] sm:$0xff]
    %v50 = vld [vmem:[%s0 + $0x88] sm:$0xff]
    %v51 = vld [vmem:[%s0 + $0x90] sm:$0xff]
    %v52 = vld [vmem:[%s0 + $0x98] sm:$0xff]
    %v53 = vld [vmem:[%s0 + $0xa0] sm:$0xff]
    %v54 = vld [vmem:[%s0 + $0xa8] sm:$0xff]
    %v55 = vld [vmem:[%s0 + $0xb0] sm:$0xff]
    %v56 = vld [vmem:[%s0 + $0xb8] sm:$0xff]
    %v57 = vld [vmem:[%s0 + $0xc0] sm:$0xff]
    %v58 = vld [vmem:[%s0 + $0xc8] sm:$0xff]
    %v59 = vld [vmem:[%s0 + $0xd0] sm:$0xff]
    %v60 = vld [vmem:[%s0 + $0xd8] sm:$0xff]
    %v61 = vld [vmem:[%s0 + $0xe0] sm:$0xff]
    %v62 = vld [vmem:[%s0 + $0xe8] sm:$0xff]
    %v63 = vld [vmem:[%s0 + $0xf0] sm:$0xff]
    %v64 = vld [vmem:[%s0 + $0xf8] sm:$0xff]
    %v65 = vld [vmem:[%s2] sm:$0xff]
    %v66 = vld [vmem:[%s2 + $0x8] sm:$0xff]
    %v67 = vld [vmem:[%s2 + $0x10] sm:$0xff]
    %v68 = vld [vmem:[%s2 + $0x18] sm:$0xff]
    %70 = vset.pattern.permute.xlu0 0
    %71 = vperm.xlu0 %70, %v65
    %v72 = vpop.permute.xlu0 %71
    %75 = vset.pattern.permute.xlu0 0
    %76 = vperm.xlu0 %75, %v66
    %v77 = vpop.permute.xlu0 %76
    %80 = vset.pattern.permute.xlu0 0
    %81 = vperm.xlu0 %80, %v67
    %v82 = vpop.permute.xlu0 %81
    %85 = vset.pattern.permute.xlu0 0
    %86 = vperm.xlu0 %85, %v68
    %v87 = vpop.permute.xlu0 %86
    %vm89 = vcmask 31744
    %v91 = vsel %vm89, %v29, 0
    %v94 = vsel %vm89, %v30, 0
    %v97 = vsel %vm89, %v31, 0
    %v100 = vsel %vm89, %v32, 0
    %v103 = vsel %vm89, %v33, 0
    %v106 = vsel %vm89, %v34, 0
    %v109 = vsel %vm89, %v35, 0
    %v112 = vsel %vm89, %v36, 0
    %v115 = vsel %vm89, %v37, 0
    %v118 = vsel %vm89, %v38, 0
    %v121 = vsel %vm89, %v39, 0
    %v124 = vsel %vm89, %v40, 0
    %v127 = vsel %vm89, %v41, 0
    %v130 = vsel %vm89, %v42, 0
    %v133 = vsel %vm89, %v43, 0
    %v136 = vsel %vm89, %v44, 0
    %v139 = vsel %vm89, %v45, 0
    %v142 = vsel %vm89, %v46, 0
    %v145 = vsel %vm89, %v47, 0
    %v148 = vsel %vm89, %v48, 0
    %v151 = vsel %vm89, %v49, 0
    %v154 = vsel %vm89, %v50, 0
    %v157 = vsel %vm89, %v51, 0
    %v160 = vsel %vm89, %v52, 0
    %v163 = vsel %vm89, %v53, 0
    %v166 = vsel %vm89, %v54, 0
    %v169 = vsel %vm89, %v55, 0
    %v172 = vsel %vm89, %v56, 0
    %v175 = vsel %vm89, %v57, 0
    %v178 = vsel %vm89, %v58, 0
    %v181 = vsel %vm89, %v59, 0
    %v184 = vsel %vm89, %v60, 0
    %v187 = vsel %vm89, %v61, 0
    %v190 = vsel %vm89, %v62, 0
    %v193 = vsel %vm89, %v63, 0
    %v196 = vsel %vm89, %v64, 0
    %198 = vmatprep.subr.mxu0 0.0
    %199 = vmatpush1.xpose.msra.mxu0 %v103
    %200 = vmatprep.subr.mxu0 0.0
    %201 = vmatpush1.xpose.msra.mxu0 %v106
    %202 = vmatprep.subr.mxu0 0.0
    %203 = vmatpush1.xpose.msra.mxu0 %v109
    %204 = vmatprep.subr.mxu0 0.0
    %205 = vmatpush1.xpose.msra.mxu0 %v112
    %206 = vmatprep.subr.mxu0 0.0
    %207 = vmatpush1.xpose.msra.mxu0 %v115
    %208 = vmatprep.subr.mxu0 0.0
    %209 = vmatpush1.xpose.msra.mxu0 %v118
    %210 = vmatprep.subr.mxu0 0.0
    %211 = vmatpush1.xpose.msra.mxu0 %v121
    %212 = vmatprep.subr.mxu0 0.0
    %213 = vmatpush1.xpose.msra.mxu0 %v124
    %214 = vmatprep.subr.mxu0 0.0
    %215 = vmatpush1.xpose.msra.mxu0 %v127
    %216 = vmatprep.subr.mxu0 0.0
    %217 = vmatpush1.xpose.msra.mxu0 %v130
    %218 = vmatprep.subr.mxu0 0.0
    %219 = vmatpush1.xpose.msra.mxu0 %v133
    %220 = vmatprep.subr.mxu0 0.0
    %221 = vmatpush1.xpose.msra.mxu0 %v136
    %222 = vmatprep.subr.mxu0 0.0
    %223 = vmatpush1.xpose.msra.mxu0 %v139
    %224 = vmatprep.subr.mxu0 0.0
    %225 = vmatpush1.xpose.msra.mxu0 %v142
    %226 = vmatprep.subr.mxu0 0.0
    %227 = vmatpush1.xpose.msra.mxu0 %v145
    %228 = vmatprep.subr.mxu0 0.0
    %229 = vmatpush1.xpose.msra.mxu0 %v148
    %230 = vmatprep.subr.mxu0 0.0
    %231 = vmatpush1.xpose.msra.mxu0 %v151
    %232 = vmatprep.subr.mxu0 0.0
    %233 = vmatpush1.xpose.msra.mxu0 %v154
    %234 = vmatprep.subr.mxu0 0.0
    %235 = vmatpush1.xpose.msra.mxu0 %v157
    %236 = vmatprep.subr.mxu0 0.0
    %237 = vmatpush1.xpose.msra.mxu0 %v160
    %238 = vmatprep.subr.mxu0 0.0
    %239 = vmatpush1.xpose.msra.mxu0 %v163
    %240 = vmatprep.subr.mxu0 0.0
    %241 = vmatpush1.xpose.msra.mxu0 %v166
    %242 = vmatprep.subr.mxu0 0.0
    %243 = vmatpush1.xpose.msra.mxu0 %v169
    %244 = vmatprep.subr.mxu0 0.0
    %245 = vmatpush1.xpose.msra.mxu0 %v172
    %246 = vmatprep.subr.mxu0 0.0
    %247 = vmatpush1.xpose.msra.mxu0 %v175
    %248 = vmatprep.subr.mxu0 0.0
    %249 = vmatpush1.xpose.msra.mxu0 %v178
    %250 = vmatprep.subr.mxu0 0.0
    %251 = vmatpush1.xpose.msra.mxu0 %v181
    %252 = vmatprep.subr.mxu0 0.0
    %253 = vmatpush1.xpose.msra.mxu0 %v184
    %254 = vmatprep.subr.mxu0 0.0
    %255 = vmatpush1.xpose.msra.mxu0 %v187
    %256 = vmatprep.subr.mxu0 0.0
    %257 = vmatpush1.xpose.msra.mxu0 %v190
    %258 = vmatprep.subr.mxu0 0.0
    %259 = vmatpush1.xpose.msra.mxu0 %v193
    %260 = vmatprep.subr.mxu0 0.0
    %261 = vmatpush1.xpose.msra.mxu0 %v196
    %262 = vmatprep.mubr.f32.mxu0 0.0
    %263 = vmatmul.mubr.f32.gmra.mrb[0].mxu0 %v91
    %v264 = vpop.f32.mrb[0].mxu0
    %v265 = vadd.f32 %v72, %v264
    %v266 = vpop.f32.mrb[0].mxu0
    %v267 = vadd.f32 %v72, %v266
    %268 = vmatprep.mubr.f32.mxu0 0.0
    %269 = vmatmul.mubr.f32.gmra.mrb[0].mxu0 %v94
    %v270 = vpop.f32.mrb[0].mxu0
    %v271 = vadd.f32 %v77, %v270
    %v272 = vpop.f32.mrb[0].mxu0
    %v273 = vadd.f32 %v77, %v272
    %274 = vmatprep.mubr.f32.mxu0 0.0
    %275 = vmatmul.mubr.f32.gmra.mrb[0].mxu0 %v97
    %v276 = vpop.f32.mrb[0].mxu0
    %v277 = vadd.f32 %v82, %v276
    %v278 = vpop.f32.mrb[0].mxu0
    %v279 = vadd.f32 %v82, %v278
    %280 = vmatprep.mubr.f32.mxu0 0.0
    %281 = vmatmul.mubr.f32.gmra.mrb[0].mxu0 %v100
    %v282 = vpop.f32.mrb[0].mxu0
    %v283 = vadd.f32 %v87, %v282
    %v284 = vpop.f32.mrb[0].mxu0
    %v285 = vadd.f32 %v87, %v284
    %286 = vdwg.mxu0
    %v287 = vand.u32 2147483647, %v265
    %vm288 = vcmp.le.f32.partialorder %v287, 0.7853982
    %vm289 = vcmp.lt.s32.totalorder %v265, 0
    %v290 = vand.u32 %v265, 2139095040
    %v291 = vshrl.u32 %v290, 23
    %v292 = vsub.s32 %v291, 127
    %v293 = vand.u32 2147483647, %v265
    %v294 = vand.u32 %v293, 8388607
    %v295 = vor.u32 %v294, 8388608
    %v296 = vsub.s32 0, %v295
    %v297 = vadd.s32 %v292, 1
    %vm298 = vcmp.gt.s32.totalorder %v297, 0
    %v299 = vsel %vm298, %v297, 0
    %v300 = vshrl.u32 %v299, 5
    %v301 = vand.u32 %v299, 31
    %v302 = vsub.s32 32, %v301
    %v303 = vshrl.u32 683565275, %v302
    %v304 = vshll.u32 683565275, %v301
    %v305 = vshrl.u32 2475754826, %v302
    %v306 = vor.u32 %v304, %v305
    %v307 = vshll.u32 2475754826, %v301
    %v308 = vshrl.u32 2131351028, %v302
    %v309 = vor.u32 %v307, %v308
    %v310 = vshll.u32 2131351028, %v301
    %v311 = vshrl.u32 2102212464, %v302
    %v312 = vor.u32 %v310, %v311
    %v313 = vshll.u32 2102212464, %v301
    %v314 = vshrl.u32 920167782, %v302
    %v315 = vor.u32 %v313, %v314
    %v316 = vshll.u32 920167782, %v301
    %v317 = vshrl.u32 1326507024, %v302
    %v318 = vor.u32 %v316, %v317
    %vm319 = vcmp.lt.s32.totalorder %v300, 1
    %vm320 = vcmp.lt.s32.totalorder %v300, 2
    %vm321 = vcmp.lt.s32.totalorder %v300, 3
    %vm322 = vcmp.lt.s32.totalorder %v300, 4
    %v323 = vsel %vm319, %v303, %v306
    %v324 = vsel %vm322, %v312, 2102212464
    %v325 = vsel %vm321, %v309, %v324
    %v326 = vsel %vm320, %v323, %v325
    %v327 = vsel %vm319, %v306, %v309
    %v328 = vsel %vm322, %v315, 920167782
    %v329 = vsel %vm321, %v312, %v328
    %v330 = vsel %vm320, %v327, %v329
    %v331 = vsel %vm319, %v309, %v312
    %v332 = vsel %vm322, %v318, 1326507024
    %v333 = vsel %vm321, %v315, %v332
    %v334 = vsel %vm320, %v331, %v333
    %v335 = vshll.u32 %v295, 8
    %v336 = vmul.u32.u64.compose %v335, %v334
    %v337 = vextract.low.u32 %v336
    %v338 = vextract.high.u32 %v336
    %v339 = vmul.u32.u64.compose %v335, %v330
    %v340 = vextract.low.u32 %v339
    %v341 = vextract.high.u32 %v339
    %v342 = vmul.u32 %v335, %v326
    %v343 = vadd.s32 %v338, %v340
    %vm344 = vc.u32 %v338, %v340
    %v345 = vadd.s32 %v341, 1
    %v346 = vsel %vm344, %v345, %v341
    %v347 = vadd.s32 %v342, %v346
    %v348 = vadd.s32 %v347, 536870912
    %v349 = vshrl.u32 %v348, 30
    %v350 = vshll.u32 %v349, 30
    %v351 = vsub.s32 %v347, %v350
    %vm352 = vcmp.lt.s32.totalorder %v351, 0
    %v353 = vsub.s32 0, %v351
    %v354 = vsel %vm352, %v353, %v351
    %v355 = vclz %v354
    %v356 = vsub.s32 %v355, 2
    %vm357 = vcmp.gt.s32.totalorder 0, %v356
    %v358 = vsel %vm357, 0, %v356
    %v359 = vsub.s32 32, %v358
    %v360 = vshll.u32 %v351, %v358
    %v361 = vshrl.u32 %v343, %v359
    %v362 = vor.u32 %v360, %v361
    %v363 = vsub.s32 4294967266, %v358
    %v364 = vadd.s32 %v363, 127
    %v365 = vshll.u32 %v364, 23
    %v366 = vor.u32 4788187, %v365
    %v367 = vand.u32 2147483647, %v366
    %v369 = vcvt.s32.f32 %v362
    %v370 = vmul.f32 %v369, %v367
    %v371 = vxor.u32 %v370, 2147483648
    %v372 = vsel %vm289, %v371, %v370
    %v373 = vsub.s32 4, %v349
    %v374 = vsel %vm289, %v373, %v349
    %v375 = vsel %vm288, %v265, %v372
    %v376 = vsel %vm288, 0, %v374
    %v377 = vcosq.f32.pop %v375
    %v378 = vsinq.f32.pop %v375
    %vm379 = vweird.f32 %v265
    %v380 = vadd.s32 %v376, 3
    %v381 = vand.u32 %v380, 3
    %vm382 = vcmp.lt.s32.totalorder %v381, 2
    %vm383 = vcmp.eq.s32.totalorder %v381, 0
    %v384 = vxor.u32 %v378, 2147483648
    %v385 = vsel %vm383, %v377, %v384
    %vm386 = vcmp.eq.s32.totalorder %v381, 2
    %v387 = vxor.u32 %v377, 2147483648
    %v388 = vsel %vm386, %v387, %v378
    %v389 = vsel %vm382, %v385, %v388
    %v390 = vsel %vm379, nan, %v389
    %v391 = vand.u32 2147483647, %v267
    %vm392 = vcmp.le.f32.partialorder %v391, 0.7853982
    %vm393 = vcmp.lt.s32.totalorder %v267, 0
    %v394 = vand.u32 %v267, 2139095040
    %v395 = vshrl.u32 %v394, 23
    %v396 = vsub.s32 %v395, 127
    %v397 = vand.u32 2147483647, %v267
    %v398 = vand.u32 %v397, 8388607
    %v399 = vor.u32 %v398, 8388608
    %v400 = vsub.s32 0, %v399
    %v401 = vadd.s32 %v396, 1
    %vm402 = vcmp.gt.s32.totalorder %v401, 0
    %v403 = vsel %vm402, %v401, 0
    %v404 = vshrl.u32 %v403, 5
    %v405 = vand.u32 %v403, 31
    %v406 = vsub.s32 32, %v405
    %v407 = vshrl.u32 683565275, %v406
    %v408 = vshll.u32 683565275, %v405
    %v409 = vshrl.u32 2475754826, %v406
    %v410 = vor.u32 %v408, %v409
    %v411 = vshll.u32 2475754826, %v405
    %v412 = vshrl.u32 2131351028, %v406
    %v413 = vor.u32 %v411, %v412
    %v414 = vshll.u32 2131351028, %v405
    %v415 = vshrl.u32 2102212464, %v406
    %v416 = vor.u32 %v414, %v415
    %v417 = vshll.u32 2102212464, %v405
    %v418 = vshrl.u32 920167782, %v406
    %v419 = vor.u32 %v417, %v418
    %v420 = vshll.u32 920167782, %v405
    %v421 = vshrl.u32 1326507024, %v406
    %v422 = vor.u32 %v420, %v421
    %vm423 = vcmp.lt.s32.totalorder %v404, 1
    %vm424 = vcmp.lt.s32.totalorder %v404, 2
    %vm425 = vcmp.lt.s32.totalorder %v404, 3
    %vm426 = vcmp.lt.s32.totalorder %v404, 4
    %v427 = vsel %vm423, %v407, %v410
    %v428 = vsel %vm426, %v416, 2102212464
    %v429 = vsel %vm425, %v413, %v428
    %v430 = vsel %vm424, %v427, %v429
    %v431 = vsel %vm423, %v410, %v413
    %v432 = vsel %vm426, %v419, 920167782
    %v433 = vsel %vm425, %v416, %v432
    %v434 = vsel %vm424, %v431, %v433
    %v435 = vsel %vm423, %v413, %v416
    %v436 = vsel %vm426, %v422, 1326507024
    %v437 = vsel %vm425, %v419, %v436
    %v438 = vsel %vm424, %v435, %v437
    %v439 = vshll.u32 %v399, 8
    %v440 = vmul.u32.u64.compose %v439, %v438
    %v441 = vextract.low.u32 %v440
    %v442 = vextract.high.u32 %v440
    %v443 = vmul.u32.u64.compose %v439, %v434
    %v444 = vextract.low.u32 %v443
    %v445 = vextract.high.u32 %v443
    %v446 = vmul.u32 %v439, %v430
    %v447 = vadd.s32 %v442, %v444
    %vm448 = vc.u32 %v442, %v444
    %v449 = vadd.s32 %v445, 1
    %v450 = vsel %vm448, %v449, %v445
    %v451 = vadd.s32 %v446, %v450
    %v452 = vadd.s32 %v451, 536870912
    %v453 = vshrl.u32 %v452, 30
    %v454 = vshll.u32 %v453, 30
    %v455 = vsub.s32 %v451, %v454
    %vm456 = vcmp.lt.s32.totalorder %v455, 0
    %v457 = vsub.s32 0, %v455
    %v458 = vsel %vm456, %v457, %v455
    %v459 = vclz %v458
    %v460 = vsub.s32 %v459, 2
    %vm461 = vcmp.gt.s32.totalorder 0, %v460
    %v462 = vsel %vm461, 0, %v460
    %v463 = vsub.s32 32, %v462
    %v464 = vshll.u32 %v455, %v462
    %v465 = vshrl.u32 %v447, %v463
    %v466 = vor.u32 %v464, %v465
    %v467 = vsub.s32 4294967266, %v462
    %v468 = vadd.s32 %v467, 127
    %v469 = vshll.u32 %v468, 23
    %v470 = vor.u32 4788187, %v469
    %v471 = vand.u32 2147483647, %v470
    %v473 = vcvt.s32.f32 %v466
    %v474 = vmul.f32 %v473, %v471
    %v475 = vxor.u32 %v474, 2147483648
    %v476 = vsel %vm393, %v475, %v474
    %v477 = vsub.s32 4, %v453
    %v478 = vsel %vm393, %v477, %v453
    %v479 = vsel %vm392, %v267, %v476
    %v480 = vsel %vm392, 0, %v478
    %v481 = vcosq.f32.pop %v479
    %v482 = vsinq.f32.pop %v479
    %vm483 = vweird.f32 %v267
    %v484 = vadd.s32 %v480, 3
    %v485 = vand.u32 %v484, 3
    %vm486 = vcmp.lt.s32.totalorder %v485, 2
    %vm487 = vcmp.eq.s32.totalorder %v485, 0
    %v488 = vxor.u32 %v482, 2147483648
    %v489 = vsel %vm487, %v481, %v488
    %vm490 = vcmp.eq.s32.totalorder %v485, 2
    %v491 = vxor.u32 %v481, 2147483648
    %v492 = vsel %vm490, %v491, %v482
    %v493 = vsel %vm486, %v489, %v492
    %v494 = vsel %vm483, nan, %v493
    %v495 = vand.u32 2147483647, %v271
    %vm496 = vcmp.le.f32.partialorder %v495, 0.7853982
    %vm497 = vcmp.lt.s32.totalorder %v271, 0
    %v498 = vand.u32 %v271, 2139095040
    %v499 = vshrl.u32 %v498, 23
    %v500 = vsub.s32 %v499, 127
    %v501 = vand.u32 2147483647, %v271
    %v502 = vand.u32 %v501, 8388607
    %v503 = vor.u32 %v502, 8388608
    %v504 = vsub.s32 0, %v503
    %v505 = vadd.s32 %v500, 1
    %vm506 = vcmp.gt.s32.totalorder %v505, 0
    %v507 = vsel %vm506, %v505, 0
    %v508 = vshrl.u32 %v507, 5
    %v509 = vand.u32 %v507, 31
    %v510 = vsub.s32 32, %v509
    %v511 = vshrl.u32 683565275, %v510
    %v512 = vshll.u32 683565275, %v509
    %v513 = vshrl.u32 2475754826, %v510
    %v514 = vor.u32 %v512, %v513
    %v515 = vshll.u32 2475754826, %v509
    %v516 = vshrl.u32 2131351028, %v510
    %v517 = vor.u32 %v515, %v516
    %v518 = vshll.u32 2131351028, %v509
    %v519 = vshrl.u32 2102212464, %v510
    %v520 = vor.u32 %v518, %v519
    %v521 = vshll.u32 2102212464, %v509
    %v522 = vshrl.u32 920167782, %v510
    %v523 = vor.u32 %v521, %v522
    %v524 = vshll.u32 920167782, %v509
    %v525 = vshrl.u32 1326507024, %v510
    %v526 = vor.u32 %v524, %v525
    %vm527 = vcmp.lt.s32.totalorder %v508, 1
    %vm528 = vcmp.lt.s32.totalorder %v508, 2
    %vm529 = vcmp.lt.s32.totalorder %v508, 3
    %vm530 = vcmp.lt.s32.totalorder %v508, 4
    %v531 = vsel %vm527, %v511, %v514
    %v532 = vsel %vm530, %v520, 2102212464
    %v533 = vsel %vm529, %v517, %v532
    %v534 = vsel %vm528, %v531, %v533
    %v535 = vsel %vm527, %v514, %v517
    %v536 = vsel %vm530, %v523, 920167782
    %v537 = vsel %vm529, %v520, %v536
    %v538 = vsel %vm528, %v535, %v537
    %v539 = vsel %vm527, %v517, %v520
    %v540 = vsel %vm530, %v526, 1326507024
    %v541 = vsel %vm529, %v523, %v540
    %v542 = vsel %vm528, %v539, %v541
    %v543 = vshll.u32 %v503, 8
    %v544 = vmul.u32.u64.compose %v543, %v542
    %v545 = vextract.low.u32 %v544
    %v546 = vextract.high.u32 %v544
    %v547 = vmul.u32.u64.compose %v543, %v538
    %v548 = vextract.low.u32 %v547
    %v549 = vextract.high.u32 %v547
    %v550 = vmul.u32 %v543, %v534
    %v551 = vadd.s32 %v546, %v548
    %vm552 = vc.u32 %v546, %v548
    %v553 = vadd.s32 %v549, 1
    %v554 = vsel %vm552, %v553, %v549
    %v555 = vadd.s32 %v550, %v554
    %v556 = vadd.s32 %v555, 536870912
    %v557 = vshrl.u32 %v556, 30
    %v558 = vshll.u32 %v557, 30
    %v559 = vsub.s32 %v555, %v558
    %vm560 = vcmp.lt.s32.totalorder %v559, 0
    %v561 = vsub.s32 0, %v559
    %v562 = vsel %vm560, %v561, %v559
    %v563 = vclz %v562
    %v564 = vsub.s32 %v563, 2
    %vm565 = vcmp.gt.s32.totalorder 0, %v564
    %v566 = vsel %vm565, 0, %v564
    %v567 = vsub.s32 32, %v566
    %v568 = vshll.u32 %v559, %v566
    %v569 = vshrl.u32 %v551, %v567
    %v570 = vor.u32 %v568, %v569
    %v571 = vsub.s32 4294967266, %v566
    %v572 = vadd.s32 %v571, 127
    %v573 = vshll.u32 %v572, 23
    %v574 = vor.u32 4788187, %v573
    %v575 = vand.u32 2147483647, %v574
    %v577 = vcvt.s32.f32 %v570
    %v578 = vmul.f32 %v577, %v575
    %v579 = vxor.u32 %v578, 2147483648
    %v580 = vsel %vm497, %v579, %v578
    %v581 = vsub.s32 4, %v557
    %v582 = vsel %vm497, %v581, %v557
    %v583 = vsel %vm496, %v271, %v580
    %v584 = vsel %vm496, 0, %v582
    %v585 = vcosq.f32.pop %v583
    %v586 = vsinq.f32.pop %v583
    %vm587 = vweird.f32 %v271
    %v588 = vadd.s32 %v584, 3
    %v589 = vand.u32 %v588, 3
    %vm590 = vcmp.lt.s32.totalorder %v589, 2
    %vm591 = vcmp.eq.s32.totalorder %v589, 0
    %v592 = vxor.u32 %v586, 2147483648
    %v593 = vsel %vm591, %v585, %v592
    %vm594 = vcmp.eq.s32.totalorder %v589, 2
    %v595 = vxor.u32 %v585, 2147483648
    %v596 = vsel %vm594, %v595, %v586
    %v597 = vsel %vm590, %v593, %v596
    %v598 = vsel %vm587, nan, %v597
    %v599 = vand.u32 2147483647, %v273
    %vm600 = vcmp.le.f32.partialorder %v599, 0.7853982
    %vm601 = vcmp.lt.s32.totalorder %v273, 0
    %v602 = vand.u32 %v273, 2139095040
    %v603 = vshrl.u32 %v602, 23
    %v604 = vsub.s32 %v603, 127
    %v605 = vand.u32 2147483647, %v273
    %v606 = vand.u32 %v605, 8388607
    %v607 = vor.u32 %v606, 8388608
    %v608 = vsub.s32 0, %v607
    %v609 = vadd.s32 %v604, 1
    %vm610 = vcmp.gt.s32.totalorder %v609, 0
    %v611 = vsel %vm610, %v609, 0
    %v612 = vshrl.u32 %v611, 5
    %v613 = vand.u32 %v611, 31
    %v614 = vsub.s32 32, %v613
    %v615 = vshrl.u32 683565275, %v614
    %v616 = vshll.u32 683565275, %v613
    %v617 = vshrl.u32 2475754826, %v614
    %v618 = vor.u32 %v616, %v617
    %v619 = vshll.u32 2475754826, %v613
    %v620 = vshrl.u32 2131351028, %v614
    %v621 = vor.u32 %v619, %v620
    %v622 = vshll.u32 2131351028, %v613
    %v623 = vshrl.u32 2102212464, %v614
    %v624 = vor.u32 %v622, %v623
    %v625 = vshll.u32 2102212464, %v613
    %v626 = vshrl.u32 920167782, %v614
    %v627 = vor.u32 %v625, %v626
    %v628 = vshll.u32 920167782, %v613
    %v629 = vshrl.u32 1326507024, %v614
    %v630 = vor.u32 %v628, %v629
    %vm631 = vcmp.lt.s32.totalorder %v612, 1
    %vm632 = vcmp.lt.s32.totalorder %v612, 2
    %vm633 = vcmp.lt.s32.totalorder %v612, 3
    %vm634 = vcmp.lt.s32.totalorder %v612, 4
    %v635 = vsel %vm631, %v615, %v618
    %v636 = vsel %vm634, %v624, 2102212464
    %v637 = vsel %vm633, %v621, %v636
    %v638 = vsel %vm632, %v635, %v637
    %v639 = vsel %vm631, %v618, %v621
    %v640 = vsel %vm634, %v627, 920167782
    %v641 = vsel %vm633, %v624, %v640
    %v642 = vsel %vm632, %v639, %v641
    %v643 = vsel %vm631, %v621, %v624
    %v644 = vsel %vm634, %v630, 1326507024
    %v645 = vsel %vm633, %v627, %v644
    %v646 = vsel %vm632, %v643, %v645
    %v647 = vshll.u32 %v607, 8
    %v648 = vmul.u32.u64.compose %v647, %v646
    %v649 = vextract.low.u32 %v648
    %v650 = vextract.high.u32 %v648
    %v651 = vmul.u32.u64.compose %v647, %v642
    %v652 = vextract.low.u32 %v651
    %v653 = vextract.high.u32 %v651
    %v654 = vmul.u32 %v647, %v638
    %v655 = vadd.s32 %v650, %v652
    %vm656 = vc.u32 %v650, %v652
    %v657 = vadd.s32 %v653, 1
    %v658 = vsel %vm656, %v657, %v653
    %v659 = vadd.s32 %v654, %v658
    %v660 = vadd.s32 %v659, 536870912
    %v661 = vshrl.u32 %v660, 30
    %v662 = vshll.u32 %v661, 30
    %v663 = vsub.s32 %v659, %v662
    %vm664 = vcmp.lt.s32.totalorder %v663, 0
    %v665 = vsub.s32 0, %v663
    %v666 = vsel %vm664, %v665, %v663
    %v667 = vclz %v666
    %v668 = vsub.s32 %v667, 2
    %vm669 = vcmp.gt.s32.totalorder 0, %v668
    %v670 = vsel %vm669, 0, %v668
    %v671 = vsub.s32 32, %v670
    %v672 = vshll.u32 %v663, %v670
    %v673 = vshrl.u32 %v655, %v671
    %v674 = vor.u32 %v672, %v673
    %v675 = vsub.s32 4294967266, %v670
    %v676 = vadd.s32 %v675, 127
    %v677 = vshll.u32 %v676, 23
    %v678 = vor.u32 4788187, %v677
    %v679 = vand.u32 2147483647, %v678
    %v681 = vcvt.s32.f32 %v674
    %v682 = vmul.f32 %v681, %v679
    %v683 = vxor.u32 %v682, 2147483648
    %v684 = vsel %vm601, %v683, %v682
    %v685 = vsub.s32 4, %v661
    %v686 = vsel %vm601, %v685, %v661
    %v687 = vsel %vm600, %v273, %v684
    %v688 = vsel %vm600, 0, %v686
    %v689 = vcosq.f32.pop %v687
    %v690 = vsinq.f32.pop %v687
    %vm691 = vweird.f32 %v273
    %v692 = vadd.s32 %v688, 3
    %v693 = vand.u32 %v692, 3
    %vm694 = vcmp.lt.s32.totalorder %v693, 2
    %vm695 = vcmp.eq.s32.totalorder %v693, 0
    %v696 = vxor.u32 %v690, 2147483648
    %v697 = vsel %vm695, %v689, %v696
    %vm698 = vcmp.eq.s32.totalorder %v693, 2
    %v699 = vxor.u32 %v689, 2147483648
    %v700 = vsel %vm698, %v699, %v690
    %v701 = vsel %vm694, %v697, %v700
    %v702 = vsel %vm691, nan, %v701
    %v703 = vand.u32 2147483647, %v277
    %vm704 = vcmp.le.f32.partialorder %v703, 0.7853982
    %vm705 = vcmp.lt.s32.totalorder %v277, 0
    %v706 = vand.u32 %v277, 2139095040
    %v707 = vshrl.u32 %v706, 23
    %v708 = vsub.s32 %v707, 127
    %v709 = vand.u32 2147483647, %v277
    %v710 = vand.u32 %v709, 8388607
    %v711 = vor.u32 %v710, 8388608
    %v712 = vsub.s32 0, %v711
    %v713 = vadd.s32 %v708, 1
    %vm714 = vcmp.gt.s32.totalorder %v713, 0
    %v715 = vsel %vm714, %v713, 0
    %v716 = vshrl.u32 %v715, 5
    %v717 = vand.u32 %v715, 31
    %v718 = vsub.s32 32, %v717
    %v719 = vshrl.u32 683565275, %v718
    %v720 = vshll.u32 683565275, %v717
    %v721 = vshrl.u32 2475754826, %v718
    %v722 = vor.u32 %v720, %v721
    %v723 = vshll.u32 2475754826, %v717
    %v724 = vshrl.u32 2131351028, %v718
    %v725 = vor.u32 %v723, %v724
    %v726 = vshll.u32 2131351028, %v717
    %v727 = vshrl.u32 2102212464, %v718
    %v728 = vor.u32 %v726, %v727
    %v729 = vshll.u32 2102212464, %v717
    %v730 = vshrl.u32 920167782, %v718
    %v731 = vor.u32 %v729, %v730
    %v732 = vshll.u32 920167782, %v717
    %v733 = vshrl.u32 1326507024, %v718
    %v734 = vor.u32 %v732, %v733
    %vm735 = vcmp.lt.s32.totalorder %v716, 1
    %vm736 = vcmp.lt.s32.totalorder %v716, 2
    %vm737 = vcmp.lt.s32.totalorder %v716, 3
    %vm738 = vcmp.lt.s32.totalorder %v716, 4
    %v739 = vsel %vm735, %v719, %v722
    %v740 = vsel %vm738, %v728, 2102212464
    %v741 = vsel %vm737, %v725, %v740
    %v742 = vsel %vm736, %v739, %v741
    %v743 = vsel %vm735, %v722, %v725
    %v744 = vsel %vm738, %v731, 920167782
    %v745 = vsel %vm737, %v728, %v744
    %v746 = vsel %vm736, %v743, %v745
    %v747 = vsel %vm735, %v725, %v728
    %v748 = vsel %vm738, %v734, 1326507024
    %v749 = vsel %vm737, %v731, %v748
    %v750 = vsel %vm736, %v747, %v749
    %v751 = vshll.u32 %v711, 8
    %v752 = vmul.u32.u64.compose %v751, %v750
    %v753 = vextract.low.u32 %v752
    %v754 = vextract.high.u32 %v752
    %v755 = vmul.u32.u64.compose %v751, %v746
    %v756 = vextract.low.u32 %v755
    %v757 = vextract.high.u32 %v755
    %v758 = vmul.u32 %v751, %v742
    %v759 = vadd.s32 %v754, %v756
    %vm760 = vc.u32 %v754, %v756
    %v761 = vadd.s32 %v757, 1
    %v762 = vsel %vm760, %v761, %v757
    %v763 = vadd.s32 %v758, %v762
    %v764 = vadd.s32 %v763, 536870912
    %v765 = vshrl.u32 %v764, 30
    %v766 = vshll.u32 %v765, 30
    %v767 = vsub.s32 %v763, %v766
    %vm768 = vcmp.lt.s32.totalorder %v767, 0
    %v769 = vsub.s32 0, %v767
    %v770 = vsel %vm768, %v769, %v767
    %v771 = vclz %v770
    %v772 = vsub.s32 %v771, 2
    %vm773 = vcmp.gt.s32.totalorder 0, %v772
    %v774 = vsel %vm773, 0, %v772
    %v775 = vsub.s32 32, %v774
    %v776 = vshll.u32 %v767, %v774
    %v777 = vshrl.u32 %v759, %v775
    %v778 = vor.u32 %v776, %v777
    %v779 = vsub.s32 4294967266, %v774
    %v780 = vadd.s32 %v779, 127
    %v781 = vshll.u32 %v780, 23
    %v782 = vor.u32 4788187, %v781
    %v783 = vand.u32 2147483647, %v782
    %v785 = vcvt.s32.f32 %v778
    %v786 = vmul.f32 %v785, %v783
    %v787 = vxor.u32 %v786, 2147483648
    %v788 = vsel %vm705, %v787, %v786
    %v789 = vsub.s32 4, %v765
    %v790 = vsel %vm705, %v789, %v765
    %v791 = vsel %vm704, %v277, %v788
    %v792 = vsel %vm704, 0, %v790
    %v793 = vcosq.f32.pop %v791
    %v794 = vsinq.f32.pop %v791
    %vm795 = vweird.f32 %v277
    %v796 = vadd.s32 %v792, 3
    %v797 = vand.u32 %v796, 3
    %vm798 = vcmp.lt.s32.totalorder %v797, 2
    %vm799 = vcmp.eq.s32.totalorder %v797, 0
    %v800 = vxor.u32 %v794, 2147483648
    %v801 = vsel %vm799, %v793, %v800
    %vm802 = vcmp.eq.s32.totalorder %v797, 2
    %v803 = vxor.u32 %v793, 2147483648
    %v804 = vsel %vm802, %v803, %v794
    %v805 = vsel %vm798, %v801, %v804
    %v806 = vsel %vm795, nan, %v805
    %v807 = vand.u32 2147483647, %v279
    %vm808 = vcmp.le.f32.partialorder %v807, 0.7853982
    %vm809 = vcmp.lt.s32.totalorder %v279, 0
    %v810 = vand.u32 %v279, 2139095040
    %v811 = vshrl.u32 %v810, 23
    %v812 = vsub.s32 %v811, 127
    %v813 = vand.u32 2147483647, %v279
    %v814 = vand.u32 %v813, 8388607
    %v815 = vor.u32 %v814, 8388608
    %v816 = vsub.s32 0, %v815
    %v817 = vadd.s32 %v812, 1
    %vm818 = vcmp.gt.s32.totalorder %v817, 0
    %v819 = vsel %vm818, %v817, 0
    %v820 = vshrl.u32 %v819, 5
    %v821 = vand.u32 %v819, 31
    %v822 = vsub.s32 32, %v821
    %v823 = vshrl.u32 683565275, %v822
    %v824 = vshll.u32 683565275, %v821
    %v825 = vshrl.u32 2475754826, %v822
    %v826 = vor.u32 %v824, %v825
    %v827 = vshll.u32 2475754826, %v821
    %v828 = vshrl.u32 2131351028, %v822
    %v829 = vor.u32 %v827, %v828
    %v830 = vshll.u32 2131351028, %v821
    %v831 = vshrl.u32 2102212464, %v822
    %v832 = vor.u32 %v830, %v831
    %v833 = vshll.u32 2102212464, %v821
    %v834 = vshrl.u32 920167782, %v822
    %v835 = vor.u32 %v833, %v834
    %v836 = vshll.u32 920167782, %v821
    %v837 = vshrl.u32 1326507024, %v822
    %v838 = vor.u32 %v836, %v837
    %vm839 = vcmp.lt.s32.totalorder %v820, 1
    %vm840 = vcmp.lt.s32.totalorder %v820, 2
    %vm841 = vcmp.lt.s32.totalorder %v820, 3
    %vm842 = vcmp.lt.s32.totalorder %v820, 4
    %v843 = vsel %vm839, %v823, %v826
    %v844 = vsel %vm842, %v832, 2102212464
    %v845 = vsel %vm841, %v829, %v844
    %v846 = vsel %vm840, %v843, %v845
    %v847 = vsel %vm839, %v826, %v829
    %v848 = vsel %vm842, %v835, 920167782
    %v849 = vsel %vm841, %v832, %v848
    %v850 = vsel %vm840, %v847, %v849
    %v851 = vsel %vm839, %v829, %v832
    %v852 = vsel %vm842, %v838, 1326507024
    %v853 = vsel %vm841, %v835, %v852
    %v854 = vsel %vm840, %v851, %v853
    %v855 = vshll.u32 %v815, 8
    %v856 = vmul.u32.u64.compose %v855, %v854
    %v857 = vextract.low.u32 %v856
    %v858 = vextract.high.u32 %v856
    %v859 = vmul.u32.u64.compose %v855, %v850
    %v860 = vextract.low.u32 %v859
    %v861 = vextract.high.u32 %v859
    %v862 = vmul.u32 %v855, %v846
    %v863 = vadd.s32 %v858, %v860
    %vm864 = vc.u32 %v858, %v860
    %v865 = vadd.s32 %v861, 1
    %v866 = vsel %vm864, %v865, %v861
    %v867 = vadd.s32 %v862, %v866
    %v868 = vadd.s32 %v867, 536870912
    %v869 = vshrl.u32 %v868, 30
    %v870 = vshll.u32 %v869, 30
    %v871 = vsub.s32 %v867, %v870
    %vm872 = vcmp.lt.s32.totalorder %v871, 0
    %v873 = vsub.s32 0, %v871
    %v874 = vsel %vm872, %v873, %v871
    %v875 = vclz %v874
    %v876 = vsub.s32 %v875, 2
    %vm877 = vcmp.gt.s32.totalorder 0, %v876
    %v878 = vsel %vm877, 0, %v876
    %v879 = vsub.s32 32, %v878
    %v880 = vshll.u32 %v871, %v878
    %v881 = vshrl.u32 %v863, %v879
    %v882 = vor.u32 %v880, %v881
    %v883 = vsub.s32 4294967266, %v878
    %v884 = vadd.s32 %v883, 127
    %v885 = vshll.u32 %v884, 23
    %v886 = vor.u32 4788187, %v885
    %v887 = vand.u32 2147483647, %v886
    %v889 = vcvt.s32.f32 %v882
    %v890 = vmul.f32 %v889, %v887
    %v891 = vxor.u32 %v890, 2147483648
    %v892 = vsel %vm809, %v891, %v890
    %v893 = vsub.s32 4, %v869
    %v894 = vsel %vm809, %v893, %v869
    %v895 = vsel %vm808, %v279, %v892
    %v896 = vsel %vm808, 0, %v894
    %v897 = vcosq.f32.pop %v895
    %v898 = vsinq.f32.pop %v895
    %vm899 = vweird.f32 %v279
    %v900 = vadd.s32 %v896, 3
    %v901 = vand.u32 %v900, 3
    %vm902 = vcmp.lt.s32.totalorder %v901, 2
    %vm903 = vcmp.eq.s32.totalorder %v901, 0
    %v904 = vxor.u32 %v898, 2147483648
    %v905 = vsel %vm903, %v897, %v904
    %vm906 = vcmp.eq.s32.totalorder %v901, 2
    %v907 = vxor.u32 %v897, 2147483648
    %v908 = vsel %vm906, %v907, %v898
    %v909 = vsel %vm902, %v905, %v908
    %v910 = vsel %vm899, nan, %v909
    %v911 = vand.u32 2147483647, %v283
    %vm912 = vcmp.le.f32.partialorder %v911, 0.7853982
    %vm913 = vcmp.lt.s32.totalorder %v283, 0
    %v914 = vand.u32 %v283, 2139095040
    %v915 = vshrl.u32 %v914, 23
    %v916 = vsub.s32 %v915, 127
    %v917 = vand.u32 2147483647, %v283
    %v918 = vand.u32 %v917, 8388607
    %v919 = vor.u32 %v918, 8388608
    %v920 = vsub.s32 0, %v919
    %v921 = vadd.s32 %v916, 1
    %vm922 = vcmp.gt.s32.totalorder %v921, 0
    %v923 = vsel %vm922, %v921, 0
    %v924 = vshrl.u32 %v923, 5
    %v925 = vand.u32 %v923, 31
    %v926 = vsub.s32 32, %v925
    %v927 = vshrl.u32 683565275, %v926
    %v928 = vshll.u32 683565275, %v925
    %v929 = vshrl.u32 2475754826, %v926
    %v930 = vor.u32 %v928, %v929
    %v931 = vshll.u32 2475754826, %v925
    %v932 = vshrl.u32 2131351028, %v926
    %v933 = vor.u32 %v931, %v932
    %v934 = vshll.u32 2131351028, %v925
    %v935 = vshrl.u32 2102212464, %v926
    %v936 = vor.u32 %v934, %v935
    %v937 = vshll.u32 2102212464, %v925
    %v938 = vshrl.u32 920167782, %v926
    %v939 = vor.u32 %v937, %v938
    %v940 = vshll.u32 920167782, %v925
    %v941 = vshrl.u32 1326507024, %v926
    %v942 = vor.u32 %v940, %v941
    %vm943 = vcmp.lt.s32.totalorder %v924, 1
    %vm944 = vcmp.lt.s32.totalorder %v924, 2
    %vm945 = vcmp.lt.s32.totalorder %v924, 3
    %vm946 = vcmp.lt.s32.totalorder %v924, 4
    %v947 = vsel %vm943, %v927, %v930
    %v948 = vsel %vm946, %v936, 2102212464
    %v949 = vsel %vm945, %v933, %v948
    %v950 = vsel %vm944, %v947, %v949
    %v951 = vsel %vm943, %v930, %v933
    %v952 = vsel %vm946, %v939, 920167782
    %v953 = vsel %vm945, %v936, %v952
    %v954 = vsel %vm944, %v951, %v953
    %v955 = vsel %vm943, %v933, %v936
    %v956 = vsel %vm946, %v942, 1326507024
    %v957 = vsel %vm945, %v939, %v956
    %v958 = vsel %vm944, %v955, %v957
    %v959 = vshll.u32 %v919, 8
    %v960 = vmul.u32.u64.compose %v959, %v958
    %v961 = vextract.low.u32 %v960
    %v962 = vextract.high.u32 %v960
    %v963 = vmul.u32.u64.compose %v959, %v954
    %v964 = vextract.low.u32 %v963
    %v965 = vextract.high.u32 %v963
    %v966 = vmul.u32 %v959, %v950
    %v967 = vadd.s32 %v962, %v964
    %vm968 = vc.u32 %v962, %v964
    %v969 = vadd.s32 %v965, 1
    %v970 = vsel %vm968, %v969, %v965
    %v971 = vadd.s32 %v966, %v970
    %v972 = vadd.s32 %v971, 536870912
    %v973 = vshrl.u32 %v972, 30
    %v974 = vshll.u32 %v973, 30
    %v975 = vsub.s32 %v971, %v974
    %vm976 = vcmp.lt.s32.totalorder %v975, 0
    %v977 = vsub.s32 0, %v975
    %v978 = vsel %vm976, %v977, %v975
    %v979 = vclz %v978
    %v980 = vsub.s32 %v979, 2
    %vm981 = vcmp.gt.s32.totalorder 0, %v980
    %v982 = vsel %vm981, 0, %v980
    %v983 = vsub.s32 32, %v982
    %v984 = vshll.u32 %v975, %v982
    %v985 = vshrl.u32 %v967, %v983
    %v986 = vor.u32 %v984, %v985
    %v987 = vsub.s32 4294967266, %v982
    %v988 = vadd.s32 %v987, 127
    %v989 = vshll.u32 %v988, 23
    %v990 = vor.u32 4788187, %v989
    %v991 = vand.u32 2147483647, %v990
    %v993 = vcvt.s32.f32 %v986
    %v994 = vmul.f32 %v993, %v991
    %v995 = vxor.u32 %v994, 2147483648
    %v996 = vsel %vm913, %v995, %v994
    %v997 = vsub.s32 4, %v973
    %v998 = vsel %vm913, %v997, %v973
    %v999 = vsel %vm912, %v283, %v996
    %v1000 = vsel %vm912, 0, %v998
    %v1001 = vcosq.f32.pop %v999
    %v1002 = vsinq.f32.pop %v999
    %vm1003 = vweird.f32 %v283
    %v1004 = vadd.s32 %v1000, 3
    %v1005 = vand.u32 %v1004, 3
    %vm1006 = vcmp.lt.s32.totalorder %v1005, 2
    %vm1007 = vcmp.eq.s32.totalorder %v1005, 0
    %v1008 = vxor.u32 %v1002, 2147483648
    %v1009 = vsel %vm1007, %v1001, %v1008
    %vm1010 = vcmp.eq.s32.totalorder %v1005, 2
    %v1011 = vxor.u32 %v1001, 2147483648
    %v1012 = vsel %vm1010, %v1011, %v1002
    %v1013 = vsel %vm1006, %v1009, %v1012
    %v1014 = vsel %vm1003, nan, %v1013
    %v1015 = vand.u32 2147483647, %v285
    %vm1016 = vcmp.le.f32.partialorder %v1015, 0.7853982
    %vm1017 = vcmp.lt.s32.totalorder %v285, 0
    %v1018 = vand.u32 %v285, 2139095040
    %v1019 = vshrl.u32 %v1018, 23
    %v1020 = vsub.s32 %v1019, 127
    %v1021 = vand.u32 2147483647, %v285
    %v1022 = vand.u32 %v1021, 8388607
    %v1023 = vor.u32 %v1022, 8388608
    %v1024 = vsub.s32 0, %v1023
    %v1025 = vadd.s32 %v1020, 1
    %vm1026 = vcmp.gt.s32.totalorder %v1025, 0
    %v1027 = vsel %vm1026, %v1025, 0
    %v1028 = vshrl.u32 %v1027, 5
    %v1029 = vand.u32 %v1027, 31
    %v1030 = vsub.s32 32, %v1029
    %v1031 = vshrl.u32 683565275, %v1030
    %v1032 = vshll.u32 683565275, %v1029
    %v1033 = vshrl.u32 2475754826, %v1030
    %v1034 = vor.u32 %v1032, %v1033
    %v1035 = vshll.u32 2475754826, %v1029
    %v1036 = vshrl.u32 2131351028, %v1030
    %v1037 = vor.u32 %v1035, %v1036
    %v1038 = vshll.u32 2131351028, %v1029
    %v1039 = vshrl.u32 2102212464, %v1030
    %v1040 = vor.u32 %v1038, %v1039
    %v1041 = vshll.u32 2102212464, %v1029
    %v1042 = vshrl.u32 920167782, %v1030
    %v1043 = vor.u32 %v1041, %v1042
    %v1044 = vshll.u32 920167782, %v1029
    %v1045 = vshrl.u32 1326507024, %v1030
    %v1046 = vor.u32 %v1044, %v1045
    %vm1047 = vcmp.lt.s32.totalorder %v1028, 1
    %vm1048 = vcmp.lt.s32.totalorder %v1028, 2
    %vm1049 = vcmp.lt.s32.totalorder %v1028, 3
    %vm1050 = vcmp.lt.s32.totalorder %v1028, 4
    %v1051 = vsel %vm1047, %v1031, %v1034
    %v1052 = vsel %vm1050, %v1040, 2102212464
    %v1053 = vsel %vm1049, %v1037, %v1052
    %v1054 = vsel %vm1048, %v1051, %v1053
    %v1055 = vsel %vm1047, %v1034, %v1037
    %v1056 = vsel %vm1050, %v1043, 920167782
    %v1057 = vsel %vm1049, %v1040, %v1056
    %v1058 = vsel %vm1048, %v1055, %v1057
    %v1059 = vsel %vm1047, %v1037, %v1040
    %v1060 = vsel %vm1050, %v1046, 1326507024
    %v1061 = vsel %vm1049, %v1043, %v1060
    %v1062 = vsel %vm1048, %v1059, %v1061
    %v1063 = vshll.u32 %v1023, 8
    %v1064 = vmul.u32.u64.compose %v1063, %v1062
    %v1065 = vextract.low.u32 %v1064
    %v1066 = vextract.high.u32 %v1064
    %v1067 = vmul.u32.u64.compose %v1063, %v1058
    %v1068 = vextract.low.u32 %v1067
    %v1069 = vextract.high.u32 %v1067
    %v1070 = vmul.u32 %v1063, %v1054
    %v1071 = vadd.s32 %v1066, %v1068
    %vm1072 = vc.u32 %v1066, %v1068
    %v1073 = vadd.s32 %v1069, 1
    %v1074 = vsel %vm1072, %v1073, %v1069
    %v1075 = vadd.s32 %v1070, %v1074
    %v1076 = vadd.s32 %v1075, 536870912
    %v1077 = vshrl.u32 %v1076, 30
    %v1078 = vshll.u32 %v1077, 30
    %v1079 = vsub.s32 %v1075, %v1078
    %vm1080 = vcmp.lt.s32.totalorder %v1079, 0
    %v1081 = vsub.s32 0, %v1079
    %v1082 = vsel %vm1080, %v1081, %v1079
    %v1083 = vclz %v1082
    %v1084 = vsub.s32 %v1083, 2
    %vm1085 = vcmp.gt.s32.totalorder 0, %v1084
    %v1086 = vsel %vm1085, 0, %v1084
    %v1087 = vsub.s32 32, %v1086
    %v1088 = vshll.u32 %v1079, %v1086
    %v1089 = vshrl.u32 %v1071, %v1087
    %v1090 = vor.u32 %v1088, %v1089
    %v1091 = vsub.s32 4294967266, %v1086
    %v1092 = vadd.s32 %v1091, 127
    %v1093 = vshll.u32 %v1092, 23
    %v1094 = vor.u32 4788187, %v1093
    %v1095 = vand.u32 2147483647, %v1094
    %v1097 = vcvt.s32.f32 %v1090
    %v1098 = vmul.f32 %v1097, %v1095
    %v1099 = vxor.u32 %v1098, 2147483648
    %v1100 = vsel %vm1017, %v1099, %v1098
    %v1101 = vsub.s32 4, %v1077
    %v1102 = vsel %vm1017, %v1101, %v1077
    %v1103 = vsel %vm1016, %v285, %v1100
    %v1104 = vsel %vm1016, 0, %v1102
    %v1105 = vcosq.f32.pop %v1103
    %v1106 = vsinq.f32.pop %v1103
    %vm1107 = vweird.f32 %v285
    %v1108 = vadd.s32 %v1104, 3
    %v1109 = vand.u32 %v1108, 3
    %vm1110 = vcmp.lt.s32.totalorder %v1109, 2
    %vm1111 = vcmp.eq.s32.totalorder %v1109, 0
    %v1112 = vxor.u32 %v1106, 2147483648
    %v1113 = vsel %vm1111, %v1105, %v1112
    %vm1114 = vcmp.eq.s32.totalorder %v1109, 2
    %v1115 = vxor.u32 %v1105, 2147483648
    %v1116 = vsel %vm1114, %v1115, %v1106
    %v1117 = vsel %vm1110, %v1113, %v1116
    %v1118 = vsel %vm1107, nan, %v1117
    %v1119 = vld [vmem:[%s3] sm:$0xff]
    %v1120 = vld [vmem:[%s3 + $0x8] sm:$0xff]
    %v1121 = vld [vmem:[%s3 + $0x10] sm:$0xff]
    %v1122 = vld [vmem:[%s3 + $0x18] sm:$0xff]
    %v1123 = vld [vmem:[%s4] sm:$0xff]
    %v1124 = vld [vmem:[%s4 + $0x8] sm:$0xff]
    %v1125 = vld [vmem:[%s4 + $0x10] sm:$0xff]
    %v1126 = vld [vmem:[%s4 + $0x18] sm:$0xff]
    %1128 = vset.pattern.permute.xlu0 0
    %1129 = vperm.xlu0 %1128, %v1123
    %v1130 = vpop.permute.xlu0 %1129
    %1133 = vset.pattern.permute.xlu0 0
    %1134 = vperm.xlu0 %1133, %v1124
    %v1135 = vpop.permute.xlu0 %1134
    %1138 = vset.pattern.permute.xlu0 0
    %1139 = vperm.xlu0 %1138, %v1125
    %v1140 = vpop.permute.xlu0 %1139
    %1143 = vset.pattern.permute.xlu0 0
    %1144 = vperm.xlu0 %1143, %v1126
    %v1145 = vpop.permute.xlu0 %1144
    %vm1147 = vcmask 261120
    %v1149 = vsel %vm1147, %v1119, 0
    %v1152 = vsel %vm1147, %v1120, 0
    %v1155 = vsel %vm1147, %v1121, 0
    %v1158 = vsel %vm1147, %v1122, 0
    %1160 = vmatprep.subr.mxu0 %v494
    %1161 = vmatpush1.msra.mxu0 %v390
    %1162 = vmatprep.subr.mxu0 %v702
    %1163 = vmatpush1.msra.mxu0 %v598
    %1164 = vmatprep.subr.mxu0 %v910
    %1165 = vmatpush1.msra.mxu0 %v806
    %1166 = vmatprep.subr.mxu0 %v1118
    %1167 = vmatpush1.msra.mxu0 %v1014
    %1168 = vmatprep.subr.mxu0 0.0
    %1169 = vmatpush1.msra.mxu0 0.0
    %1170 = vmatprep.subr.mxu0 0.0
    %1171 = vmatpush1.msra.mxu0 0.0
    %1172 = vmatprep.subr.mxu0 0.0
    %1173 = vmatpush1.msra.mxu0 0.0
    %1174 = vmatprep.subr.mxu0 0.0
    %1175 = vmatpush1.msra.mxu0 0.0
    %1176 = vmatprep.subr.mxu0 0.0
    %1177 = vmatpush1.msra.mxu0 0.0
    %1178 = vmatprep.subr.mxu0 0.0
    %1179 = vmatpush1.msra.mxu0 0.0
    %1180 = vmatprep.subr.mxu0 0.0
    %1181 = vmatpush1.msra.mxu0 0.0
    %1182 = vmatprep.subr.mxu0 0.0
    %1183 = vmatpush1.msra.mxu0 0.0
    %1184 = vmatprep.subr.mxu0 0.0
    %1185 = vmatpush1.msra.mxu0 0.0
    %1186 = vmatprep.subr.mxu0 0.0
    %1187 = vmatpush1.msra.mxu0 0.0
    %1188 = vmatprep.subr.mxu0 0.0
    %1189 = vmatpush1.msra.mxu0 0.0
    %1190 = vmatprep.subr.mxu0 0.0
    %1191 = vmatpush1.msra.mxu0 0.0
    %1192 = vmatprep.subr.mxu0 0.0
    %1193 = vmatpush1.msra.mxu0 0.0
    %1194 = vmatprep.subr.mxu0 0.0
    %1195 = vmatpush1.msra.mxu0 0.0
    %1196 = vmatprep.subr.mxu0 0.0
    %1197 = vmatpush1.msra.mxu0 0.0
    %1198 = vmatprep.subr.mxu0 0.0
    %1199 = vmatpush1.msra.mxu0 0.0
    %1200 = vmatprep.subr.mxu0 0.0
    %1201 = vmatpush1.msra.mxu0 0.0
    %1202 = vmatprep.subr.mxu0 0.0
    %1203 = vmatpush1.msra.mxu0 0.0
    %1204 = vmatprep.subr.mxu0 0.0
    %1205 = vmatpush1.msra.mxu0 0.0
    %1206 = vmatprep.subr.mxu0 0.0
    %1207 = vmatpush1.msra.mxu0 0.0
    %1208 = vmatprep.subr.mxu0 0.0
    %1209 = vmatpush1.msra.mxu0 0.0
    %1210 = vmatprep.subr.mxu0 0.0
    %1211 = vmatpush1.msra.mxu0 0.0
    %1212 = vmatprep.subr.mxu0 0.0
    %1213 = vmatpush1.msra.mxu0 0.0
    %1214 = vmatprep.subr.mxu0 0.0
    %1215 = vmatpush1.msra.mxu0 0.0
    %1216 = vmatprep.subr.mxu0 0.0
    %1217 = vmatpush1.msra.mxu0 0.0
    %1218 = vmatprep.subr.mxu0 0.0
    %1219 = vmatpush1.msra.mxu0 0.0
    %1220 = vmatprep.subr.mxu0 0.0
    %1221 = vmatpush1.msra.mxu0 0.0
    %1222 = vmatprep.subr.mxu0 0.0
    %1223 = vmatpush1.msra.mxu0 0.0
    %1224 = vmatprep.mubr.f32.mxu0 0.0
    %1225 = vmatmul.mubr.f32.gmra.mrb[0].mxu0 %v1149
    %v1226 = vpop.f32.mrb[0].mxu0
    %v1227 = vadd.f32 %v1130, %v1226
    %v1228 = vpop.f32.mrb[0].mxu0
    %v1229 = vadd.f32 %v1130, %v1228
    %1230 = vmatprep.mubr.f32.mxu0 0.0
    %1231 = vmatmul.mubr.f32.gmra.mrb[0].mxu0 %v1152
    %v1232 = vpop.f32.mrb[0].mxu0
    %v1233 = vadd.f32 %v1135, %v1232
    %v1234 = vpop.f32.mrb[0].mxu0
    %v1235 = vadd.f32 %v1135, %v1234
    %1236 = vmatprep.mubr.f32.mxu0 0.0
    %1237 = vmatmul.mubr.f32.gmra.mrb[0].mxu0 %v1155
    %v1238 = vpop.f32.mrb[0].mxu0
    %v1239 = vadd.f32 %v1140, %v1238
    %v1240 = vpop.f32.mrb[0].mxu0
    %v1241 = vadd.f32 %v1140, %v1240
    %1242 = vmatprep.mubr.f32.mxu0 0.0
    %1243 = vmatmul.mubr.f32.gmra.mrb[0].mxu0 %v1158
    %v1244 = vpop.f32.mrb[0].mxu0
    %v1245 = vadd.f32 %v1145, %v1244
    %v1246 = vpop.f32.mrb[0].mxu0
    %v1247 = vadd.f32 %v1145, %v1246
    %1248 = vdwg.mxu0
    %v1249 = vand.u32 2147483647, %v1227
    %vm1250 = vcmp.le.f32.partialorder %v1249, 0.7853982
    %vm1251 = vcmp.lt.s32.totalorder %v1227, 0
    %v1252 = vand.u32 %v1227, 2139095040
    %v1253 = vshrl.u32 %v1252, 23
    %v1254 = vsub.s32 %v1253, 127
    %v1255 = vand.u32 2147483647, %v1227
    %v1256 = vand.u32 %v1255, 8388607
    %v1257 = vor.u32 %v1256, 8388608
    %v1258 = vsub.s32 0, %v1257
    %v1259 = vadd.s32 %v1254, 1
    %vm1260 = vcmp.gt.s32.totalorder %v1259, 0
    %v1261 = vsel %vm1260, %v1259, 0
    %v1262 = vshrl.u32 %v1261, 5
    %v1263 = vand.u32 %v1261, 31
    %v1264 = vsub.s32 32, %v1263
    %v1265 = vshrl.u32 683565275, %v1264
    %v1266 = vshll.u32 683565275, %v1263
    %v1267 = vshrl.u32 2475754826, %v1264
    %v1268 = vor.u32 %v1266, %v1267
    %v1269 = vshll.u32 2475754826, %v1263
    %v1270 = vshrl.u32 2131351028, %v1264
    %v1271 = vor.u32 %v1269, %v1270
    %v1272 = vshll.u32 2131351028, %v1263
    %v1273 = vshrl.u32 2102212464, %v1264
    %v1274 = vor.u32 %v1272, %v1273
    %v1275 = vshll.u32 2102212464, %v1263
    %v1276 = vshrl.u32 920167782, %v1264
    %v1277 = vor.u32 %v1275, %v1276
    %v1278 = vshll.u32 920167782, %v1263
    %v1279 = vshrl.u32 1326507024, %v1264
    %v1280 = vor.u32 %v1278, %v1279
    %vm1281 = vcmp.lt.s32.totalorder %v1262, 1
    %vm1282 = vcmp.lt.s32.totalorder %v1262, 2
    %vm1283 = vcmp.lt.s32.totalorder %v1262, 3
    %vm1284 = vcmp.lt.s32.totalorder %v1262, 4
    %v1285 = vsel %vm1281, %v1265, %v1268
    %v1286 = vsel %vm1284, %v1274, 2102212464
    %v1287 = vsel %vm1283, %v1271, %v1286
    %v1288 = vsel %vm1282, %v1285, %v1287
    %v1289 = vsel %vm1281, %v1268, %v1271
    %v1290 = vsel %vm1284, %v1277, 920167782
    %v1291 = vsel %vm1283, %v1274, %v1290
    %v1292 = vsel %vm1282, %v1289, %v1291
    %v1293 = vsel %vm1281, %v1271, %v1274
    %v1294 = vsel %vm1284, %v1280, 1326507024
    %v1295 = vsel %vm1283, %v1277, %v1294
    %v1296 = vsel %vm1282, %v1293, %v1295
    %v1297 = vshll.u32 %v1257, 8
    %v1298 = vmul.u32.u64.compose %v1297, %v1296
    %v1299 = vextract.low.u32 %v1298
    %v1300 = vextract.high.u32 %v1298
    %v1301 = vmul.u32.u64.compose %v1297, %v1292
    %v1302 = vextract.low.u32 %v1301
    %v1303 = vextract.high.u32 %v1301
    %v1304 = vmul.u32 %v1297, %v1288
    %v1305 = vadd.s32 %v1300, %v1302
    %vm1306 = vc.u32 %v1300, %v1302
    %v1307 = vadd.s32 %v1303, 1
    %v1308 = vsel %vm1306, %v1307, %v1303
    %v1309 = vadd.s32 %v1304, %v1308
    %v1310 = vadd.s32 %v1309, 536870912
    %v1311 = vshrl.u32 %v1310, 30
    %v1312 = vshll.u32 %v1311, 30
    %v1313 = vsub.s32 %v1309, %v1312
    %vm1314 = vcmp.lt.s32.totalorder %v1313, 0
    %v1315 = vsub.s32 0, %v1313
    %v1316 = vsel %vm1314, %v1315, %v1313
    %v1317 = vclz %v1316
    %v1318 = vsub.s32 %v1317, 2
    %vm1319 = vcmp.gt.s32.totalorder 0, %v1318
    %v1320 = vsel %vm1319, 0, %v1318
    %v1321 = vsub.s32 32, %v1320
    %v1322 = vshll.u32 %v1313, %v1320
    %v1323 = vshrl.u32 %v1305, %v1321
    %v1324 = vor.u32 %v1322, %v1323
    %v1325 = vsub.s32 4294967266, %v1320
    %v1326 = vadd.s32 %v1325, 127
    %v1327 = vshll.u32 %v1326, 23
    %v1328 = vor.u32 4788187, %v1327
    %v1329 = vand.u32 2147483647, %v1328
    %v1331 = vcvt.s32.f32 %v1324
    %v1332 = vmul.f32 %v1331, %v1329
    %v1333 = vxor.u32 %v1332, 2147483648
    %v1334 = vsel %vm1251, %v1333, %v1332
    %v1335 = vsub.s32 4, %v1311
    %v1336 = vsel %vm1251, %v1335, %v1311
    %v1337 = vsel %vm1250, %v1227, %v1334
    %v1338 = vsel %vm1250, 0, %v1336
    %v1339 = vcosq.f32.pop %v1337
    %v1340 = vsinq.f32.pop %v1337
    %vm1341 = vweird.f32 %v1227
    %v1342 = vadd.s32 %v1338, 3
    %v1343 = vand.u32 %v1342, 3
    %vm1344 = vcmp.lt.s32.totalorder %v1343, 2
    %vm1345 = vcmp.eq.s32.totalorder %v1343, 0
    %v1346 = vxor.u32 %v1340, 2147483648
    %v1347 = vsel %vm1345, %v1339, %v1346
    %vm1348 = vcmp.eq.s32.totalorder %v1343, 2
    %v1349 = vxor.u32 %v1339, 2147483648
    %v1350 = vsel %vm1348, %v1349, %v1340
    %v1351 = vsel %vm1344, %v1347, %v1350
    %v1352 = vsel %vm1341, nan, %v1351
    %v1353 = vand.u32 2147483647, %v1229
    %vm1354 = vcmp.le.f32.partialorder %v1353, 0.7853982
    %vm1355 = vcmp.lt.s32.totalorder %v1229, 0
    %v1356 = vand.u32 %v1229, 2139095040
    %v1357 = vshrl.u32 %v1356, 23
    %v1358 = vsub.s32 %v1357, 127
    %v1359 = vand.u32 2147483647, %v1229
    %v1360 = vand.u32 %v1359, 8388607
    %v1361 = vor.u32 %v1360, 8388608
    %v1362 = vsub.s32 0, %v1361
    %v1363 = vadd.s32 %v1358, 1
    %vm1364 = vcmp.gt.s32.totalorder %v1363, 0
    %v1365 = vsel %vm1364, %v1363, 0
    %v1366 = vshrl.u32 %v1365, 5
    %v1367 = vand.u32 %v1365, 31
    %v1368 = vsub.s32 32, %v1367
    %v1369 = vshrl.u32 683565275, %v1368
    %v1370 = vshll.u32 683565275, %v1367
    %v1371 = vshrl.u32 2475754826, %v1368
    %v1372 = vor.u32 %v1370, %v1371
    %v1373 = vshll.u32 2475754826, %v1367
    %v1374 = vshrl.u32 2131351028, %v1368
    %v1375 = vor.u32 %v1373, %v1374
    %v1376 = vshll.u32 2131351028, %v1367
    %v1377 = vshrl.u32 2102212464, %v1368
    %v1378 = vor.u32 %v1376, %v1377
    %v1379 = vshll.u32 2102212464, %v1367
    %v1380 = vshrl.u32 920167782, %v1368
    %v1381 = vor.u32 %v1379, %v1380
    %v1382 = vshll.u32 920167782, %v1367
    %v1383 = vshrl.u32 1326507024, %v1368
    %v1384 = vor.u32 %v1382, %v1383
    %vm1385 = vcmp.lt.s32.totalorder %v1366, 1
    %vm1386 = vcmp.lt.s32.totalorder %v1366, 2
    %vm1387 = vcmp.lt.s32.totalorder %v1366, 3
    %vm1388 = vcmp.lt.s32.totalorder %v1366, 4
    %v1389 = vsel %vm1385, %v1369, %v1372
    %v1390 = vsel %vm1388, %v1378, 2102212464
    %v1391 = vsel %vm1387, %v1375, %v1390
    %v1392 = vsel %vm1386, %v1389, %v1391
    %v1393 = vsel %vm1385, %v1372, %v1375
    %v1394 = vsel %vm1388, %v1381, 920167782
    %v1395 = vsel %vm1387, %v1378, %v1394
    %v1396 = vsel %vm1386, %v1393, %v1395
    %v1397 = vsel %vm1385, %v1375, %v1378
    %v1398 = vsel %vm1388, %v1384, 1326507024
    %v1399 = vsel %vm1387, %v1381, %v1398
    %v1400 = vsel %vm1386, %v1397, %v1399
    %v1401 = vshll.u32 %v1361, 8
    %v1402 = vmul.u32.u64.compose %v1401, %v1400
    %v1403 = vextract.low.u32 %v1402
    %v1404 = vextract.high.u32 %v1402
    %v1405 = vmul.u32.u64.compose %v1401, %v1396
    %v1406 = vextract.low.u32 %v1405
    %v1407 = vextract.high.u32 %v1405
    %v1408 = vmul.u32 %v1401, %v1392
    %v1409 = vadd.s32 %v1404, %v1406
    %vm1410 = vc.u32 %v1404, %v1406
    %v1411 = vadd.s32 %v1407, 1
    %v1412 = vsel %vm1410, %v1411, %v1407
    %v1413 = vadd.s32 %v1408, %v1412
    %v1414 = vadd.s32 %v1413, 536870912
    %v1415 = vshrl.u32 %v1414, 30
    %v1416 = vshll.u32 %v1415, 30
    %v1417 = vsub.s32 %v1413, %v1416
    %vm1418 = vcmp.lt.s32.totalorder %v1417, 0
    %v1419 = vsub.s32 0, %v1417
    %v1420 = vsel %vm1418, %v1419, %v1417
    %v1421 = vclz %v1420
    %v1422 = vsub.s32 %v1421, 2
    %vm1423 = vcmp.gt.s32.totalorder 0, %v1422
    %v1424 = vsel %vm1423, 0, %v1422
    %v1425 = vsub.s32 32, %v1424
    %v1426 = vshll.u32 %v1417, %v1424
    %v1427 = vshrl.u32 %v1409, %v1425
    %v1428 = vor.u32 %v1426, %v1427
    %v1429 = vsub.s32 4294967266, %v1424
    %v1430 = vadd.s32 %v1429, 127
    %v1431 = vshll.u32 %v1430, 23
    %v1432 = vor.u32 4788187, %v1431
    %v1433 = vand.u32 2147483647, %v1432
    %v1435 = vcvt.s32.f32 %v1428
    %v1436 = vmul.f32 %v1435, %v1433
    %v1437 = vxor.u32 %v1436, 2147483648
    %v1438 = vsel %vm1355, %v1437, %v1436
    %v1439 = vsub.s32 4, %v1415
    %v1440 = vsel %vm1355, %v1439, %v1415
    %v1441 = vsel %vm1354, %v1229, %v1438
    %v1442 = vsel %vm1354, 0, %v1440
    %v1443 = vcosq.f32.pop %v1441
    %v1444 = vsinq.f32.pop %v1441
    %vm1445 = vweird.f32 %v1229
    %v1446 = vadd.s32 %v1442, 3
    %v1447 = vand.u32 %v1446, 3
    %vm1448 = vcmp.lt.s32.totalorder %v1447, 2
    %vm1449 = vcmp.eq.s32.totalorder %v1447, 0
    %v1450 = vxor.u32 %v1444, 2147483648
    %v1451 = vsel %vm1449, %v1443, %v1450
    %vm1452 = vcmp.eq.s32.totalorder %v1447, 2
    %v1453 = vxor.u32 %v1443, 2147483648
    %v1454 = vsel %vm1452, %v1453, %v1444
    %v1455 = vsel %vm1448, %v1451, %v1454
    %v1456 = vsel %vm1445, nan, %v1455
    %v1457 = vand.u32 2147483647, %v1233
    %vm1458 = vcmp.le.f32.partialorder %v1457, 0.7853982
    %vm1459 = vcmp.lt.s32.totalorder %v1233, 0
    %v1460 = vand.u32 %v1233, 2139095040
    %v1461 = vshrl.u32 %v1460, 23
    %v1462 = vsub.s32 %v1461, 127
    %v1463 = vand.u32 2147483647, %v1233
    %v1464 = vand.u32 %v1463, 8388607
    %v1465 = vor.u32 %v1464, 8388608
    %v1466 = vsub.s32 0, %v1465
    %v1467 = vadd.s32 %v1462, 1
    %vm1468 = vcmp.gt.s32.totalorder %v1467, 0
    %v1469 = vsel %vm1468, %v1467, 0
    %v1470 = vshrl.u32 %v1469, 5
    %v1471 = vand.u32 %v1469, 31
    %v1472 = vsub.s32 32, %v1471
    %v1473 = vshrl.u32 683565275, %v1472
    %v1474 = vshll.u32 683565275, %v1471
    %v1475 = vshrl.u32 2475754826, %v1472
    %v1476 = vor.u32 %v1474, %v1475
    %v1477 = vshll.u32 2475754826, %v1471
    %v1478 = vshrl.u32 2131351028, %v1472
    %v1479 = vor.u32 %v1477, %v1478
    %v1480 = vshll.u32 2131351028, %v1471
    %v1481 = vshrl.u32 2102212464, %v1472
    %v1482 = vor.u32 %v1480, %v1481
    %v1483 = vshll.u32 2102212464, %v1471
    %v1484 = vshrl.u32 920167782, %v1472
    %v1485 = vor.u32 %v1483, %v1484
    %v1486 = vshll.u32 920167782, %v1471
    %v1487 = vshrl.u32 1326507024, %v1472
    %v1488 = vor.u32 %v1486, %v1487
    %vm1489 = vcmp.lt.s32.totalorder %v1470, 1
    %vm1490 = vcmp.lt.s32.totalorder %v1470, 2
    %vm1491 = vcmp.lt.s32.totalorder %v1470, 3
    %vm1492 = vcmp.lt.s32.totalorder %v1470, 4
    %v1493 = vsel %vm1489, %v1473, %v1476
    %v1494 = vsel %vm1492, %v1482, 2102212464
    %v1495 = vsel %vm1491, %v1479, %v1494
    %v1496 = vsel %vm1490, %v1493, %v1495
    %v1497 = vsel %vm1489, %v1476, %v1479
    %v1498 = vsel %vm1492, %v1485, 920167782
    %v1499 = vsel %vm1491, %v1482, %v1498
    %v1500 = vsel %vm1490, %v1497, %v1499
    %v1501 = vsel %vm1489, %v1479, %v1482
    %v1502 = vsel %vm1492, %v1488, 1326507024
    %v1503 = vsel %vm1491, %v1485, %v1502
    %v1504 = vsel %vm1490, %v1501, %v1503
    %v1505 = vshll.u32 %v1465, 8
    %v1506 = vmul.u32.u64.compose %v1505, %v1504
    %v1507 = vextract.low.u32 %v1506
    %v1508 = vextract.high.u32 %v1506
    %v1509 = vmul.u32.u64.compose %v1505, %v1500
    %v1510 = vextract.low.u32 %v1509
    %v1511 = vextract.high.u32 %v1509
    %v1512 = vmul.u32 %v1505, %v1496
    %v1513 = vadd.s32 %v1508, %v1510
    %vm1514 = vc.u32 %v1508, %v1510
    %v1515 = vadd.s32 %v1511, 1
    %v1516 = vsel %vm1514, %v1515, %v1511
    %v1517 = vadd.s32 %v1512, %v1516
    %v1518 = vadd.s32 %v1517, 536870912
    %v1519 = vshrl.u32 %v1518, 30
    %v1520 = vshll.u32 %v1519, 30
    %v1521 = vsub.s32 %v1517, %v1520
    %vm1522 = vcmp.lt.s32.totalorder %v1521, 0
    %v1523 = vsub.s32 0, %v1521
    %v1524 = vsel %vm1522, %v1523, %v1521
    %v1525 = vclz %v1524
    %v1526 = vsub.s32 %v1525, 2
    %vm1527 = vcmp.gt.s32.totalorder 0, %v1526
    %v1528 = vsel %vm1527, 0, %v1526
    %v1529 = vsub.s32 32, %v1528
    %v1530 = vshll.u32 %v1521, %v1528
    %v1531 = vshrl.u32 %v1513, %v1529
    %v1532 = vor.u32 %v1530, %v1531
    %v1533 = vsub.s32 4294967266, %v1528
    %v1534 = vadd.s32 %v1533, 127
    %v1535 = vshll.u32 %v1534, 23
    %v1536 = vor.u32 4788187, %v1535
    %v1537 = vand.u32 2147483647, %v1536
    %v1539 = vcvt.s32.f32 %v1532
    %v1540 = vmul.f32 %v1539, %v1537
    %v1541 = vxor.u32 %v1540, 2147483648
    %v1542 = vsel %vm1459, %v1541, %v1540
    %v1543 = vsub.s32 4, %v1519
    %v1544 = vsel %vm1459, %v1543, %v1519
    %v1545 = vsel %vm1458, %v1233, %v1542
    %v1546 = vsel %vm1458, 0, %v1544
    %v1547 = vcosq.f32.pop %v1545
    %v1548 = vsinq.f32.pop %v1545
    %vm1549 = vweird.f32 %v1233
    %v1550 = vadd.s32 %v1546, 3
    %v1551 = vand.u32 %v1550, 3
    %vm1552 = vcmp.lt.s32.totalorder %v1551, 2
    %vm1553 = vcmp.eq.s32.totalorder %v1551, 0
    %v1554 = vxor.u32 %v1548, 2147483648
    %v1555 = vsel %vm1553, %v1547, %v1554
    %vm1556 = vcmp.eq.s32.totalorder %v1551, 2
    %v1557 = vxor.u32 %v1547, 2147483648
    %v1558 = vsel %vm1556, %v1557, %v1548
    %v1559 = vsel %vm1552, %v1555, %v1558
    %v1560 = vsel %vm1549, nan, %v1559
    %v1561 = vand.u32 2147483647, %v1235
    %vm1562 = vcmp.le.f32.partialorder %v1561, 0.7853982
    %vm1563 = vcmp.lt.s32.totalorder %v1235, 0
    %v1564 = vand.u32 %v1235, 2139095040
    %v1565 = vshrl.u32 %v1564, 23
    %v1566 = vsub.s32 %v1565, 127
    %v1567 = vand.u32 2147483647, %v1235
    %v1568 = vand.u32 %v1567, 8388607
    %v1569 = vor.u32 %v1568, 8388608
    %v1570 = vsub.s32 0, %v1569
    %v1571 = vadd.s32 %v1566, 1
    %vm1572 = vcmp.gt.s32.totalorder %v1571, 0
    %v1573 = vsel %vm1572, %v1571, 0
    %v1574 = vshrl.u32 %v1573, 5
    %v1575 = vand.u32 %v1573, 31
    %v1576 = vsub.s32 32, %v1575
    %v1577 = vshrl.u32 683565275, %v1576
    %v1578 = vshll.u32 683565275, %v1575
    %v1579 = vshrl.u32 2475754826, %v1576
    %v1580 = vor.u32 %v1578, %v1579
    %v1581 = vshll.u32 2475754826, %v1575
    %v1582 = vshrl.u32 2131351028, %v1576
    %v1583 = vor.u32 %v1581, %v1582
    %v1584 = vshll.u32 2131351028, %v1575
    %v1585 = vshrl.u32 2102212464, %v1576
    %v1586 = vor.u32 %v1584, %v1585
    %v1587 = vshll.u32 2102212464, %v1575
    %v1588 = vshrl.u32 920167782, %v1576
    %v1589 = vor.u32 %v1587, %v1588
    %v1590 = vshll.u32 920167782, %v1575
    %v1591 = vshrl.u32 1326507024, %v1576
    %v1592 = vor.u32 %v1590, %v1591
    %vm1593 = vcmp.lt.s32.totalorder %v1574, 1
    %vm1594 = vcmp.lt.s32.totalorder %v1574, 2
    %vm1595 = vcmp.lt.s32.totalorder %v1574, 3
    %vm1596 = vcmp.lt.s32.totalorder %v1574, 4
    %v1597 = vsel %vm1593, %v1577, %v1580
    %v1598 = vsel %vm1596, %v1586, 2102212464
    %v1599 = vsel %vm1595, %v1583, %v1598
    %v1600 = vsel %vm1594, %v1597, %v1599
    %v1601 = vsel %vm1593, %v1580, %v1583
    %v1602 = vsel %vm1596, %v1589, 920167782
    %v1603 = vsel %vm1595, %v1586, %v1602
    %v1604 = vsel %vm1594, %v1601, %v1603
    %v1605 = vsel %vm1593, %v1583, %v1586
    %v1606 = vsel %vm1596, %v1592, 1326507024
    %v1607 = vsel %vm1595, %v1589, %v1606
    %v1608 = vsel %vm1594, %v1605, %v1607
    %v1609 = vshll.u32 %v1569, 8
    %v1610 = vmul.u32.u64.compose %v1609, %v1608
    %v1611 = vextract.low.u32 %v1610
    %v1612 = vextract.high.u32 %v1610
    %v1613 = vmul.u32.u64.compose %v1609, %v1604
    %v1614 = vextract.low.u32 %v1613
    %v1615 = vextract.high.u32 %v1613
    %v1616 = vmul.u32 %v1609, %v1600
    %v1617 = vadd.s32 %v1612, %v1614
    %vm1618 = vc.u32 %v1612, %v1614
    %v1619 = vadd.s32 %v1615, 1
    %v1620 = vsel %vm1618, %v1619, %v1615
    %v1621 = vadd.s32 %v1616, %v1620
    %v1622 = vadd.s32 %v1621, 536870912
    %v1623 = vshrl.u32 %v1622, 30
    %v1624 = vshll.u32 %v1623, 30
    %v1625 = vsub.s32 %v1621, %v1624
    %vm1626 = vcmp.lt.s32.totalorder %v1625, 0
    %v1627 = vsub.s32 0, %v1625
    %v1628 = vsel %vm1626, %v1627, %v1625
    %v1629 = vclz %v1628
    %v1630 = vsub.s32 %v1629, 2
    %vm1631 = vcmp.gt.s32.totalorder 0, %v1630
    %v1632 = vsel %vm1631, 0, %v1630
    %v1633 = vsub.s32 32, %v1632
    %v1634 = vshll.u32 %v1625, %v1632
    %v1635 = vshrl.u32 %v1617, %v1633
    %v1636 = vor.u32 %v1634, %v1635
    %v1637 = vsub.s32 4294967266, %v1632
    %v1638 = vadd.s32 %v1637, 127
    %v1639 = vshll.u32 %v1638, 23
    %v1640 = vor.u32 4788187, %v1639
    %v1641 = vand.u32 2147483647, %v1640
    %v1643 = vcvt.s32.f32 %v1636
    %v1644 = vmul.f32 %v1643, %v1641
    %v1645 = vxor.u32 %v1644, 2147483648
    %v1646 = vsel %vm1563, %v1645, %v1644
    %v1647 = vsub.s32 4, %v1623
    %v1648 = vsel %vm1563, %v1647, %v1623
    %v1649 = vsel %vm1562, %v1235, %v1646
    %v1650 = vsel %vm1562, 0, %v1648
    %v1651 = vcosq.f32.pop %v1649
    %v1652 = vsinq.f32.pop %v1649
    %vm1653 = vweird.f32 %v1235
    %v1654 = vadd.s32 %v1650, 3
    %v1655 = vand.u32 %v1654, 3
    %vm1656 = vcmp.lt.s32.totalorder %v1655, 2
    %vm1657 = vcmp.eq.s32.totalorder %v1655, 0
    %v1658 = vxor.u32 %v1652, 2147483648
    %v1659 = vsel %vm1657, %v1651, %v1658
    %vm1660 = vcmp.eq.s32.totalorder %v1655, 2
    %v1661 = vxor.u32 %v1651, 2147483648
    %v1662 = vsel %vm1660, %v1661, %v1652
    %v1663 = vsel %vm1656, %v1659, %v1662
    %v1664 = vsel %vm1653, nan, %v1663
    %v1665 = vand.u32 2147483647, %v1239
    %vm1666 = vcmp.le.f32.partialorder %v1665, 0.7853982
    %vm1667 = vcmp.lt.s32.totalorder %v1239, 0
    %v1668 = vand.u32 %v1239, 2139095040
    %v1669 = vshrl.u32 %v1668, 23
    %v1670 = vsub.s32 %v1669, 127
    %v1671 = vand.u32 2147483647, %v1239
    %v1672 = vand.u32 %v1671, 8388607
    %v1673 = vor.u32 %v1672, 8388608
    %v1674 = vsub.s32 0, %v1673
    %v1675 = vadd.s32 %v1670, 1
    %vm1676 = vcmp.gt.s32.totalorder %v1675, 0
    %v1677 = vsel %vm1676, %v1675, 0
    %v1678 = vshrl.u32 %v1677, 5
    %v1679 = vand.u32 %v1677, 31
    %v1680 = vsub.s32 32, %v1679
    %v1681 = vshrl.u32 683565275, %v1680
    %v1682 = vshll.u32 683565275, %v1679
    %v1683 = vshrl.u32 2475754826, %v1680
    %v1684 = vor.u32 %v1682, %v1683
    %v1685 = vshll.u32 2475754826, %v1679
    %v1686 = vshrl.u32 2131351028, %v1680
    %v1687 = vor.u32 %v1685, %v1686
    %v1688 = vshll.u32 2131351028, %v1679
    %v1689 = vshrl.u32 2102212464, %v1680
    %v1690 = vor.u32 %v1688, %v1689
    %v1691 = vshll.u32 2102212464, %v1679
    %v1692 = vshrl.u32 920167782, %v1680
    %v1693 = vor.u32 %v1691, %v1692
    %v1694 = vshll.u32 920167782, %v1679
    %v1695 = vshrl.u32 1326507024, %v1680
    %v1696 = vor.u32 %v1694, %v1695
    %vm1697 = vcmp.lt.s32.totalorder %v1678, 1
    %vm1698 = vcmp.lt.s32.totalorder %v1678, 2
    %vm1699 = vcmp.lt.s32.totalorder %v1678, 3
    %vm1700 = vcmp.lt.s32.totalorder %v1678, 4
    %v1701 = vsel %vm1697, %v1681, %v1684
    %v1702 = vsel %vm1700, %v1690, 2102212464
    %v1703 = vsel %vm1699, %v1687, %v1702
    %v1704 = vsel %vm1698, %v1701, %v1703
    %v1705 = vsel %vm1697, %v1684, %v1687
    %v1706 = vsel %vm1700, %v1693, 920167782
    %v1707 = vsel %vm1699, %v1690, %v1706
    %v1708 = vsel %vm1698, %v1705, %v1707
    %v1709 = vsel %vm1697, %v1687, %v1690
    %v1710 = vsel %vm1700, %v1696, 1326507024
    %v1711 = vsel %vm1699, %v1693, %v1710
    %v1712 = vsel %vm1698, %v1709, %v1711
    %v1713 = vshll.u32 %v1673, 8
    %v1714 = vmul.u32.u64.compose %v1713, %v1712
    %v1715 = vextract.low.u32 %v1714
    %v1716 = vextract.high.u32 %v1714
    %v1717 = vmul.u32.u64.compose %v1713, %v1708
    %v1718 = vextract.low.u32 %v1717
    %v1719 = vextract.high.u32 %v1717
    %v1720 = vmul.u32 %v1713, %v1704
    %v1721 = vadd.s32 %v1716, %v1718
    %vm1722 = vc.u32 %v1716, %v1718
    %v1723 = vadd.s32 %v1719, 1
    %v1724 = vsel %vm1722, %v1723, %v1719
    %v1725 = vadd.s32 %v1720, %v1724
    %v1726 = vadd.s32 %v1725, 536870912
    %v1727 = vshrl.u32 %v1726, 30
    %v1728 = vshll.u32 %v1727, 30
    %v1729 = vsub.s32 %v1725, %v1728
    %vm1730 = vcmp.lt.s32.totalorder %v1729, 0
    %v1731 = vsub.s32 0, %v1729
    %v1732 = vsel %vm1730, %v1731, %v1729
    %v1733 = vclz %v1732
    %v1734 = vsub.s32 %v1733, 2
    %vm1735 = vcmp.gt.s32.totalorder 0, %v1734
    %v1736 = vsel %vm1735, 0, %v1734
    %v1737 = vsub.s32 32, %v1736
    %v1738 = vshll.u32 %v1729, %v1736
    %v1739 = vshrl.u32 %v1721, %v1737
    %v1740 = vor.u32 %v1738, %v1739
    %v1741 = vsub.s32 4294967266, %v1736
    %v1742 = vadd.s32 %v1741, 127
    %v1743 = vshll.u32 %v1742, 23
    %v1744 = vor.u32 4788187, %v1743
    %v1745 = vand.u32 2147483647, %v1744
    %v1747 = vcvt.s32.f32 %v1740
    %v1748 = vmul.f32 %v1747, %v1745
    %v1749 = vxor.u32 %v1748, 2147483648
    %v1750 = vsel %vm1667, %v1749, %v1748
    %v1751 = vsub.s32 4, %v1727
    %v1752 = vsel %vm1667, %v1751, %v1727
    %v1753 = vsel %vm1666, %v1239, %v1750
    %v1754 = vsel %vm1666, 0, %v1752
    %v1755 = vcosq.f32.pop %v1753
    %v1756 = vsinq.f32.pop %v1753
    %vm1757 = vweird.f32 %v1239
    %v1758 = vadd.s32 %v1754, 3
    %v1759 = vand.u32 %v1758, 3
    %vm1760 = vcmp.lt.s32.totalorder %v1759, 2
    %vm1761 = vcmp.eq.s32.totalorder %v1759, 0
    %v1762 = vxor.u32 %v1756, 2147483648
    %v1763 = vsel %vm1761, %v1755, %v1762
    %vm1764 = vcmp.eq.s32.totalorder %v1759, 2
    %v1765 = vxor.u32 %v1755, 2147483648
    %v1766 = vsel %vm1764, %v1765, %v1756
    %v1767 = vsel %vm1760, %v1763, %v1766
    %v1768 = vsel %vm1757, nan, %v1767
    %v1769 = vand.u32 2147483647, %v1241
    %vm1770 = vcmp.le.f32.partialorder %v1769, 0.7853982
    %vm1771 = vcmp.lt.s32.totalorder %v1241, 0
    %v1772 = vand.u32 %v1241, 2139095040
    %v1773 = vshrl.u32 %v1772, 23
    %v1774 = vsub.s32 %v1773, 127
    %v1775 = vand.u32 2147483647, %v1241
    %v1776 = vand.u32 %v1775, 8388607
    %v1777 = vor.u32 %v1776, 8388608
    %v1778 = vsub.s32 0, %v1777
    %v1779 = vadd.s32 %v1774, 1
    %vm1780 = vcmp.gt.s32.totalorder %v1779, 0
    %v1781 = vsel %vm1780, %v1779, 0
    %v1782 = vshrl.u32 %v1781, 5
    %v1783 = vand.u32 %v1781, 31
    %v1784 = vsub.s32 32, %v1783
    %v1785 = vshrl.u32 683565275, %v1784
    %v1786 = vshll.u32 683565275, %v1783
    %v1787 = vshrl.u32 2475754826, %v1784
    %v1788 = vor.u32 %v1786, %v1787
    %v1789 = vshll.u32 2475754826, %v1783
    %v1790 = vshrl.u32 2131351028, %v1784
    %v1791 = vor.u32 %v1789, %v1790
    %v1792 = vshll.u32 2131351028, %v1783
    %v1793 = vshrl.u32 2102212464, %v1784
    %v1794 = vor.u32 %v1792, %v1793
    %v1795 = vshll.u32 2102212464, %v1783
    %v1796 = vshrl.u32 920167782, %v1784
    %v1797 = vor.u32 %v1795, %v1796
    %v1798 = vshll.u32 920167782, %v1783
    %v1799 = vshrl.u32 1326507024, %v1784
    %v1800 = vor.u32 %v1798, %v1799
    %vm1801 = vcmp.lt.s32.totalorder %v1782, 1
    %vm1802 = vcmp.lt.s32.totalorder %v1782, 2
    %vm1803 = vcmp.lt.s32.totalorder %v1782, 3
    %vm1804 = vcmp.lt.s32.totalorder %v1782, 4
    %v1805 = vsel %vm1801, %v1785, %v1788
    %v1806 = vsel %vm1804, %v1794, 2102212464
    %v1807 = vsel %vm1803, %v1791, %v1806
    %v1808 = vsel %vm1802, %v1805, %v1807
    %v1809 = vsel %vm1801, %v1788, %v1791
    %v1810 = vsel %vm1804, %v1797, 920167782
    %v1811 = vsel %vm1803, %v1794, %v1810
    %v1812 = vsel %vm1802, %v1809, %v1811
    %v1813 = vsel %vm1801, %v1791, %v1794
    %v1814 = vsel %vm1804, %v1800, 1326507024
    %v1815 = vsel %vm1803, %v1797, %v1814
    %v1816 = vsel %vm1802, %v1813, %v1815
    %v1817 = vshll.u32 %v1777, 8
    %v1818 = vmul.u32.u64.compose %v1817, %v1816
    %v1819 = vextract.low.u32 %v1818
    %v1820 = vextract.high.u32 %v1818
    %v1821 = vmul.u32.u64.compose %v1817, %v1812
    %v1822 = vextract.low.u32 %v1821
    %v1823 = vextract.high.u32 %v1821
    %v1824 = vmul.u32 %v1817, %v1808
    %v1825 = vadd.s32 %v1820, %v1822
    %vm1826 = vc.u32 %v1820, %v1822
    %v1827 = vadd.s32 %v1823, 1
    %v1828 = vsel %vm1826, %v1827, %v1823
    %v1829 = vadd.s32 %v1824, %v1828
    %v1830 = vadd.s32 %v1829, 536870912
    %v1831 = vshrl.u32 %v1830, 30
    %v1832 = vshll.u32 %v1831, 30
    %v1833 = vsub.s32 %v1829, %v1832
    %vm1834 = vcmp.lt.s32.totalorder %v1833, 0
    %v1835 = vsub.s32 0, %v1833
    %v1836 = vsel %vm1834, %v1835, %v1833
    %v1837 = vclz %v1836
    %v1838 = vsub.s32 %v1837, 2
    %vm1839 = vcmp.gt.s32.totalorder 0, %v1838
    %v1840 = vsel %vm1839, 0, %v1838
    %v1841 = vsub.s32 32, %v1840
    %v1842 = vshll.u32 %v1833, %v1840
    %v1843 = vshrl.u32 %v1825, %v1841
    %v1844 = vor.u32 %v1842, %v1843
    %v1845 = vsub.s32 4294967266, %v1840
    %v1846 = vadd.s32 %v1845, 127
    %v1847 = vshll.u32 %v1846, 23
    %v1848 = vor.u32 4788187, %v1847
    %v1849 = vand.u32 2147483647, %v1848
    %v1851 = vcvt.s32.f32 %v1844
    %v1852 = vmul.f32 %v1851, %v1849
    %v1853 = vxor.u32 %v1852, 2147483648
    %v1854 = vsel %vm1771, %v1853, %v1852
    %v1855 = vsub.s32 4, %v1831
    %v1856 = vsel %vm1771, %v1855, %v1831
    %v1857 = vsel %vm1770, %v1241, %v1854
    %v1858 = vsel %vm1770, 0, %v1856
    %v1859 = vcosq.f32.pop %v1857
    %v1860 = vsinq.f32.pop %v1857
    %vm1861 = vweird.f32 %v1241
    %v1862 = vadd.s32 %v1858, 3
    %v1863 = vand.u32 %v1862, 3
    %vm1864 = vcmp.lt.s32.totalorder %v1863, 2
    %vm1865 = vcmp.eq.s32.totalorder %v1863, 0
    %v1866 = vxor.u32 %v1860, 2147483648
    %v1867 = vsel %vm1865, %v1859, %v1866
    %vm1868 = vcmp.eq.s32.totalorder %v1863, 2
    %v1869 = vxor.u32 %v1859, 2147483648
    %v1870 = vsel %vm1868, %v1869, %v1860
    %v1871 = vsel %vm1864, %v1867, %v1870
    %v1872 = vsel %vm1861, nan, %v1871
    %v1873 = vand.u32 2147483647, %v1245
    %vm1874 = vcmp.le.f32.partialorder %v1873, 0.7853982
    %vm1875 = vcmp.lt.s32.totalorder %v1245, 0
    %v1876 = vand.u32 %v1245, 2139095040
    %v1877 = vshrl.u32 %v1876, 23
    %v1878 = vsub.s32 %v1877, 127
    %v1879 = vand.u32 2147483647, %v1245
    %v1880 = vand.u32 %v1879, 8388607
    %v1881 = vor.u32 %v1880, 8388608
    %v1882 = vsub.s32 0, %v1881
    %v1883 = vadd.s32 %v1878, 1
    %vm1884 = vcmp.gt.s32.totalorder %v1883, 0
    %v1885 = vsel %vm1884, %v1883, 0
    %v1886 = vshrl.u32 %v1885, 5
    %v1887 = vand.u32 %v1885, 31
    %v1888 = vsub.s32 32, %v1887
    %v1889 = vshrl.u32 683565275, %v1888
    %v1890 = vshll.u32 683565275, %v1887
    %v1891 = vshrl.u32 2475754826, %v1888
    %v1892 = vor.u32 %v1890, %v1891
    %v1893 = vshll.u32 2475754826, %v1887
    %v1894 = vshrl.u32 2131351028, %v1888
    %v1895 = vor.u32 %v1893, %v1894
    %v1896 = vshll.u32 2131351028, %v1887
    %v1897 = vshrl.u32 2102212464, %v1888
    %v1898 = vor.u32 %v1896, %v1897
    %v1899 = vshll.u32 2102212464, %v1887
    %v1900 = vshrl.u32 920167782, %v1888
    %v1901 = vor.u32 %v1899, %v1900
    %v1902 = vshll.u32 920167782, %v1887
    %v1903 = vshrl.u32 1326507024, %v1888
    %v1904 = vor.u32 %v1902, %v1903
    %vm1905 = vcmp.lt.s32.totalorder %v1886, 1
    %vm1906 = vcmp.lt.s32.totalorder %v1886, 2
    %vm1907 = vcmp.lt.s32.totalorder %v1886, 3
    %vm1908 = vcmp.lt.s32.totalorder %v1886, 4
    %v1909 = vsel %vm1905, %v1889, %v1892
    %v1910 = vsel %vm1908, %v1898, 2102212464
    %v1911 = vsel %vm1907, %v1895, %v1910
    %v1912 = vsel %vm1906, %v1909, %v1911
    %v1913 = vsel %vm1905, %v1892, %v1895
    %v1914 = vsel %vm1908, %v1901, 920167782
    %v1915 = vsel %vm1907, %v1898, %v1914
    %v1916 = vsel %vm1906, %v1913, %v1915
    %v1917 = vsel %vm1905, %v1895, %v1898
    %v1918 = vsel %vm1908, %v1904, 1326507024
    %v1919 = vsel %vm1907, %v1901, %v1918
    %v1920 = vsel %vm1906, %v1917, %v1919
    %v1921 = vshll.u32 %v1881, 8
    %v1922 = vmul.u32.u64.compose %v1921, %v1920
    %v1923 = vextract.low.u32 %v1922
    %v1924 = vextract.high.u32 %v1922
    %v1925 = vmul.u32.u64.compose %v1921, %v1916
    %v1926 = vextract.low.u32 %v1925
    %v1927 = vextract.high.u32 %v1925
    %v1928 = vmul.u32 %v1921, %v1912
    %v1929 = vadd.s32 %v1924, %v1926
    %vm1930 = vc.u32 %v1924, %v1926
    %v1931 = vadd.s32 %v1927, 1
    %v1932 = vsel %vm1930, %v1931, %v1927
    %v1933 = vadd.s32 %v1928, %v1932
    %v1934 = vadd.s32 %v1933, 536870912
    %v1935 = vshrl.u32 %v1934, 30
    %v1936 = vshll.u32 %v1935, 30
    %v1937 = vsub.s32 %v1933, %v1936
    %vm1938 = vcmp.lt.s32.totalorder %v1937, 0
    %v1939 = vsub.s32 0, %v1937
    %v1940 = vsel %vm1938, %v1939, %v1937
    %v1941 = vclz %v1940
    %v1942 = vsub.s32 %v1941, 2
    %vm1943 = vcmp.gt.s32.totalorder 0, %v1942
    %v1944 = vsel %vm1943, 0, %v1942
    %v1945 = vsub.s32 32, %v1944
    %v1946 = vshll.u32 %v1937, %v1944
    %v1947 = vshrl.u32 %v1929, %v1945
    %v1948 = vor.u32 %v1946, %v1947
    %v1949 = vsub.s32 4294967266, %v1944
    %v1950 = vadd.s32 %v1949, 127
    %v1951 = vshll.u32 %v1950, 23
    %v1952 = vor.u32 4788187, %v1951
    %v1953 = vand.u32 2147483647, %v1952
    %v1955 = vcvt.s32.f32 %v1948
    %v1956 = vmul.f32 %v1955, %v1953
    %v1957 = vxor.u32 %v1956, 2147483648
    %v1958 = vsel %vm1875, %v1957, %v1956
    %v1959 = vsub.s32 4, %v1935
    %v1960 = vsel %vm1875, %v1959, %v1935
    %v1961 = vsel %vm1874, %v1245, %v1958
    %v1962 = vsel %vm1874, 0, %v1960
    %v1963 = vcosq.f32.pop %v1961
    %v1964 = vsinq.f32.pop %v1961
    %vm1965 = vweird.f32 %v1245
    %v1966 = vadd.s32 %v1962, 3
    %v1967 = vand.u32 %v1966, 3
    %vm1968 = vcmp.lt.s32.totalorder %v1967, 2
    %vm1969 = vcmp.eq.s32.totalorder %v1967, 0
    %v1970 = vxor.u32 %v1964, 2147483648
    %v1971 = vsel %vm1969, %v1963, %v1970
    %vm1972 = vcmp.eq.s32.totalorder %v1967, 2
    %v1973 = vxor.u32 %v1963, 2147483648
    %v1974 = vsel %vm1972, %v1973, %v1964
    %v1975 = vsel %vm1968, %v1971, %v1974
    %v1976 = vsel %vm1965, nan, %v1975
    %v1977 = vand.u32 2147483647, %v1247
    %vm1978 = vcmp.le.f32.partialorder %v1977, 0.7853982
    %vm1979 = vcmp.lt.s32.totalorder %v1247, 0
    %v1980 = vand.u32 %v1247, 2139095040
    %v1981 = vshrl.u32 %v1980, 23
    %v1982 = vsub.s32 %v1981, 127
    %v1983 = vand.u32 2147483647, %v1247
    %v1984 = vand.u32 %v1983, 8388607
    %v1985 = vor.u32 %v1984, 8388608
    %v1986 = vsub.s32 0, %v1985
    %v1987 = vadd.s32 %v1982, 1
    %vm1988 = vcmp.gt.s32.totalorder %v1987, 0
    %v1989 = vsel %vm1988, %v1987, 0
    %v1990 = vshrl.u32 %v1989, 5
    %v1991 = vand.u32 %v1989, 31
    %v1992 = vsub.s32 32, %v1991
    %v1993 = vshrl.u32 683565275, %v1992
    %v1994 = vshll.u32 683565275, %v1991
    %v1995 = vshrl.u32 2475754826, %v1992
    %v1996 = vor.u32 %v1994, %v1995
    %v1997 = vshll.u32 2475754826, %v1991
    %v1998 = vshrl.u32 2131351028, %v1992
    %v1999 = vor.u32 %v1997, %v1998
    %v2000 = vshll.u32 2131351028, %v1991
    %v2001 = vshrl.u32 2102212464, %v1992
    %v2002 = vor.u32 %v2000, %v2001
    %v2003 = vshll.u32 2102212464, %v1991
    %v2004 = vshrl.u32 920167782, %v1992
    %v2005 = vor.u32 %v2003, %v2004
    %v2006 = vshll.u32 920167782, %v1991
    %v2007 = vshrl.u32 1326507024, %v1992
    %v2008 = vor.u32 %v2006, %v2007
    %vm2009 = vcmp.lt.s32.totalorder %v1990, 1
    %vm2010 = vcmp.lt.s32.totalorder %v1990, 2
    %vm2011 = vcmp.lt.s32.totalorder %v1990, 3
    %vm2012 = vcmp.lt.s32.totalorder %v1990, 4
    %v2013 = vsel %vm2009, %v1993, %v1996
    %v2014 = vsel %vm2012, %v2002, 2102212464
    %v2015 = vsel %vm2011, %v1999, %v2014
    %v2016 = vsel %vm2010, %v2013, %v2015
    %v2017 = vsel %vm2009, %v1996, %v1999
    %v2018 = vsel %vm2012, %v2005, 920167782
    %v2019 = vsel %vm2011, %v2002, %v2018
    %v2020 = vsel %vm2010, %v2017, %v2019
    %v2021 = vsel %vm2009, %v1999, %v2002
    %v2022 = vsel %vm2012, %v2008, 1326507024
    %v2023 = vsel %vm2011, %v2005, %v2022
    %v2024 = vsel %vm2010, %v2021, %v2023
    %v2025 = vshll.u32 %v1985, 8
    %v2026 = vmul.u32.u64.compose %v2025, %v2024
    %v2027 = vextract.low.u32 %v2026
    %v2028 = vextract.high.u32 %v2026
    %v2029 = vmul.u32.u64.compose %v2025, %v2020
    %v2030 = vextract.low.u32 %v2029
    %v2031 = vextract.high.u32 %v2029
    %v2032 = vmul.u32 %v2025, %v2016
    %v2033 = vadd.s32 %v2028, %v2030
    %vm2034 = vc.u32 %v2028, %v2030
    %v2035 = vadd.s32 %v2031, 1
    %v2036 = vsel %vm2034, %v2035, %v2031
    %v2037 = vadd.s32 %v2032, %v2036
    %v2038 = vadd.s32 %v2037, 536870912
    %v2039 = vshrl.u32 %v2038, 30
    %v2040 = vshll.u32 %v2039, 30
    %v2041 = vsub.s32 %v2037, %v2040
    %vm2042 = vcmp.lt.s32.totalorder %v2041, 0
    %v2043 = vsub.s32 0, %v2041
    %v2044 = vsel %vm2042, %v2043, %v2041
    %v2045 = vclz %v2044
    %v2046 = vsub.s32 %v2045, 2
    %vm2047 = vcmp.gt.s32.totalorder 0, %v2046
    %v2048 = vsel %vm2047, 0, %v2046
    %v2049 = vsub.s32 32, %v2048
    %v2050 = vshll.u32 %v2041, %v2048
    %v2051 = vshrl.u32 %v2033, %v2049
    %v2052 = vor.u32 %v2050, %v2051
    %v2053 = vsub.s32 4294967266, %v2048
    %v2054 = vadd.s32 %v2053, 127
    %v2055 = vshll.u32 %v2054, 23
    %v2056 = vor.u32 4788187, %v2055
    %v2057 = vand.u32 2147483647, %v2056
    %v2059 = vcvt.s32.f32 %v2052
    %v2060 = vmul.f32 %v2059, %v2057
    %v2061 = vxor.u32 %v2060, 2147483648
    %v2062 = vsel %vm1979, %v2061, %v2060
    %v2063 = vsub.s32 4, %v2039
    %v2064 = vsel %vm1979, %v2063, %v2039
    %v2065 = vsel %vm1978, %v1247, %v2062
    %v2066 = vsel %vm1978, 0, %v2064
    %v2067 = vcosq.f32.pop %v2065
    %v2068 = vsinq.f32.pop %v2065
    %vm2069 = vweird.f32 %v1247
    %v2070 = vadd.s32 %v2066, 3
    %v2071 = vand.u32 %v2070, 3
    %vm2072 = vcmp.lt.s32.totalorder %v2071, 2
    %vm2073 = vcmp.eq.s32.totalorder %v2071, 0
    %v2074 = vxor.u32 %v2068, 2147483648
    %v2075 = vsel %vm2073, %v2067, %v2074
    %vm2076 = vcmp.eq.s32.totalorder %v2071, 2
    %v2077 = vxor.u32 %v2067, 2147483648
    %v2078 = vsel %vm2076, %v2077, %v2068
    %v2079 = vsel %vm2072, %v2075, %v2078
    %v2080 = vsel %vm2069, nan, %v2079
    %s2081 = scalar_lea.vmem %s3, 32
    %v2082 = vld [vmem:[%s2081] sm:$0xff]
    %v2083 = vld [vmem:[%s2081 + $0x8] sm:$0xff]
    %v2084 = vld [vmem:[%s2081 + $0x10] sm:$0xff]
    %v2085 = vld [vmem:[%s2081 + $0x18] sm:$0xff]
    %s2086 = scalar_lea.vmem %s4, 32
    %v2087 = vld [vmem:[%s2086] sm:$0xff]
    %v2088 = vld [vmem:[%s2086 + $0x8] sm:$0xff]
    %v2089 = vld [vmem:[%s2086 + $0x10] sm:$0xff]
    %v2090 = vld [vmem:[%s2086 + $0x18] sm:$0xff]
    %2092 = vset.pattern.permute.xlu0 0
    %2093 = vperm.xlu0 %2092, %v2087
    %v2094 = vpop.permute.xlu0 %2093
    %2097 = vset.pattern.permute.xlu0 0
    %2098 = vperm.xlu0 %2097, %v2088
    %v2099 = vpop.permute.xlu0 %2098
    %2102 = vset.pattern.permute.xlu0 0
    %2103 = vperm.xlu0 %2102, %v2089
    %v2104 = vpop.permute.xlu0 %2103
    %2107 = vset.pattern.permute.xlu0 0
    %2108 = vperm.xlu0 %2107, %v2090
    %v2109 = vpop.permute.xlu0 %2108
    %v2112 = vsel %vm1147, %v2082, 0
    %v2115 = vsel %vm1147, %v2083, 0
    %v2118 = vsel %vm1147, %v2084, 0
    %v2121 = vsel %vm1147, %v2085, 0
    %2123 = vmatprep.subr.mxu0 %v1456
    %2124 = vmatpush1.msra.mxu0 %v1352
    %2125 = vmatprep.subr.mxu0 %v1664
    %2126 = vmatpush1.msra.mxu0 %v1560
    %2127 = vmatprep.subr.mxu0 %v1872
    %2128 = vmatpush1.msra.mxu0 %v1768
    %2129 = vmatprep.subr.mxu0 %v2080
    %2130 = vmatpush1.msra.mxu0 %v1976
    %2131 = vmatprep.subr.mxu0 0.0
    %2132 = vmatpush1.msra.mxu0 0.0
    %2133 = vmatprep.subr.mxu0 0.0
    %2134 = vmatpush1.msra.mxu0 0.0
    %2135 = vmatprep.subr.mxu0 0.0
    %2136 = vmatpush1.msra.mxu0 0.0
    %2137 = vmatprep.subr.mxu0 0.0
    %2138 = vmatpush1.msra.mxu0 0.0
    %2139 = vmatprep.subr.mxu0 0.0
    %2140 = vmatpush1.msra.mxu0 0.0
    %2141 = vmatprep.subr.mxu0 0.0
    %2142 = vmatpush1.msra.mxu0 0.0
    %2143 = vmatprep.subr.mxu0 0.0
    %2144 = vmatpush1.msra.mxu0 0.0
    %2145 = vmatprep.subr.mxu0 0.0
    %2146 = vmatpush1.msra.mxu0 0.0
    %2147 = vmatprep.subr.mxu0 0.0
    %2148 = vmatpush1.msra.mxu0 0.0
    %2149 = vmatprep.subr.mxu0 0.0
    %2150 = vmatpush1.msra.mxu0 0.0
    %2151 = vmatprep.subr.mxu0 0.0
    %2152 = vmatpush1.msra.mxu0 0.0
    %2153 = vmatprep.subr.mxu0 0.0
    %2154 = vmatpush1.msra.mxu0 0.0
    %2155 = vmatprep.subr.mxu0 0.0
    %2156 = vmatpush1.msra.mxu0 0.0
    %2157 = vmatprep.subr.mxu0 0.0
    %2158 = vmatpush1.msra.mxu0 0.0
    %2159 = vmatprep.subr.mxu0 0.0
    %2160 = vmatpush1.msra.mxu0 0.0
    %2161 = vmatprep.subr.mxu0 0.0
    %2162 = vmatpush1.msra.mxu0 0.0
    %2163 = vmatprep.subr.mxu0 0.0
    %2164 = vmatpush1.msra.mxu0 0.0
    %2165 = vmatprep.subr.mxu0 0.0
    %2166 = vmatpush1.msra.mxu0 0.0
    %2167 = vmatprep.subr.mxu0 0.0
    %2168 = vmatpush1.msra.mxu0 0.0
    %2169 = vmatprep.subr.mxu0 0.0
    %2170 = vmatpush1.msra.mxu0 0.0
    %2171 = vmatprep.subr.mxu0 0.0
    %2172 = vmatpush1.msra.mxu0 0.0
    %2173 = vmatprep.subr.mxu0 0.0
    %2174 = vmatpush1.msra.mxu0 0.0
    %2175 = vmatprep.subr.mxu0 0.0
    %2176 = vmatpush1.msra.mxu0 0.0
    %2177 = vmatprep.subr.mxu0 0.0
    %2178 = vmatpush1.msra.mxu0 0.0
    %2179 = vmatprep.subr.mxu0 0.0
    %2180 = vmatpush1.msra.mxu0 0.0
    %2181 = vmatprep.subr.mxu0 0.0
    %2182 = vmatpush1.msra.mxu0 0.0
    %2183 = vmatprep.subr.mxu0 0.0
    %2184 = vmatpush1.msra.mxu0 0.0
    %2185 = vmatprep.subr.mxu0 0.0
    %2186 = vmatpush1.msra.mxu0 0.0
    %2187 = vmatprep.mubr.f32.mxu0 0.0
    %2188 = vmatmul.mubr.f32.gmra.mrb[0].mxu0 %v2112
    %v2189 = vpop.f32.mrb[0].mxu0
    %v2190 = vadd.f32 %v2094, %v2189
    %v2191 = vpop.f32.mrb[0].mxu0
    %v2192 = vadd.f32 %v2094, %v2191
    %2193 = vmatprep.mubr.f32.mxu0 0.0
    %2194 = vmatmul.mubr.f32.gmra.mrb[0].mxu0 %v2115
    %v2195 = vpop.f32.mrb[0].mxu0
    %v2196 = vadd.f32 %v2099, %v2195
    %v2197 = vpop.f32.mrb[0].mxu0
    %v2198 = vadd.f32 %v2099, %v2197
    %2199 = vmatprep.mubr.f32.mxu0 0.0
    %2200 = vmatmul.mubr.f32.gmra.mrb[0].mxu0 %v2118
    %v2201 = vpop.f32.mrb[0].mxu0
    %v2202 = vadd.f32 %v2104, %v2201
    %v2203 = vpop.f32.mrb[0].mxu0
    %v2204 = vadd.f32 %v2104, %v2203
    %2205 = vmatprep.mubr.f32.mxu0 0.0
    %2206 = vmatmul.mubr.f32.gmra.mrb[0].mxu0 %v2121
    %v2207 = vpop.f32.mrb[0].mxu0
    %v2208 = vadd.f32 %v2109, %v2207
    %v2209 = vpop.f32.mrb[0].mxu0
    %v2210 = vadd.f32 %v2109, %v2209
    %2211 = vdwg.mxu0
    %v2212 = vand.u32 2147483647, %v2190
    %vm2213 = vcmp.le.f32.partialorder %v2212, 0.7853982
    %vm2214 = vcmp.lt.s32.totalorder %v2190, 0
    %v2215 = vand.u32 %v2190, 2139095040
    %v2216 = vshrl.u32 %v2215, 23
    %v2217 = vsub.s32 %v2216, 127
    %v2218 = vand.u32 2147483647, %v2190
    %v2219 = vand.u32 %v2218, 8388607
    %v2220 = vor.u32 %v2219, 8388608
    %v2221 = vsub.s32 0, %v2220
    %v2222 = vadd.s32 %v2217, 1
    %vm2223 = vcmp.gt.s32.totalorder %v2222, 0
    %v2224 = vsel %vm2223, %v2222, 0
    %v2225 = vshrl.u32 %v2224, 5
    %v2226 = vand.u32 %v2224, 31
    %v2227 = vsub.s32 32, %v2226
    %v2228 = vshrl.u32 683565275, %v2227
    %v2229 = vshll.u32 683565275, %v2226
    %v2230 = vshrl.u32 2475754826, %v2227
    %v2231 = vor.u32 %v2229, %v2230
    %v2232 = vshll.u32 2475754826, %v2226
    %v2233 = vshrl.u32 2131351028, %v2227
    %v2234 = vor.u32 %v2232, %v2233
    %v2235 = vshll.u32 2131351028, %v2226
    %v2236 = vshrl.u32 2102212464, %v2227
    %v2237 = vor.u32 %v2235, %v2236
    %v2238 = vshll.u32 2102212464, %v2226
    %v2239 = vshrl.u32 920167782, %v2227
    %v2240 = vor.u32 %v2238, %v2239
    %v2241 = vshll.u32 920167782, %v2226
    %v2242 = vshrl.u32 1326507024, %v2227
    %v2243 = vor.u32 %v2241, %v2242
    %vm2244 = vcmp.lt.s32.totalorder %v2225, 1
    %vm2245 = vcmp.lt.s32.totalorder %v2225, 2
    %vm2246 = vcmp.lt.s32.totalorder %v2225, 3
    %vm2247 = vcmp.lt.s32.totalorder %v2225, 4
    %v2248 = vsel %vm2244, %v2228, %v2231
    %v2249 = vsel %vm2247, %v2237, 2102212464
    %v2250 = vsel %vm2246, %v2234, %v2249
    %v2251 = vsel %vm2245, %v2248, %v2250
    %v2252 = vsel %vm2244, %v2231, %v2234
    %v2253 = vsel %vm2247, %v2240, 920167782
    %v2254 = vsel %vm2246, %v2237, %v2253
    %v2255 = vsel %vm2245, %v2252, %v2254
    %v2256 = vsel %vm2244, %v2234, %v2237
    %v2257 = vsel %vm2247, %v2243, 1326507024
    %v2258 = vsel %vm2246, %v2240, %v2257
    %v2259 = vsel %vm2245, %v2256, %v2258
    %v2260 = vshll.u32 %v2220, 8
    %v2261 = vmul.u32.u64.compose %v2260, %v2259
    %v2262 = vextract.low.u32 %v2261
    %v2263 = vextract.high.u32 %v2261
    %v2264 = vmul.u32.u64.compose %v2260, %v2255
    %v2265 = vextract.low.u32 %v2264
    %v2266 = vextract.high.u32 %v2264
    %v2267 = vmul.u32 %v2260, %v2251
    %v2268 = vadd.s32 %v2263, %v2265
    %vm2269 = vc.u32 %v2263, %v2265
    %v2270 = vadd.s32 %v2266, 1
    %v2271 = vsel %vm2269, %v2270, %v2266
    %v2272 = vadd.s32 %v2267, %v2271
    %v2273 = vadd.s32 %v2272, 536870912
    %v2274 = vshrl.u32 %v2273, 30
    %v2275 = vshll.u32 %v2274, 30
    %v2276 = vsub.s32 %v2272, %v2275
    %vm2277 = vcmp.lt.s32.totalorder %v2276, 0
    %v2278 = vsub.s32 0, %v2276
    %v2279 = vsel %vm2277, %v2278, %v2276
    %v2280 = vclz %v2279
    %v2281 = vsub.s32 %v2280, 2
    %vm2282 = vcmp.gt.s32.totalorder 0, %v2281
    %v2283 = vsel %vm2282, 0, %v2281
    %v2284 = vsub.s32 32, %v2283
    %v2285 = vshll.u32 %v2276, %v2283
    %v2286 = vshrl.u32 %v2268, %v2284
    %v2287 = vor.u32 %v2285, %v2286
    %v2288 = vsub.s32 4294967266, %v2283
    %v2289 = vadd.s32 %v2288, 127
    %v2290 = vshll.u32 %v2289, 23
    %v2291 = vor.u32 4788187, %v2290
    %v2292 = vand.u32 2147483647, %v2291
    %v2294 = vcvt.s32.f32 %v2287
    %v2295 = vmul.f32 %v2294, %v2292
    %v2296 = vxor.u32 %v2295, 2147483648
    %v2297 = vsel %vm2214, %v2296, %v2295
    %v2298 = vsub.s32 4, %v2274
    %v2299 = vsel %vm2214, %v2298, %v2274
    %v2300 = vsel %vm2213, %v2190, %v2297
    %v2301 = vsel %vm2213, 0, %v2299
    %v2302 = vcosq.f32.pop %v2300
    %v2303 = vsinq.f32.pop %v2300
    %vm2304 = vweird.f32 %v2190
    %v2305 = vadd.s32 %v2301, 3
    %v2306 = vand.u32 %v2305, 3
    %vm2307 = vcmp.lt.s32.totalorder %v2306, 2
    %vm2308 = vcmp.eq.s32.totalorder %v2306, 0
    %v2309 = vxor.u32 %v2303, 2147483648
    %v2310 = vsel %vm2308, %v2302, %v2309
    %vm2311 = vcmp.eq.s32.totalorder %v2306, 2
    %v2312 = vxor.u32 %v2302, 2147483648
    %v2313 = vsel %vm2311, %v2312, %v2303
    %v2314 = vsel %vm2307, %v2310, %v2313
    %v2315 = vsel %vm2304, nan, %v2314
    %v2316 = vand.u32 2147483647, %v2192
    %vm2317 = vcmp.le.f32.partialorder %v2316, 0.7853982
    %vm2318 = vcmp.lt.s32.totalorder %v2192, 0
    %v2319 = vand.u32 %v2192, 2139095040
    %v2320 = vshrl.u32 %v2319, 23
    %v2321 = vsub.s32 %v2320, 127
    %v2322 = vand.u32 2147483647, %v2192
    %v2323 = vand.u32 %v2322, 8388607
    %v2324 = vor.u32 %v2323, 8388608
    %v2325 = vsub.s32 0, %v2324
    %v2326 = vadd.s32 %v2321, 1
    %vm2327 = vcmp.gt.s32.totalorder %v2326, 0
    %v2328 = vsel %vm2327, %v2326, 0
    %v2329 = vshrl.u32 %v2328, 5
    %v2330 = vand.u32 %v2328, 31
    %v2331 = vsub.s32 32, %v2330
    %v2332 = vshrl.u32 683565275, %v2331
    %v2333 = vshll.u32 683565275, %v2330
    %v2334 = vshrl.u32 2475754826, %v2331
    %v2335 = vor.u32 %v2333, %v2334
    %v2336 = vshll.u32 2475754826, %v2330
    %v2337 = vshrl.u32 2131351028, %v2331
    %v2338 = vor.u32 %v2336, %v2337
    %v2339 = vshll.u32 2131351028, %v2330
    %v2340 = vshrl.u32 2102212464, %v2331
    %v2341 = vor.u32 %v2339, %v2340
    %v2342 = vshll.u32 2102212464, %v2330
    %v2343 = vshrl.u32 920167782, %v2331
    %v2344 = vor.u32 %v2342, %v2343
    %v2345 = vshll.u32 920167782, %v2330
    %v2346 = vshrl.u32 1326507024, %v2331
    %v2347 = vor.u32 %v2345, %v2346
    %vm2348 = vcmp.lt.s32.totalorder %v2329, 1
    %vm2349 = vcmp.lt.s32.totalorder %v2329, 2
    %vm2350 = vcmp.lt.s32.totalorder %v2329, 3
    %vm2351 = vcmp.lt.s32.totalorder %v2329, 4
    %v2352 = vsel %vm2348, %v2332, %v2335
    %v2353 = vsel %vm2351, %v2341, 2102212464
    %v2354 = vsel %vm2350, %v2338, %v2353
    %v2355 = vsel %vm2349, %v2352, %v2354
    %v2356 = vsel %vm2348, %v2335, %v2338
    %v2357 = vsel %vm2351, %v2344, 920167782
    %v2358 = vsel %vm2350, %v2341, %v2357
    %v2359 = vsel %vm2349, %v2356, %v2358
    %v2360 = vsel %vm2348, %v2338, %v2341
    %v2361 = vsel %vm2351, %v2347, 1326507024
    %v2362 = vsel %vm2350, %v2344, %v2361
    %v2363 = vsel %vm2349, %v2360, %v2362
    %v2364 = vshll.u32 %v2324, 8
    %v2365 = vmul.u32.u64.compose %v2364, %v2363
    %v2366 = vextract.low.u32 %v2365
    %v2367 = vextract.high.u32 %v2365
    %v2368 = vmul.u32.u64.compose %v2364, %v2359
    %v2369 = vextract.low.u32 %v2368
    %v2370 = vextract.high.u32 %v2368
    %v2371 = vmul.u32 %v2364, %v2355
    %v2372 = vadd.s32 %v2367, %v2369
    %vm2373 = vc.u32 %v2367, %v2369
    %v2374 = vadd.s32 %v2370, 1
    %v2375 = vsel %vm2373, %v2374, %v2370
    %v2376 = vadd.s32 %v2371, %v2375
    %v2377 = vadd.s32 %v2376, 536870912
    %v2378 = vshrl.u32 %v2377, 30
    %v2379 = vshll.u32 %v2378, 30
    %v2380 = vsub.s32 %v2376, %v2379
    %vm2381 = vcmp.lt.s32.totalorder %v2380, 0
    %v2382 = vsub.s32 0, %v2380
    %v2383 = vsel %vm2381, %v2382, %v2380
    %v2384 = vclz %v2383
    %v2385 = vsub.s32 %v2384, 2
    %vm2386 = vcmp.gt.s32.totalorder 0, %v2385
    %v2387 = vsel %vm2386, 0, %v2385
    %v2388 = vsub.s32 32, %v2387
    %v2389 = vshll.u32 %v2380, %v2387
    %v2390 = vshrl.u32 %v2372, %v2388
    %v2391 = vor.u32 %v2389, %v2390
    %v2392 = vsub.s32 4294967266, %v2387
    %v2393 = vadd.s32 %v2392, 127
    %v2394 = vshll.u32 %v2393, 23
    %v2395 = vor.u32 4788187, %v2394
    %v2396 = vand.u32 2147483647, %v2395
    %v2398 = vcvt.s32.f32 %v2391
    %v2399 = vmul.f32 %v2398, %v2396
    %v2400 = vxor.u32 %v2399, 2147483648
    %v2401 = vsel %vm2318, %v2400, %v2399
    %v2402 = vsub.s32 4, %v2378
    %v2403 = vsel %vm2318, %v2402, %v2378
    %v2404 = vsel %vm2317, %v2192, %v2401
    %v2405 = vsel %vm2317, 0, %v2403
    %v2406 = vcosq.f32.pop %v2404
    %v2407 = vsinq.f32.pop %v2404
    %vm2408 = vweird.f32 %v2192
    %v2409 = vadd.s32 %v2405, 3
    %v2410 = vand.u32 %v2409, 3
    %vm2411 = vcmp.lt.s32.totalorder %v2410, 2
    %vm2412 = vcmp.eq.s32.totalorder %v2410, 0
    %v2413 = vxor.u32 %v2407, 2147483648
    %v2414 = vsel %vm2412, %v2406, %v2413
    %vm2415 = vcmp.eq.s32.totalorder %v2410, 2
    %v2416 = vxor.u32 %v2406, 2147483648
    %v2417 = vsel %vm2415, %v2416, %v2407
    %v2418 = vsel %vm2411, %v2414, %v2417
    %v2419 = vsel %vm2408, nan, %v2418
    %v2420 = vand.u32 2147483647, %v2196
    %vm2421 = vcmp.le.f32.partialorder %v2420, 0.7853982
    %vm2422 = vcmp.lt.s32.totalorder %v2196, 0
    %v2423 = vand.u32 %v2196, 2139095040
    %v2424 = vshrl.u32 %v2423, 23
    %v2425 = vsub.s32 %v2424, 127
    %v2426 = vand.u32 2147483647, %v2196
    %v2427 = vand.u32 %v2426, 8388607
    %v2428 = vor.u32 %v2427, 8388608
    %v2429 = vsub.s32 0, %v2428
    %v2430 = vadd.s32 %v2425, 1
    %vm2431 = vcmp.gt.s32.totalorder %v2430, 0
    %v2432 = vsel %vm2431, %v2430, 0
    %v2433 = vshrl.u32 %v2432, 5
    %v2434 = vand.u32 %v2432, 31
    %v2435 = vsub.s32 32, %v2434
    %v2436 = vshrl.u32 683565275, %v2435
    %v2437 = vshll.u32 683565275, %v2434
    %v2438 = vshrl.u32 2475754826, %v2435
    %v2439 = vor.u32 %v2437, %v2438
    %v2440 = vshll.u32 2475754826, %v2434
    %v2441 = vshrl.u32 2131351028, %v2435
    %v2442 = vor.u32 %v2440, %v2441
    %v2443 = vshll.u32 2131351028, %v2434
    %v2444 = vshrl.u32 2102212464, %v2435
    %v2445 = vor.u32 %v2443, %v2444
    %v2446 = vshll.u32 2102212464, %v2434
    %v2447 = vshrl.u32 920167782, %v2435
    %v2448 = vor.u32 %v2446, %v2447
    %v2449 = vshll.u32 920167782, %v2434
    %v2450 = vshrl.u32 1326507024, %v2435
    %v2451 = vor.u32 %v2449, %v2450
    %vm2452 = vcmp.lt.s32.totalorder %v2433, 1
    %vm2453 = vcmp.lt.s32.totalorder %v2433, 2
    %vm2454 = vcmp.lt.s32.totalorder %v2433, 3
    %vm2455 = vcmp.lt.s32.totalorder %v2433, 4
    %v2456 = vsel %vm2452, %v2436, %v2439
    %v2457 = vsel %vm2455, %v2445, 2102212464
    %v2458 = vsel %vm2454, %v2442, %v2457
    %v2459 = vsel %vm2453, %v2456, %v2458
    %v2460 = vsel %vm2452, %v2439, %v2442
    %v2461 = vsel %vm2455, %v2448, 920167782
    %v2462 = vsel %vm2454, %v2445, %v2461
    %v2463 = vsel %vm2453, %v2460, %v2462
    %v2464 = vsel %vm2452, %v2442, %v2445
    %v2465 = vsel %vm2455, %v2451, 1326507024
    %v2466 = vsel %vm2454, %v2448, %v2465
    %v2467 = vsel %vm2453, %v2464, %v2466
    %v2468 = vshll.u32 %v2428, 8
    %v2469 = vmul.u32.u64.compose %v2468, %v2467
    %v2470 = vextract.low.u32 %v2469
    %v2471 = vextract.high.u32 %v2469
    %v2472 = vmul.u32.u64.compose %v2468, %v2463
    %v2473 = vextract.low.u32 %v2472
    %v2474 = vextract.high.u32 %v2472
    %v2475 = vmul.u32 %v2468, %v2459
    %v2476 = vadd.s32 %v2471, %v2473
    %vm2477 = vc.u32 %v2471, %v2473
    %v2478 = vadd.s32 %v2474, 1
    %v2479 = vsel %vm2477, %v2478, %v2474
    %v2480 = vadd.s32 %v2475, %v2479
    %v2481 = vadd.s32 %v2480, 536870912
    %v2482 = vshrl.u32 %v2481, 30
    %v2483 = vshll.u32 %v2482, 30
    %v2484 = vsub.s32 %v2480, %v2483
    %vm2485 = vcmp.lt.s32.totalorder %v2484, 0
    %v2486 = vsub.s32 0, %v2484
    %v2487 = vsel %vm2485, %v2486, %v2484
    %v2488 = vclz %v2487
    %v2489 = vsub.s32 %v2488, 2
    %vm2490 = vcmp.gt.s32.totalorder 0, %v2489
    %v2491 = vsel %vm2490, 0, %v2489
    %v2492 = vsub.s32 32, %v2491
    %v2493 = vshll.u32 %v2484, %v2491
    %v2494 = vshrl.u32 %v2476, %v2492
    %v2495 = vor.u32 %v2493, %v2494
    %v2496 = vsub.s32 4294967266, %v2491
    %v2497 = vadd.s32 %v2496, 127
    %v2498 = vshll.u32 %v2497, 23
    %v2499 = vor.u32 4788187, %v2498
    %v2500 = vand.u32 2147483647, %v2499
    %v2502 = vcvt.s32.f32 %v2495
    %v2503 = vmul.f32 %v2502, %v2500
    %v2504 = vxor.u32 %v2503, 2147483648
    %v2505 = vsel %vm2422, %v2504, %v2503
    %v2506 = vsub.s32 4, %v2482
    %v2507 = vsel %vm2422, %v2506, %v2482
    %v2508 = vsel %vm2421, %v2196, %v2505
    %v2509 = vsel %vm2421, 0, %v2507
    %v2510 = vcosq.f32.pop %v2508
    %v2511 = vsinq.f32.pop %v2508
    %vm2512 = vweird.f32 %v2196
    %v2513 = vadd.s32 %v2509, 3
    %v2514 = vand.u32 %v2513, 3
    %vm2515 = vcmp.lt.s32.totalorder %v2514, 2
    %vm2516 = vcmp.eq.s32.totalorder %v2514, 0
    %v2517 = vxor.u32 %v2511, 2147483648
    %v2518 = vsel %vm2516, %v2510, %v2517
    %vm2519 = vcmp.eq.s32.totalorder %v2514, 2
    %v2520 = vxor.u32 %v2510, 2147483648
    %v2521 = vsel %vm2519, %v2520, %v2511
    %v2522 = vsel %vm2515, %v2518, %v2521
    %v2523 = vsel %vm2512, nan, %v2522
    %v2524 = vand.u32 2147483647, %v2198
    %vm2525 = vcmp.le.f32.partialorder %v2524, 0.7853982
    %vm2526 = vcmp.lt.s32.totalorder %v2198, 0
    %v2527 = vand.u32 %v2198, 2139095040
    %v2528 = vshrl.u32 %v2527, 23
    %v2529 = vsub.s32 %v2528, 127
    %v2530 = vand.u32 2147483647, %v2198
    %v2531 = vand.u32 %v2530, 8388607
    %v2532 = vor.u32 %v2531, 8388608
    %v2533 = vsub.s32 0, %v2532
    %v2534 = vadd.s32 %v2529, 1
    %vm2535 = vcmp.gt.s32.totalorder %v2534, 0
    %v2536 = vsel %vm2535, %v2534, 0
    %v2537 = vshrl.u32 %v2536, 5
    %v2538 = vand.u32 %v2536, 31
    %v2539 = vsub.s32 32, %v2538
    %v2540 = vshrl.u32 683565275, %v2539
    %v2541 = vshll.u32 683565275, %v2538
    %v2542 = vshrl.u32 2475754826, %v2539
    %v2543 = vor.u32 %v2541, %v2542
    %v2544 = vshll.u32 2475754826, %v2538
    %v2545 = vshrl.u32 2131351028, %v2539
    %v2546 = vor.u32 %v2544, %v2545
    %v2547 = vshll.u32 2131351028, %v2538
    %v2548 = vshrl.u32 2102212464, %v2539
    %v2549 = vor.u32 %v2547, %v2548
    %v2550 = vshll.u32 2102212464, %v2538
    %v2551 = vshrl.u32 920167782, %v2539
    %v2552 = vor.u32 %v2550, %v2551
    %v2553 = vshll.u32 920167782, %v2538
    %v2554 = vshrl.u32 1326507024, %v2539
    %v2555 = vor.u32 %v2553, %v2554
    %vm2556 = vcmp.lt.s32.totalorder %v2537, 1
    %vm2557 = vcmp.lt.s32.totalorder %v2537, 2
    %vm2558 = vcmp.lt.s32.totalorder %v2537, 3
    %vm2559 = vcmp.lt.s32.totalorder %v2537, 4
    %v2560 = vsel %vm2556, %v2540, %v2543
    %v2561 = vsel %vm2559, %v2549, 2102212464
    %v2562 = vsel %vm2558, %v2546, %v2561
    %v2563 = vsel %vm2557, %v2560, %v2562
    %v2564 = vsel %vm2556, %v2543, %v2546
    %v2565 = vsel %vm2559, %v2552, 920167782
    %v2566 = vsel %vm2558, %v2549, %v2565
    %v2567 = vsel %vm2557, %v2564, %v2566
    %v2568 = vsel %vm2556, %v2546, %v2549
    %v2569 = vsel %vm2559, %v2555, 1326507024
    %v2570 = vsel %vm2558, %v2552, %v2569
    %v2571 = vsel %vm2557, %v2568, %v2570
    %v2572 = vshll.u32 %v2532, 8
    %v2573 = vmul.u32.u64.compose %v2572, %v2571
    %v2574 = vextract.low.u32 %v2573
    %v2575 = vextract.high.u32 %v2573
    %v2576 = vmul.u32.u64.compose %v2572, %v2567
    %v2577 = vextract.low.u32 %v2576
    %v2578 = vextract.high.u32 %v2576
    %v2579 = vmul.u32 %v2572, %v2563
    %v2580 = vadd.s32 %v2575, %v2577
    %vm2581 = vc.u32 %v2575, %v2577
    %v2582 = vadd.s32 %v2578, 1
    %v2583 = vsel %vm2581, %v2582, %v2578
    %v2584 = vadd.s32 %v2579, %v2583
    %v2585 = vadd.s32 %v2584, 536870912
    %v2586 = vshrl.u32 %v2585, 30
    %v2587 = vshll.u32 %v2586, 30
    %v2588 = vsub.s32 %v2584, %v2587
    %vm2589 = vcmp.lt.s32.totalorder %v2588, 0
    %v2590 = vsub.s32 0, %v2588
    %v2591 = vsel %vm2589, %v2590, %v2588
    %v2592 = vclz %v2591
    %v2593 = vsub.s32 %v2592, 2
    %vm2594 = vcmp.gt.s32.totalorder 0, %v2593
    %v2595 = vsel %vm2594, 0, %v2593
    %v2596 = vsub.s32 32, %v2595
    %v2597 = vshll.u32 %v2588, %v2595
    %v2598 = vshrl.u32 %v2580, %v2596
    %v2599 = vor.u32 %v2597, %v2598
    %v2600 = vsub.s32 4294967266, %v2595
    %v2601 = vadd.s32 %v2600, 127
    %v2602 = vshll.u32 %v2601, 23
    %v2603 = vor.u32 4788187, %v2602
    %v2604 = vand.u32 2147483647, %v2603
    %v2606 = vcvt.s32.f32 %v2599
    %v2607 = vmul.f32 %v2606, %v2604
    %v2608 = vxor.u32 %v2607, 2147483648
    %v2609 = vsel %vm2526, %v2608, %v2607
    %v2610 = vsub.s32 4, %v2586
    %v2611 = vsel %vm2526, %v2610, %v2586
    %v2612 = vsel %vm2525, %v2198, %v2609
    %v2613 = vsel %vm2525, 0, %v2611
    %v2614 = vcosq.f32.pop %v2612
    %v2615 = vsinq.f32.pop %v2612
    %vm2616 = vweird.f32 %v2198
    %v2617 = vadd.s32 %v2613, 3
    %v2618 = vand.u32 %v2617, 3
    %vm2619 = vcmp.lt.s32.totalorder %v2618, 2
    %vm2620 = vcmp.eq.s32.totalorder %v2618, 0
    %v2621 = vxor.u32 %v2615, 2147483648
    %v2622 = vsel %vm2620, %v2614, %v2621
    %vm2623 = vcmp.eq.s32.totalorder %v2618, 2
    %v2624 = vxor.u32 %v2614, 2147483648
    %v2625 = vsel %vm2623, %v2624, %v2615
    %v2626 = vsel %vm2619, %v2622, %v2625
    %v2627 = vsel %vm2616, nan, %v2626
    %v2628 = vand.u32 2147483647, %v2202
    %vm2629 = vcmp.le.f32.partialorder %v2628, 0.7853982
    %vm2630 = vcmp.lt.s32.totalorder %v2202, 0
    %v2631 = vand.u32 %v2202, 2139095040
    %v2632 = vshrl.u32 %v2631, 23
    %v2633 = vsub.s32 %v2632, 127
    %v2634 = vand.u32 2147483647, %v2202
    %v2635 = vand.u32 %v2634, 8388607
    %v2636 = vor.u32 %v2635, 8388608
    %v2637 = vsub.s32 0, %v2636
    %v2638 = vadd.s32 %v2633, 1
    %vm2639 = vcmp.gt.s32.totalorder %v2638, 0
    %v2640 = vsel %vm2639, %v2638, 0
    %v2641 = vshrl.u32 %v2640, 5
    %v2642 = vand.u32 %v2640, 31
    %v2643 = vsub.s32 32, %v2642
    %v2644 = vshrl.u32 683565275, %v2643
    %v2645 = vshll.u32 683565275, %v2642
    %v2646 = vshrl.u32 2475754826, %v2643
    %v2647 = vor.u32 %v2645, %v2646
    %v2648 = vshll.u32 2475754826, %v2642
    %v2649 = vshrl.u32 2131351028, %v2643
    %v2650 = vor.u32 %v2648, %v2649
    %v2651 = vshll.u32 2131351028, %v2642
    %v2652 = vshrl.u32 2102212464, %v2643
    %v2653 = vor.u32 %v2651, %v2652
    %v2654 = vshll.u32 2102212464, %v2642
    %v2655 = vshrl.u32 920167782, %v2643
    %v2656 = vor.u32 %v2654, %v2655
    %v2657 = vshll.u32 920167782, %v2642
    %v2658 = vshrl.u32 1326507024, %v2643
    %v2659 = vor.u32 %v2657, %v2658
    %vm2660 = vcmp.lt.s32.totalorder %v2641, 1
    %vm2661 = vcmp.lt.s32.totalorder %v2641, 2
    %vm2662 = vcmp.lt.s32.totalorder %v2641, 3
    %vm2663 = vcmp.lt.s32.totalorder %v2641, 4
    %v2664 = vsel %vm2660, %v2644, %v2647
    %v2665 = vsel %vm2663, %v2653, 2102212464
    %v2666 = vsel %vm2662, %v2650, %v2665
    %v2667 = vsel %vm2661, %v2664, %v2666
    %v2668 = vsel %vm2660, %v2647, %v2650
    %v2669 = vsel %vm2663, %v2656, 920167782
    %v2670 = vsel %vm2662, %v2653, %v2669
    %v2671 = vsel %vm2661, %v2668, %v2670
    %v2672 = vsel %vm2660, %v2650, %v2653
    %v2673 = vsel %vm2663, %v2659, 1326507024
    %v2674 = vsel %vm2662, %v2656, %v2673
    %v2675 = vsel %vm2661, %v2672, %v2674
    %v2676 = vshll.u32 %v2636, 8
    %v2677 = vmul.u32.u64.compose %v2676, %v2675
    %v2678 = vextract.low.u32 %v2677
    %v2679 = vextract.high.u32 %v2677
    %v2680 = vmul.u32.u64.compose %v2676, %v2671
    %v2681 = vextract.low.u32 %v2680
    %v2682 = vextract.high.u32 %v2680
    %v2683 = vmul.u32 %v2676, %v2667
    %v2684 = vadd.s32 %v2679, %v2681
    %vm2685 = vc.u32 %v2679, %v2681
    %v2686 = vadd.s32 %v2682, 1
    %v2687 = vsel %vm2685, %v2686, %v2682
    %v2688 = vadd.s32 %v2683, %v2687
    %v2689 = vadd.s32 %v2688, 536870912
    %v2690 = vshrl.u32 %v2689, 30
    %v2691 = vshll.u32 %v2690, 30
    %v2692 = vsub.s32 %v2688, %v2691
    %vm2693 = vcmp.lt.s32.totalorder %v2692, 0
    %v2694 = vsub.s32 0, %v2692
    %v2695 = vsel %vm2693, %v2694, %v2692
    %v2696 = vclz %v2695
    %v2697 = vsub.s32 %v2696, 2
    %vm2698 = vcmp.gt.s32.totalorder 0, %v2697
    %v2699 = vsel %vm2698, 0, %v2697
    %v2700 = vsub.s32 32, %v2699
    %v2701 = vshll.u32 %v2692, %v2699
    %v2702 = vshrl.u32 %v2684, %v2700
    %v2703 = vor.u32 %v2701, %v2702
    %v2704 = vsub.s32 4294967266, %v2699
    %v2705 = vadd.s32 %v2704, 127
    %v2706 = vshll.u32 %v2705, 23
    %v2707 = vor.u32 4788187, %v2706
    %v2708 = vand.u32 2147483647, %v2707
    %v2710 = vcvt.s32.f32 %v2703
    %v2711 = vmul.f32 %v2710, %v2708
    %v2712 = vxor.u32 %v2711, 2147483648
    %v2713 = vsel %vm2630, %v2712, %v2711
    %v2714 = vsub.s32 4, %v2690
    %v2715 = vsel %vm2630, %v2714, %v2690
    %v2716 = vsel %vm2629, %v2202, %v2713
    %v2717 = vsel %vm2629, 0, %v2715
    %v2718 = vcosq.f32.pop %v2716
    %v2719 = vsinq.f32.pop %v2716
    %vm2720 = vweird.f32 %v2202
    %v2721 = vadd.s32 %v2717, 3
    %v2722 = vand.u32 %v2721, 3
    %vm2723 = vcmp.lt.s32.totalorder %v2722, 2
    %vm2724 = vcmp.eq.s32.totalorder %v2722, 0
    %v2725 = vxor.u32 %v2719, 2147483648
    %v2726 = vsel %vm2724, %v2718, %v2725
    %vm2727 = vcmp.eq.s32.totalorder %v2722, 2
    %v2728 = vxor.u32 %v2718, 2147483648
    %v2729 = vsel %vm2727, %v2728, %v2719
    %v2730 = vsel %vm2723, %v2726, %v2729
    %v2731 = vsel %vm2720, nan, %v2730
    %v2732 = vand.u32 2147483647, %v2204
    %vm2733 = vcmp.le.f32.partialorder %v2732, 0.7853982
    %vm2734 = vcmp.lt.s32.totalorder %v2204, 0
    %v2735 = vand.u32 %v2204, 2139095040
    %v2736 = vshrl.u32 %v2735, 23
    %v2737 = vsub.s32 %v2736, 127
    %v2738 = vand.u32 2147483647, %v2204
    %v2739 = vand.u32 %v2738, 8388607
    %v2740 = vor.u32 %v2739, 8388608
    %v2741 = vsub.s32 0, %v2740
    %v2742 = vadd.s32 %v2737, 1
    %vm2743 = vcmp.gt.s32.totalorder %v2742, 0
    %v2744 = vsel %vm2743, %v2742, 0
    %v2745 = vshrl.u32 %v2744, 5
    %v2746 = vand.u32 %v2744, 31
    %v2747 = vsub.s32 32, %v2746
    %v2748 = vshrl.u32 683565275, %v2747
    %v2749 = vshll.u32 683565275, %v2746
    %v2750 = vshrl.u32 2475754826, %v2747
    %v2751 = vor.u32 %v2749, %v2750
    %v2752 = vshll.u32 2475754826, %v2746
    %v2753 = vshrl.u32 2131351028, %v2747
    %v2754 = vor.u32 %v2752, %v2753
    %v2755 = vshll.u32 2131351028, %v2746
    %v2756 = vshrl.u32 2102212464, %v2747
    %v2757 = vor.u32 %v2755, %v2756
    %v2758 = vshll.u32 2102212464, %v2746
    %v2759 = vshrl.u32 920167782, %v2747
    %v2760 = vor.u32 %v2758, %v2759
    %v2761 = vshll.u32 920167782, %v2746
    %v2762 = vshrl.u32 1326507024, %v2747
    %v2763 = vor.u32 %v2761, %v2762
    %vm2764 = vcmp.lt.s32.totalorder %v2745, 1
    %vm2765 = vcmp.lt.s32.totalorder %v2745, 2
    %vm2766 = vcmp.lt.s32.totalorder %v2745, 3
    %vm2767 = vcmp.lt.s32.totalorder %v2745, 4
    %v2768 = vsel %vm2764, %v2748, %v2751
    %v2769 = vsel %vm2767, %v2757, 2102212464
    %v2770 = vsel %vm2766, %v2754, %v2769
    %v2771 = vsel %vm2765, %v2768, %v2770
    %v2772 = vsel %vm2764, %v2751, %v2754
    %v2773 = vsel %vm2767, %v2760, 920167782
    %v2774 = vsel %vm2766, %v2757, %v2773
    %v2775 = vsel %vm2765, %v2772, %v2774
    %v2776 = vsel %vm2764, %v2754, %v2757
    %v2777 = vsel %vm2767, %v2763, 1326507024
    %v2778 = vsel %vm2766, %v2760, %v2777
    %v2779 = vsel %vm2765, %v2776, %v2778
    %v2780 = vshll.u32 %v2740, 8
    %v2781 = vmul.u32.u64.compose %v2780, %v2779
    %v2782 = vextract.low.u32 %v2781
    %v2783 = vextract.high.u32 %v2781
    %v2784 = vmul.u32.u64.compose %v2780, %v2775
    %v2785 = vextract.low.u32 %v2784
    %v2786 = vextract.high.u32 %v2784
    %v2787 = vmul.u32 %v2780, %v2771
    %v2788 = vadd.s32 %v2783, %v2785
    %vm2789 = vc.u32 %v2783, %v2785
    %v2790 = vadd.s32 %v2786, 1
    %v2791 = vsel %vm2789, %v2790, %v2786
    %v2792 = vadd.s32 %v2787, %v2791
    %v2793 = vadd.s32 %v2792, 536870912
    %v2794 = vshrl.u32 %v2793, 30
    %v2795 = vshll.u32 %v2794, 30
    %v2796 = vsub.s32 %v2792, %v2795
    %vm2797 = vcmp.lt.s32.totalorder %v2796, 0
    %v2798 = vsub.s32 0, %v2796
    %v2799 = vsel %vm2797, %v2798, %v2796
    %v2800 = vclz %v2799
    %v2801 = vsub.s32 %v2800, 2
    %vm2802 = vcmp.gt.s32.totalorder 0, %v2801
    %v2803 = vsel %vm2802, 0, %v2801
    %v2804 = vsub.s32 32, %v2803
    %v2805 = vshll.u32 %v2796, %v2803
    %v2806 = vshrl.u32 %v2788, %v2804
    %v2807 = vor.u32 %v2805, %v2806
    %v2808 = vsub.s32 4294967266, %v2803
    %v2809 = vadd.s32 %v2808, 127
    %v2810 = vshll.u32 %v2809, 23
    %v2811 = vor.u32 4788187, %v2810
    %v2812 = vand.u32 2147483647, %v2811
    %v2814 = vcvt.s32.f32 %v2807
    %v2815 = vmul.f32 %v2814, %v2812
    %v2816 = vxor.u32 %v2815, 2147483648
    %v2817 = vsel %vm2734, %v2816, %v2815
    %v2818 = vsub.s32 4, %v2794
    %v2819 = vsel %vm2734, %v2818, %v2794
    %v2820 = vsel %vm2733, %v2204, %v2817
    %v2821 = vsel %vm2733, 0, %v2819
    %v2822 = vcosq.f32.pop %v2820
    %v2823 = vsinq.f32.pop %v2820
    %vm2824 = vweird.f32 %v2204
    %v2825 = vadd.s32 %v2821, 3
    %v2826 = vand.u32 %v2825, 3
    %vm2827 = vcmp.lt.s32.totalorder %v2826, 2
    %vm2828 = vcmp.eq.s32.totalorder %v2826, 0
    %v2829 = vxor.u32 %v2823, 2147483648
    %v2830 = vsel %vm2828, %v2822, %v2829
    %vm2831 = vcmp.eq.s32.totalorder %v2826, 2
    %v2832 = vxor.u32 %v2822, 2147483648
    %v2833 = vsel %vm2831, %v2832, %v2823
    %v2834 = vsel %vm2827, %v2830, %v2833
    %v2835 = vsel %vm2824, nan, %v2834
    %v2836 = vand.u32 2147483647, %v2208
    %vm2837 = vcmp.le.f32.partialorder %v2836, 0.7853982
    %vm2838 = vcmp.lt.s32.totalorder %v2208, 0
    %v2839 = vand.u32 %v2208, 2139095040
    %v2840 = vshrl.u32 %v2839, 23
    %v2841 = vsub.s32 %v2840, 127
    %v2842 = vand.u32 2147483647, %v2208
    %v2843 = vand.u32 %v2842, 8388607
    %v2844 = vor.u32 %v2843, 8388608
    %v2845 = vsub.s32 0, %v2844
    %v2846 = vadd.s32 %v2841, 1
    %vm2847 = vcmp.gt.s32.totalorder %v2846, 0
    %v2848 = vsel %vm2847, %v2846, 0
    %v2849 = vshrl.u32 %v2848, 5
    %v2850 = vand.u32 %v2848, 31
    %v2851 = vsub.s32 32, %v2850
    %v2852 = vshrl.u32 683565275, %v2851
    %v2853 = vshll.u32 683565275, %v2850
    %v2854 = vshrl.u32 2475754826, %v2851
    %v2855 = vor.u32 %v2853, %v2854
    %v2856 = vshll.u32 2475754826, %v2850
    %v2857 = vshrl.u32 2131351028, %v2851
    %v2858 = vor.u32 %v2856, %v2857
    %v2859 = vshll.u32 2131351028, %v2850
    %v2860 = vshrl.u32 2102212464, %v2851
    %v2861 = vor.u32 %v2859, %v2860
    %v2862 = vshll.u32 2102212464, %v2850
    %v2863 = vshrl.u32 920167782, %v2851
    %v2864 = vor.u32 %v2862, %v2863
    %v2865 = vshll.u32 920167782, %v2850
    %v2866 = vshrl.u32 1326507024, %v2851
    %v2867 = vor.u32 %v2865, %v2866
    %vm2868 = vcmp.lt.s32.totalorder %v2849, 1
    %vm2869 = vcmp.lt.s32.totalorder %v2849, 2
    %vm2870 = vcmp.lt.s32.totalorder %v2849, 3
    %vm2871 = vcmp.lt.s32.totalorder %v2849, 4
    %v2872 = vsel %vm2868, %v2852, %v2855
    %v2873 = vsel %vm2871, %v2861, 2102212464
    %v2874 = vsel %vm2870, %v2858, %v2873
    %v2875 = vsel %vm2869, %v2872, %v2874
    %v2876 = vsel %vm2868, %v2855, %v2858
    %v2877 = vsel %vm2871, %v2864, 920167782
    %v2878 = vsel %vm2870, %v2861, %v2877
    %v2879 = vsel %vm2869, %v2876, %v2878
    %v2880 = vsel %vm2868, %v2858, %v2861
    %v2881 = vsel %vm2871, %v2867, 1326507024
    %v2882 = vsel %vm2870, %v2864, %v2881
    %v2883 = vsel %vm2869, %v2880, %v2882
    %v2884 = vshll.u32 %v2844, 8
    %v2885 = vmul.u32.u64.compose %v2884, %v2883
    %v2886 = vextract.low.u32 %v2885
    %v2887 = vextract.high.u32 %v2885
    %v2888 = vmul.u32.u64.compose %v2884, %v2879
    %v2889 = vextract.low.u32 %v2888
    %v2890 = vextract.high.u32 %v2888
    %v2891 = vmul.u32 %v2884, %v2875
    %v2892 = vadd.s32 %v2887, %v2889
    %vm2893 = vc.u32 %v2887, %v2889
    %v2894 = vadd.s32 %v2890, 1
    %v2895 = vsel %vm2893, %v2894, %v2890
    %v2896 = vadd.s32 %v2891, %v2895
    %v2897 = vadd.s32 %v2896, 536870912
    %v2898 = vshrl.u32 %v2897, 30
    %v2899 = vshll.u32 %v2898, 30
    %v2900 = vsub.s32 %v2896, %v2899
    %vm2901 = vcmp.lt.s32.totalorder %v2900, 0
    %v2902 = vsub.s32 0, %v2900
    %v2903 = vsel %vm2901, %v2902, %v2900
    %v2904 = vclz %v2903
    %v2905 = vsub.s32 %v2904, 2
    %vm2906 = vcmp.gt.s32.totalorder 0, %v2905
    %v2907 = vsel %vm2906, 0, %v2905
    %v2908 = vsub.s32 32, %v2907
    %v2909 = vshll.u32 %v2900, %v2907
    %v2910 = vshrl.u32 %v2892, %v2908
    %v2911 = vor.u32 %v2909, %v2910
    %v2912 = vsub.s32 4294967266, %v2907
    %v2913 = vadd.s32 %v2912, 127
    %v2914 = vshll.u32 %v2913, 23
    %v2915 = vor.u32 4788187, %v2914
    %v2916 = vand.u32 2147483647, %v2915
    %v2918 = vcvt.s32.f32 %v2911
    %v2919 = vmul.f32 %v2918, %v2916
    %v2920 = vxor.u32 %v2919, 2147483648
    %v2921 = vsel %vm2838, %v2920, %v2919
    %v2922 = vsub.s32 4, %v2898
    %v2923 = vsel %vm2838, %v2922, %v2898
    %v2924 = vsel %vm2837, %v2208, %v2921
    %v2925 = vsel %vm2837, 0, %v2923
    %v2926 = vcosq.f32.pop %v2924
    %v2927 = vsinq.f32.pop %v2924
    %vm2928 = vweird.f32 %v2208
    %v2929 = vadd.s32 %v2925, 3
    %v2930 = vand.u32 %v2929, 3
    %vm2931 = vcmp.lt.s32.totalorder %v2930, 2
    %vm2932 = vcmp.eq.s32.totalorder %v2930, 0
    %v2933 = vxor.u32 %v2927, 2147483648
    %v2934 = vsel %vm2932, %v2926, %v2933
    %vm2935 = vcmp.eq.s32.totalorder %v2930, 2
    %v2936 = vxor.u32 %v2926, 2147483648
    %v2937 = vsel %vm2935, %v2936, %v2927
    %v2938 = vsel %vm2931, %v2934, %v2937
    %v2939 = vsel %vm2928, nan, %v2938
    %v2940 = vand.u32 2147483647, %v2210
    %vm2941 = vcmp.le.f32.partialorder %v2940, 0.7853982
    %vm2942 = vcmp.lt.s32.totalorder %v2210, 0
    %v2943 = vand.u32 %v2210, 2139095040
    %v2944 = vshrl.u32 %v2943, 23
    %v2945 = vsub.s32 %v2944, 127
    %v2946 = vand.u32 2147483647, %v2210
    %v2947 = vand.u32 %v2946, 8388607
    %v2948 = vor.u32 %v2947, 8388608
    %v2949 = vsub.s32 0, %v2948
    %v2950 = vadd.s32 %v2945, 1
    %vm2951 = vcmp.gt.s32.totalorder %v2950, 0
    %v2952 = vsel %vm2951, %v2950, 0
    %v2953 = vshrl.u32 %v2952, 5
    %v2954 = vand.u32 %v2952, 31
    %v2955 = vsub.s32 32, %v2954
    %v2956 = vshrl.u32 683565275, %v2955
    %v2957 = vshll.u32 683565275, %v2954
    %v2958 = vshrl.u32 2475754826, %v2955
    %v2959 = vor.u32 %v2957, %v2958
    %v2960 = vshll.u32 2475754826, %v2954
    %v2961 = vshrl.u32 2131351028, %v2955
    %v2962 = vor.u32 %v2960, %v2961
    %v2963 = vshll.u32 2131351028, %v2954
    %v2964 = vshrl.u32 2102212464, %v2955
    %v2965 = vor.u32 %v2963, %v2964
    %v2966 = vshll.u32 2102212464, %v2954
    %v2967 = vshrl.u32 920167782, %v2955
    %v2968 = vor.u32 %v2966, %v2967
    %v2969 = vshll.u32 920167782, %v2954
    %v2970 = vshrl.u32 1326507024, %v2955
    %v2971 = vor.u32 %v2969, %v2970
    %vm2972 = vcmp.lt.s32.totalorder %v2953, 1
    %vm2973 = vcmp.lt.s32.totalorder %v2953, 2
    %vm2974 = vcmp.lt.s32.totalorder %v2953, 3
    %vm2975 = vcmp.lt.s32.totalorder %v2953, 4
    %v2976 = vsel %vm2972, %v2956, %v2959
    %v2977 = vsel %vm2975, %v2965, 2102212464
    %v2978 = vsel %vm2974, %v2962, %v2977
    %v2979 = vsel %vm2973, %v2976, %v2978
    %v2980 = vsel %vm2972, %v2959, %v2962
    %v2981 = vsel %vm2975, %v2968, 920167782
    %v2982 = vsel %vm2974, %v2965, %v2981
    %v2983 = vsel %vm2973, %v2980, %v2982
    %v2984 = vsel %vm2972, %v2962, %v2965
    %v2985 = vsel %vm2975, %v2971, 1326507024
    %v2986 = vsel %vm2974, %v2968, %v2985
    %v2987 = vsel %vm2973, %v2984, %v2986
    %v2988 = vshll.u32 %v2948, 8
    %v2989 = vmul.u32.u64.compose %v2988, %v2987
    %v2990 = vextract.low.u32 %v2989
    %v2991 = vextract.high.u32 %v2989
    %v2992 = vmul.u32.u64.compose %v2988, %v2983
    %v2993 = vextract.low.u32 %v2992
    %v2994 = vextract.high.u32 %v2992
    %v2995 = vmul.u32 %v2988, %v2979
    %v2996 = vadd.s32 %v2991, %v2993
    %vm2997 = vc.u32 %v2991, %v2993
    %v2998 = vadd.s32 %v2994, 1
    %v2999 = vsel %vm2997, %v2998, %v2994
    %v3000 = vadd.s32 %v2995, %v2999
    %v3001 = vadd.s32 %v3000, 536870912
    %v3002 = vshrl.u32 %v3001, 30
    %v3003 = vshll.u32 %v3002, 30
    %v3004 = vsub.s32 %v3000, %v3003
    %vm3005 = vcmp.lt.s32.totalorder %v3004, 0
    %v3006 = vsub.s32 0, %v3004
    %v3007 = vsel %vm3005, %v3006, %v3004
    %v3008 = vclz %v3007
    %v3009 = vsub.s32 %v3008, 2
    %vm3010 = vcmp.gt.s32.totalorder 0, %v3009
    %v3011 = vsel %vm3010, 0, %v3009
    %v3012 = vsub.s32 32, %v3011
    %v3013 = vshll.u32 %v3004, %v3011
    %v3014 = vshrl.u32 %v2996, %v3012
    %v3015 = vor.u32 %v3013, %v3014
    %v3016 = vsub.s32 4294967266, %v3011
    %v3017 = vadd.s32 %v3016, 127
    %v3018 = vshll.u32 %v3017, 23
    %v3019 = vor.u32 4788187, %v3018
    %v3020 = vand.u32 2147483647, %v3019
    %v3022 = vcvt.s32.f32 %v3015
    %v3023 = vmul.f32 %v3022, %v3020
    %v3024 = vxor.u32 %v3023, 2147483648
    %v3025 = vsel %vm2942, %v3024, %v3023
    %v3026 = vsub.s32 4, %v3002
    %v3027 = vsel %vm2942, %v3026, %v3002
    %v3028 = vsel %vm2941, %v2210, %v3025
    %v3029 = vsel %vm2941, 0, %v3027
    %v3030 = vcosq.f32.pop %v3028
    %v3031 = vsinq.f32.pop %v3028
    %vm3032 = vweird.f32 %v2210
    %v3033 = vadd.s32 %v3029, 3
    %v3034 = vand.u32 %v3033, 3
    %vm3035 = vcmp.lt.s32.totalorder %v3034, 2
    %vm3036 = vcmp.eq.s32.totalorder %v3034, 0
    %v3037 = vxor.u32 %v3031, 2147483648
    %v3038 = vsel %vm3036, %v3030, %v3037
    %vm3039 = vcmp.eq.s32.totalorder %v3034, 2
    %v3040 = vxor.u32 %v3030, 2147483648
    %v3041 = vsel %vm3039, %v3040, %v3031
    %v3042 = vsel %vm3035, %v3038, %v3041
    %v3043 = vsel %vm3032, nan, %v3042
    %s3044 = scalar_lea.vmem %s3, 64
    %v3045 = vld [vmem:[%s3044] sm:$0xff]
    %v3046 = vld [vmem:[%s3044 + $0x8] sm:$0xff]
    %v3047 = vld [vmem:[%s3044 + $0x10] sm:$0xff]
    %v3048 = vld [vmem:[%s3044 + $0x18] sm:$0xff]
    %s3049 = scalar_lea.vmem %s4, 64
    %v3050 = vld [vmem:[%s3049] sm:$0xff]
    %v3051 = vld [vmem:[%s3049 + $0x8] sm:$0xff]
    %v3052 = vld [vmem:[%s3049 + $0x10] sm:$0xff]
    %v3053 = vld [vmem:[%s3049 + $0x18] sm:$0xff]
    %3055 = vset.pattern.permute.xlu0 0
    %3056 = vperm.xlu0 %3055, %v3050
    %v3057 = vpop.permute.xlu0 %3056
    %3060 = vset.pattern.permute.xlu0 0
    %3061 = vperm.xlu0 %3060, %v3051
    %v3062 = vpop.permute.xlu0 %3061
    %3065 = vset.pattern.permute.xlu0 0
    %3066 = vperm.xlu0 %3065, %v3052
    %v3067 = vpop.permute.xlu0 %3066
    %3070 = vset.pattern.permute.xlu0 0
    %3071 = vperm.xlu0 %3070, %v3053
    %v3072 = vpop.permute.xlu0 %3071
    %v3075 = vsel %vm1147, %v3045, 0
    %v3078 = vsel %vm1147, %v3046, 0
    %v3081 = vsel %vm1147, %v3047, 0
    %v3084 = vsel %vm1147, %v3048, 0
    %3086 = vmatprep.subr.mxu0 %v2419
    %3087 = vmatpush1.msra.mxu0 %v2315
    %3088 = vmatprep.subr.mxu0 %v2627
    %3089 = vmatpush1.msra.mxu0 %v2523
    %3090 = vmatprep.subr.mxu0 %v2835
    %3091 = vmatpush1.msra.mxu0 %v2731
    %3092 = vmatprep.subr.mxu0 %v3043
    %3093 = vmatpush1.msra.mxu0 %v2939
    %3094 = vmatprep.subr.mxu0 0.0
    %3095 = vmatpush1.msra.mxu0 0.0
    %3096 = vmatprep.subr.mxu0 0.0
    %3097 = vmatpush1.msra.mxu0 0.0
    %3098 = vmatprep.subr.mxu0 0.0
    %3099 = vmatpush1.msra.mxu0 0.0
    %3100 = vmatprep.subr.mxu0 0.0
    %3101 = vmatpush1.msra.mxu0 0.0
    %3102 = vmatprep.subr.mxu0 0.0
    %3103 = vmatpush1.msra.mxu0 0.0
    %3104 = vmatprep.subr.mxu0 0.0
    %3105 = vmatpush1.msra.mxu0 0.0
    %3106 = vmatprep.subr.mxu0 0.0
    %3107 = vmatpush1.msra.mxu0 0.0
    %3108 = vmatprep.subr.mxu0 0.0
    %3109 = vmatpush1.msra.mxu0 0.0
    %3110 = vmatprep.subr.mxu0 0.0
    %3111 = vmatpush1.msra.mxu0 0.0
    %3112 = vmatprep.subr.mxu0 0.0
    %3113 = vmatpush1.msra.mxu0 0.0
    %3114 = vmatprep.subr.mxu0 0.0
    %3115 = vmatpush1.msra.mxu0 0.0
    %3116 = vmatprep.subr.mxu0 0.0
    %3117 = vmatpush1.msra.mxu0 0.0
    %3118 = vmatprep.subr.mxu0 0.0
    %3119 = vmatpush1.msra.mxu0 0.0
    %3120 = vmatprep.subr.mxu0 0.0
    %3121 = vmatpush1.msra.mxu0 0.0
    %3122 = vmatprep.subr.mxu0 0.0
    %3123 = vmatpush1.msra.mxu0 0.0
    %3124 = vmatprep.subr.mxu0 0.0
    %3125 = vmatpush1.msra.mxu0 0.0
    %3126 = vmatprep.subr.mxu0 0.0
    %3127 = vmatpush1.msra.mxu0 0.0
    %3128 = vmatprep.subr.mxu0 0.0
    %3129 = vmatpush1.msra.mxu0 0.0
    %3130 = vmatprep.subr.mxu0 0.0
    %3131 = vmatpush1.msra.mxu0 0.0
    %3132 = vmatprep.subr.mxu0 0.0
    %3133 = vmatpush1.msra.mxu0 0.0
    %3134 = vmatprep.subr.mxu0 0.0
    %3135 = vmatpush1.msra.mxu0 0.0
    %3136 = vmatprep.subr.mxu0 0.0
    %3137 = vmatpush1.msra.mxu0 0.0
    %3138 = vmatprep.subr.mxu0 0.0
    %3139 = vmatpush1.msra.mxu0 0.0
    %3140 = vmatprep.subr.mxu0 0.0
    %3141 = vmatpush1.msra.mxu0 0.0
    %3142 = vmatprep.subr.mxu0 0.0
    %3143 = vmatpush1.msra.mxu0 0.0
    %3144 = vmatprep.subr.mxu0 0.0
    %3145 = vmatpush1.msra.mxu0 0.0
    %3146 = vmatprep.subr.mxu0 0.0
    %3147 = vmatpush1.msra.mxu0 0.0
    %3148 = vmatprep.subr.mxu0 0.0
    %3149 = vmatpush1.msra.mxu0 0.0
    %3150 = vmatprep.mubr.f32.mxu0 0.0
    %3151 = vmatmul.mubr.f32.gmra.mrb[0].mxu0 %v3075
    %v3152 = vpop.f32.mrb[0].mxu0
    %v3153 = vadd.f32 %v3057, %v3152
    %v3154 = vpop.f32.mrb[0].mxu0
    %v3155 = vadd.f32 %v3057, %v3154
    %3156 = vmatprep.mubr.f32.mxu0 0.0
    %3157 = vmatmul.mubr.f32.gmra.mrb[0].mxu0 %v3078
    %v3158 = vpop.f32.mrb[0].mxu0
    %v3159 = vadd.f32 %v3062, %v3158
    %v3160 = vpop.f32.mrb[0].mxu0
    %v3161 = vadd.f32 %v3062, %v3160
    %3162 = vmatprep.mubr.f32.mxu0 0.0
    %3163 = vmatmul.mubr.f32.gmra.mrb[0].mxu0 %v3081
    %v3164 = vpop.f32.mrb[0].mxu0
    %v3165 = vadd.f32 %v3067, %v3164
    %v3166 = vpop.f32.mrb[0].mxu0
    %v3167 = vadd.f32 %v3067, %v3166
    %3168 = vmatprep.mubr.f32.mxu0 0.0
    %3169 = vmatmul.mubr.f32.gmra.mrb[0].mxu0 %v3084
    %v3170 = vpop.f32.mrb[0].mxu0
    %v3171 = vadd.f32 %v3072, %v3170
    %v3172 = vpop.f32.mrb[0].mxu0
    %v3173 = vadd.f32 %v3072, %v3172
    %3174 = vdwg.mxu0
    %v3175 = vand.u32 2147483647, %v3153
    %vm3176 = vcmp.le.f32.partialorder %v3175, 0.7853982
    %vm3177 = vcmp.lt.s32.totalorder %v3153, 0
    %v3178 = vand.u32 %v3153, 2139095040
    %v3179 = vshrl.u32 %v3178, 23
    %v3180 = vsub.s32 %v3179, 127
    %v3181 = vand.u32 2147483647, %v3153
    %v3182 = vand.u32 %v3181, 8388607
    %v3183 = vor.u32 %v3182, 8388608
    %v3184 = vsub.s32 0, %v3183
    %v3185 = vadd.s32 %v3180, 1
    %vm3186 = vcmp.gt.s32.totalorder %v3185, 0
    %v3187 = vsel %vm3186, %v3185, 0
    %v3188 = vshrl.u32 %v3187, 5
    %v3189 = vand.u32 %v3187, 31
    %v3190 = vsub.s32 32, %v3189
    %v3191 = vshrl.u32 683565275, %v3190
    %v3192 = vshll.u32 683565275, %v3189
    %v3193 = vshrl.u32 2475754826, %v3190
    %v3194 = vor.u32 %v3192, %v3193
    %v3195 = vshll.u32 2475754826, %v3189
    %v3196 = vshrl.u32 2131351028, %v3190
    %v3197 = vor.u32 %v3195, %v3196
    %v3198 = vshll.u32 2131351028, %v3189
    %v3199 = vshrl.u32 2102212464, %v3190
    %v3200 = vor.u32 %v3198, %v3199
    %v3201 = vshll.u32 2102212464, %v3189
    %v3202 = vshrl.u32 920167782, %v3190
    %v3203 = vor.u32 %v3201, %v3202
    %v3204 = vshll.u32 920167782, %v3189
    %v3205 = vshrl.u32 1326507024, %v3190
    %v3206 = vor.u32 %v3204, %v3205
    %vm3207 = vcmp.lt.s32.totalorder %v3188, 1
    %vm3208 = vcmp.lt.s32.totalorder %v3188, 2
    %vm3209 = vcmp.lt.s32.totalorder %v3188, 3
    %vm3210 = vcmp.lt.s32.totalorder %v3188, 4
    %v3211 = vsel %vm3207, %v3191, %v3194
    %v3212 = vsel %vm3210, %v3200, 2102212464
    %v3213 = vsel %vm3209, %v3197, %v3212
    %v3214 = vsel %vm3208, %v3211, %v3213
    %v3215 = vsel %vm3207, %v3194, %v3197
    %v3216 = vsel %vm3210, %v3203, 920167782
    %v3217 = vsel %vm3209, %v3200, %v3216
    %v3218 = vsel %vm3208, %v3215, %v3217
    %v3219 = vsel %vm3207, %v3197, %v3200
    %v3220 = vsel %vm3210, %v3206, 1326507024
    %v3221 = vsel %vm3209, %v3203, %v3220
    %v3222 = vsel %vm3208, %v3219, %v3221
    %v3223 = vshll.u32 %v3183, 8
    %v3224 = vmul.u32.u64.compose %v3223, %v3222
    %v3225 = vextract.low.u32 %v3224
    %v3226 = vextract.high.u32 %v3224
    %v3227 = vmul.u32.u64.compose %v3223, %v3218
    %v3228 = vextract.low.u32 %v3227
    %v3229 = vextract.high.u32 %v3227
    %v3230 = vmul.u32 %v3223, %v3214
    %v3231 = vadd.s32 %v3226, %v3228
    %vm3232 = vc.u32 %v3226, %v3228
    %v3233 = vadd.s32 %v3229, 1
    %v3234 = vsel %vm3232, %v3233, %v3229
    %v3235 = vadd.s32 %v3230, %v3234
    %v3236 = vadd.s32 %v3235, 536870912
    %v3237 = vshrl.u32 %v3236, 30
    %v3238 = vshll.u32 %v3237, 30
    %v3239 = vsub.s32 %v3235, %v3238
    %vm3240 = vcmp.lt.s32.totalorder %v3239, 0
    %v3241 = vsub.s32 0, %v3239
    %v3242 = vsel %vm3240, %v3241, %v3239
    %v3243 = vclz %v3242
    %v3244 = vsub.s32 %v3243, 2
    %vm3245 = vcmp.gt.s32.totalorder 0, %v3244
    %v3246 = vsel %vm3245, 0, %v3244
    %v3247 = vsub.s32 32, %v3246
    %v3248 = vshll.u32 %v3239, %v3246
    %v3249 = vshrl.u32 %v3231, %v3247
    %v3250 = vor.u32 %v3248, %v3249
    %v3251 = vsub.s32 4294967266, %v3246
    %v3252 = vadd.s32 %v3251, 127
    %v3253 = vshll.u32 %v3252, 23
    %v3254 = vor.u32 4788187, %v3253
    %v3255 = vand.u32 2147483647, %v3254
    %v3257 = vcvt.s32.f32 %v3250
    %v3258 = vmul.f32 %v3257, %v3255
    %v3259 = vxor.u32 %v3258, 2147483648
    %v3260 = vsel %vm3177, %v3259, %v3258
    %v3261 = vsub.s32 4, %v3237
    %v3262 = vsel %vm3177, %v3261, %v3237
    %v3263 = vsel %vm3176, %v3153, %v3260
    %v3264 = vsel %vm3176, 0, %v3262
    %v3265 = vcosq.f32.pop %v3263
    %v3266 = vsinq.f32.pop %v3263
    %vm3267 = vweird.f32 %v3153
    %v3268 = vadd.s32 %v3264, 3
    %v3269 = vand.u32 %v3268, 3
    %vm3270 = vcmp.lt.s32.totalorder %v3269, 2
    %vm3271 = vcmp.eq.s32.totalorder %v3269, 0
    %v3272 = vxor.u32 %v3266, 2147483648
    %v3273 = vsel %vm3271, %v3265, %v3272
    %vm3274 = vcmp.eq.s32.totalorder %v3269, 2
    %v3275 = vxor.u32 %v3265, 2147483648
    %v3276 = vsel %vm3274, %v3275, %v3266
    %v3277 = vsel %vm3270, %v3273, %v3276
    %v3278 = vsel %vm3267, nan, %v3277
    %v3279 = vand.u32 2147483647, %v3155
    %vm3280 = vcmp.le.f32.partialorder %v3279, 0.7853982
    %vm3281 = vcmp.lt.s32.totalorder %v3155, 0
    %v3282 = vand.u32 %v3155, 2139095040
    %v3283 = vshrl.u32 %v3282, 23
    %v3284 = vsub.s32 %v3283, 127
    %v3285 = vand.u32 2147483647, %v3155
    %v3286 = vand.u32 %v3285, 8388607
    %v3287 = vor.u32 %v3286, 8388608
    %v3288 = vsub.s32 0, %v3287
    %v3289 = vadd.s32 %v3284, 1
    %vm3290 = vcmp.gt.s32.totalorder %v3289, 0
    %v3291 = vsel %vm3290, %v3289, 0
    %v3292 = vshrl.u32 %v3291, 5
    %v3293 = vand.u32 %v3291, 31
    %v3294 = vsub.s32 32, %v3293
    %v3295 = vshrl.u32 683565275, %v3294
    %v3296 = vshll.u32 683565275, %v3293
    %v3297 = vshrl.u32 2475754826, %v3294
    %v3298 = vor.u32 %v3296, %v3297
    %v3299 = vshll.u32 2475754826, %v3293
    %v3300 = vshrl.u32 2131351028, %v3294
    %v3301 = vor.u32 %v3299, %v3300
    %v3302 = vshll.u32 2131351028, %v3293
    %v3303 = vshrl.u32 2102212464, %v3294
    %v3304 = vor.u32 %v3302, %v3303
    %v3305 = vshll.u32 2102212464, %v3293
    %v3306 = vshrl.u32 920167782, %v3294
    %v3307 = vor.u32 %v3305, %v3306
    %v3308 = vshll.u32 920167782, %v3293
    %v3309 = vshrl.u32 1326507024, %v3294
    %v3310 = vor.u32 %v3308, %v3309
    %vm3311 = vcmp.lt.s32.totalorder %v3292, 1
    %vm3312 = vcmp.lt.s32.totalorder %v3292, 2
    %vm3313 = vcmp.lt.s32.totalorder %v3292, 3
    %vm3314 = vcmp.lt.s32.totalorder %v3292, 4
    %v3315 = vsel %vm3311, %v3295, %v3298
    %v3316 = vsel %vm3314, %v3304, 2102212464
    %v3317 = vsel %vm3313, %v3301, %v3316
    %v3318 = vsel %vm3312, %v3315, %v3317
    %v3319 = vsel %vm3311, %v3298, %v3301
    %v3320 = vsel %vm3314, %v3307, 920167782
    %v3321 = vsel %vm3313, %v3304, %v3320
    %v3322 = vsel %vm3312, %v3319, %v3321
    %v3323 = vsel %vm3311, %v3301, %v3304
    %v3324 = vsel %vm3314, %v3310, 1326507024
    %v3325 = vsel %vm3313, %v3307, %v3324
    %v3326 = vsel %vm3312, %v3323, %v3325
    %v3327 = vshll.u32 %v3287, 8
    %v3328 = vmul.u32.u64.compose %v3327, %v3326
    %v3329 = vextract.low.u32 %v3328
    %v3330 = vextract.high.u32 %v3328
    %v3331 = vmul.u32.u64.compose %v3327, %v3322
    %v3332 = vextract.low.u32 %v3331
    %v3333 = vextract.high.u32 %v3331
    %v3334 = vmul.u32 %v3327, %v3318
    %v3335 = vadd.s32 %v3330, %v3332
    %vm3336 = vc.u32 %v3330, %v3332
    %v3337 = vadd.s32 %v3333, 1
    %v3338 = vsel %vm3336, %v3337, %v3333
    %v3339 = vadd.s32 %v3334, %v3338
    %v3340 = vadd.s32 %v3339, 536870912
    %v3341 = vshrl.u32 %v3340, 30
    %v3342 = vshll.u32 %v3341, 30
    %v3343 = vsub.s32 %v3339, %v3342
    %vm3344 = vcmp.lt.s32.totalorder %v3343, 0
    %v3345 = vsub.s32 0, %v3343
    %v3346 = vsel %vm3344, %v3345, %v3343
    %v3347 = vclz %v3346
    %v3348 = vsub.s32 %v3347, 2
    %vm3349 = vcmp.gt.s32.totalorder 0, %v3348
    %v3350 = vsel %vm3349, 0, %v3348
    %v3351 = vsub.s32 32, %v3350
    %v3352 = vshll.u32 %v3343, %v3350
    %v3353 = vshrl.u32 %v3335, %v3351
    %v3354 = vor.u32 %v3352, %v3353
    %v3355 = vsub.s32 4294967266, %v3350
    %v3356 = vadd.s32 %v3355, 127
    %v3357 = vshll.u32 %v3356, 23
    %v3358 = vor.u32 4788187, %v3357
    %v3359 = vand.u32 2147483647, %v3358
    %v3361 = vcvt.s32.f32 %v3354
    %v3362 = vmul.f32 %v3361, %v3359
    %v3363 = vxor.u32 %v3362, 2147483648
    %v3364 = vsel %vm3281, %v3363, %v3362
    %v3365 = vsub.s32 4, %v3341
    %v3366 = vsel %vm3281, %v3365, %v3341
    %v3367 = vsel %vm3280, %v3155, %v3364
    %v3368 = vsel %vm3280, 0, %v3366
    %v3369 = vcosq.f32.pop %v3367
    %v3370 = vsinq.f32.pop %v3367
    %vm3371 = vweird.f32 %v3155
    %v3372 = vadd.s32 %v3368, 3
    %v3373 = vand.u32 %v3372, 3
    %vm3374 = vcmp.lt.s32.totalorder %v3373, 2
    %vm3375 = vcmp.eq.s32.totalorder %v3373, 0
    %v3376 = vxor.u32 %v3370, 2147483648
    %v3377 = vsel %vm3375, %v3369, %v3376
    %vm3378 = vcmp.eq.s32.totalorder %v3373, 2
    %v3379 = vxor.u32 %v3369, 2147483648
    %v3380 = vsel %vm3378, %v3379, %v3370
    %v3381 = vsel %vm3374, %v3377, %v3380
    %v3382 = vsel %vm3371, nan, %v3381
    %v3383 = vand.u32 2147483647, %v3159
    %vm3384 = vcmp.le.f32.partialorder %v3383, 0.7853982
    %vm3385 = vcmp.lt.s32.totalorder %v3159, 0
    %v3386 = vand.u32 %v3159, 2139095040
    %v3387 = vshrl.u32 %v3386, 23
    %v3388 = vsub.s32 %v3387, 127
    %v3389 = vand.u32 2147483647, %v3159
    %v3390 = vand.u32 %v3389, 8388607
    %v3391 = vor.u32 %v3390, 8388608
    %v3392 = vsub.s32 0, %v3391
    %v3393 = vadd.s32 %v3388, 1
    %vm3394 = vcmp.gt.s32.totalorder %v3393, 0
    %v3395 = vsel %vm3394, %v3393, 0
    %v3396 = vshrl.u32 %v3395, 5
    %v3397 = vand.u32 %v3395, 31
    %v3398 = vsub.s32 32, %v3397
    %v3399 = vshrl.u32 683565275, %v3398
    %v3400 = vshll.u32 683565275, %v3397
    %v3401 = vshrl.u32 2475754826, %v3398
    %v3402 = vor.u32 %v3400, %v3401
    %v3403 = vshll.u32 2475754826, %v3397
    %v3404 = vshrl.u32 2131351028, %v3398
    %v3405 = vor.u32 %v3403, %v3404
    %v3406 = vshll.u32 2131351028, %v3397
    %v3407 = vshrl.u32 2102212464, %v3398
    %v3408 = vor.u32 %v3406, %v3407
    %v3409 = vshll.u32 2102212464, %v3397
    %v3410 = vshrl.u32 920167782, %v3398
    %v3411 = vor.u32 %v3409, %v3410
    %v3412 = vshll.u32 920167782, %v3397
    %v3413 = vshrl.u32 1326507024, %v3398
    %v3414 = vor.u32 %v3412, %v3413
    %vm3415 = vcmp.lt.s32.totalorder %v3396, 1
    %vm3416 = vcmp.lt.s32.totalorder %v3396, 2
    %vm3417 = vcmp.lt.s32.totalorder %v3396, 3
    %vm3418 = vcmp.lt.s32.totalorder %v3396, 4
    %v3419 = vsel %vm3415, %v3399, %v3402
    %v3420 = vsel %vm3418, %v3408, 2102212464
    %v3421 = vsel %vm3417, %v3405, %v3420
    %v3422 = vsel %vm3416, %v3419, %v3421
    %v3423 = vsel %vm3415, %v3402, %v3405
    %v3424 = vsel %vm3418, %v3411, 920167782
    %v3425 = vsel %vm3417, %v3408, %v3424
    %v3426 = vsel %vm3416, %v3423, %v3425
    %v3427 = vsel %vm3415, %v3405, %v3408
    %v3428 = vsel %vm3418, %v3414, 1326507024
    %v3429 = vsel %vm3417, %v3411, %v3428
    %v3430 = vsel %vm3416, %v3427, %v3429
    %v3431 = vshll.u32 %v3391, 8
    %v3432 = vmul.u32.u64.compose %v3431, %v3430
    %v3433 = vextract.low.u32 %v3432
    %v3434 = vextract.high.u32 %v3432
    %v3435 = vmul.u32.u64.compose %v3431, %v3426
    %v3436 = vextract.low.u32 %v3435
    %v3437 = vextract.high.u32 %v3435
    %v3438 = vmul.u32 %v3431, %v3422
    %v3439 = vadd.s32 %v3434, %v3436
    %vm3440 = vc.u32 %v3434, %v3436
    %v3441 = vadd.s32 %v3437, 1
    %v3442 = vsel %vm3440, %v3441, %v3437
    %v3443 = vadd.s32 %v3438, %v3442
    %v3444 = vadd.s32 %v3443, 536870912
    %v3445 = vshrl.u32 %v3444, 30
    %v3446 = vshll.u32 %v3445, 30
    %v3447 = vsub.s32 %v3443, %v3446
    %vm3448 = vcmp.lt.s32.totalorder %v3447, 0
    %v3449 = vsub.s32 0, %v3447
    %v3450 = vsel %vm3448, %v3449, %v3447
    %v3451 = vclz %v3450
    %v3452 = vsub.s32 %v3451, 2
    %vm3453 = vcmp.gt.s32.totalorder 0, %v3452
    %v3454 = vsel %vm3453, 0, %v3452
    %v3455 = vsub.s32 32, %v3454
    %v3456 = vshll.u32 %v3447, %v3454
    %v3457 = vshrl.u32 %v3439, %v3455
    %v3458 = vor.u32 %v3456, %v3457
    %v3459 = vsub.s32 4294967266, %v3454
    %v3460 = vadd.s32 %v3459, 127
    %v3461 = vshll.u32 %v3460, 23
    %v3462 = vor.u32 4788187, %v3461
    %v3463 = vand.u32 2147483647, %v3462
    %v3465 = vcvt.s32.f32 %v3458
    %v3466 = vmul.f32 %v3465, %v3463
    %v3467 = vxor.u32 %v3466, 2147483648
    %v3468 = vsel %vm3385, %v3467, %v3466
    %v3469 = vsub.s32 4, %v3445
    %v3470 = vsel %vm3385, %v3469, %v3445
    %v3471 = vsel %vm3384, %v3159, %v3468
    %v3472 = vsel %vm3384, 0, %v3470
    %v3473 = vcosq.f32.pop %v3471
    %v3474 = vsinq.f32.pop %v3471
    %vm3475 = vweird.f32 %v3159
    %v3476 = vadd.s32 %v3472, 3
    %v3477 = vand.u32 %v3476, 3
    %vm3478 = vcmp.lt.s32.totalorder %v3477, 2
    %vm3479 = vcmp.eq.s32.totalorder %v3477, 0
    %v3480 = vxor.u32 %v3474, 2147483648
    %v3481 = vsel %vm3479, %v3473, %v3480
    %vm3482 = vcmp.eq.s32.totalorder %v3477, 2
    %v3483 = vxor.u32 %v3473, 2147483648
    %v3484 = vsel %vm3482, %v3483, %v3474
    %v3485 = vsel %vm3478, %v3481, %v3484
    %v3486 = vsel %vm3475, nan, %v3485
    %v3487 = vand.u32 2147483647, %v3161
    %vm3488 = vcmp.le.f32.partialorder %v3487, 0.7853982
    %vm3489 = vcmp.lt.s32.totalorder %v3161, 0
    %v3490 = vand.u32 %v3161, 2139095040
    %v3491 = vshrl.u32 %v3490, 23
    %v3492 = vsub.s32 %v3491, 127
    %v3493 = vand.u32 2147483647, %v3161
    %v3494 = vand.u32 %v3493, 8388607
    %v3495 = vor.u32 %v3494, 8388608
    %v3496 = vsub.s32 0, %v3495
    %v3497 = vadd.s32 %v3492, 1
    %vm3498 = vcmp.gt.s32.totalorder %v3497, 0
    %v3499 = vsel %vm3498, %v3497, 0
    %v3500 = vshrl.u32 %v3499, 5
    %v3501 = vand.u32 %v3499, 31
    %v3502 = vsub.s32 32, %v3501
    %v3503 = vshrl.u32 683565275, %v3502
    %v3504 = vshll.u32 683565275, %v3501
    %v3505 = vshrl.u32 2475754826, %v3502
    %v3506 = vor.u32 %v3504, %v3505
    %v3507 = vshll.u32 2475754826, %v3501
    %v3508 = vshrl.u32 2131351028, %v3502
    %v3509 = vor.u32 %v3507, %v3508
    %v3510 = vshll.u32 2131351028, %v3501
    %v3511 = vshrl.u32 2102212464, %v3502
    %v3512 = vor.u32 %v3510, %v3511
    %v3513 = vshll.u32 2102212464, %v3501
    %v3514 = vshrl.u32 920167782, %v3502
    %v3515 = vor.u32 %v3513, %v3514
    %v3516 = vshll.u32 920167782, %v3501
    %v3517 = vshrl.u32 1326507024, %v3502
    %v3518 = vor.u32 %v3516, %v3517
    %vm3519 = vcmp.lt.s32.totalorder %v3500, 1
    %vm3520 = vcmp.lt.s32.totalorder %v3500, 2
    %vm3521 = vcmp.lt.s32.totalorder %v3500, 3
    %vm3522 = vcmp.lt.s32.totalorder %v3500, 4
    %v3523 = vsel %vm3519, %v3503, %v3506
    %v3524 = vsel %vm3522, %v3512, 2102212464
    %v3525 = vsel %vm3521, %v3509, %v3524
    %v3526 = vsel %vm3520, %v3523, %v3525
    %v3527 = vsel %vm3519, %v3506, %v3509
    %v3528 = vsel %vm3522, %v3515, 920167782
    %v3529 = vsel %vm3521, %v3512, %v3528
    %v3530 = vsel %vm3520, %v3527, %v3529
    %v3531 = vsel %vm3519, %v3509, %v3512
    %v3532 = vsel %vm3522, %v3518, 1326507024
    %v3533 = vsel %vm3521, %v3515, %v3532
    %v3534 = vsel %vm3520, %v3531, %v3533
    %v3535 = vshll.u32 %v3495, 8
    %v3536 = vmul.u32.u64.compose %v3535, %v3534
    %v3537 = vextract.low.u32 %v3536
    %v3538 = vextract.high.u32 %v3536
    %v3539 = vmul.u32.u64.compose %v3535, %v3530
    %v3540 = vextract.low.u32 %v3539
    %v3541 = vextract.high.u32 %v3539
    %v3542 = vmul.u32 %v3535, %v3526
    %v3543 = vadd.s32 %v3538, %v3540
    %vm3544 = vc.u32 %v3538, %v3540
    %v3545 = vadd.s32 %v3541, 1
    %v3546 = vsel %vm3544, %v3545, %v3541
    %v3547 = vadd.s32 %v3542, %v3546
    %v3548 = vadd.s32 %v3547, 536870912
    %v3549 = vshrl.u32 %v3548, 30
    %v3550 = vshll.u32 %v3549, 30
    %v3551 = vsub.s32 %v3547, %v3550
    %vm3552 = vcmp.lt.s32.totalorder %v3551, 0
    %v3553 = vsub.s32 0, %v3551
    %v3554 = vsel %vm3552, %v3553, %v3551
    %v3555 = vclz %v3554
    %v3556 = vsub.s32 %v3555, 2
    %vm3557 = vcmp.gt.s32.totalorder 0, %v3556
    %v3558 = vsel %vm3557, 0, %v3556
    %v3559 = vsub.s32 32, %v3558
    %v3560 = vshll.u32 %v3551, %v3558
    %v3561 = vshrl.u32 %v3543, %v3559
    %v3562 = vor.u32 %v3560, %v3561
    %v3563 = vsub.s32 4294967266, %v3558
    %v3564 = vadd.s32 %v3563, 127
    %v3565 = vshll.u32 %v3564, 23
    %v3566 = vor.u32 4788187, %v3565
    %v3567 = vand.u32 2147483647, %v3566
    %v3569 = vcvt.s32.f32 %v3562
    %v3570 = vmul.f32 %v3569, %v3567
    %v3571 = vxor.u32 %v3570, 2147483648
    %v3572 = vsel %vm3489, %v3571, %v3570
    %v3573 = vsub.s32 4, %v3549
    %v3574 = vsel %vm3489, %v3573, %v3549
    %v3575 = vsel %vm3488, %v3161, %v3572
    %v3576 = vsel %vm3488, 0, %v3574
    %v3577 = vcosq.f32.pop %v3575
    %v3578 = vsinq.f32.pop %v3575
    %vm3579 = vweird.f32 %v3161
    %v3580 = vadd.s32 %v3576, 3
    %v3581 = vand.u32 %v3580, 3
    %vm3582 = vcmp.lt.s32.totalorder %v3581, 2
    %vm3583 = vcmp.eq.s32.totalorder %v3581, 0
    %v3584 = vxor.u32 %v3578, 2147483648
    %v3585 = vsel %vm3583, %v3577, %v3584
    %vm3586 = vcmp.eq.s32.totalorder %v3581, 2
    %v3587 = vxor.u32 %v3577, 2147483648
    %v3588 = vsel %vm3586, %v3587, %v3578
    %v3589 = vsel %vm3582, %v3585, %v3588
    %v3590 = vsel %vm3579, nan, %v3589
    %v3591 = vand.u32 2147483647, %v3165
    %vm3592 = vcmp.le.f32.partialorder %v3591, 0.7853982
    %vm3593 = vcmp.lt.s32.totalorder %v3165, 0
    %v3594 = vand.u32 %v3165, 2139095040
    %v3595 = vshrl.u32 %v3594, 23
    %v3596 = vsub.s32 %v3595, 127
    %v3597 = vand.u32 2147483647, %v3165
    %v3598 = vand.u32 %v3597, 8388607
    %v3599 = vor.u32 %v3598, 8388608
    %v3600 = vsub.s32 0, %v3599
    %v3601 = vadd.s32 %v3596, 1
    %vm3602 = vcmp.gt.s32.totalorder %v3601, 0
    %v3603 = vsel %vm3602, %v3601, 0
    %v3604 = vshrl.u32 %v3603, 5
    %v3605 = vand.u32 %v3603, 31
    %v3606 = vsub.s32 32, %v3605
    %v3607 = vshrl.u32 683565275, %v3606
    %v3608 = vshll.u32 683565275, %v3605
    %v3609 = vshrl.u32 2475754826, %v3606
    %v3610 = vor.u32 %v3608, %v3609
    %v3611 = vshll.u32 2475754826, %v3605
    %v3612 = vshrl.u32 2131351028, %v3606
    %v3613 = vor.u32 %v3611, %v3612
    %v3614 = vshll.u32 2131351028, %v3605
    %v3615 = vshrl.u32 2102212464, %v3606
    %v3616 = vor.u32 %v3614, %v3615
    %v3617 = vshll.u32 2102212464, %v3605
    %v3618 = vshrl.u32 920167782, %v3606
    %v3619 = vor.u32 %v3617, %v3618
    %v3620 = vshll.u32 920167782, %v3605
    %v3621 = vshrl.u32 1326507024, %v3606
    %v3622 = vor.u32 %v3620, %v3621
    %vm3623 = vcmp.lt.s32.totalorder %v3604, 1
    %vm3624 = vcmp.lt.s32.totalorder %v3604, 2
    %vm3625 = vcmp.lt.s32.totalorder %v3604, 3
    %vm3626 = vcmp.lt.s32.totalorder %v3604, 4
    %v3627 = vsel %vm3623, %v3607, %v3610
    %v3628 = vsel %vm3626, %v3616, 2102212464
    %v3629 = vsel %vm3625, %v3613, %v3628
    %v3630 = vsel %vm3624, %v3627, %v3629
    %v3631 = vsel %vm3623, %v3610, %v3613
    %v3632 = vsel %vm3626, %v3619, 920167782
    %v3633 = vsel %vm3625, %v3616, %v3632
    %v3634 = vsel %vm3624, %v3631, %v3633
    %v3635 = vsel %vm3623, %v3613, %v3616
    %v3636 = vsel %vm3626, %v3622, 1326507024
    %v3637 = vsel %vm3625, %v3619, %v3636
    %v3638 = vsel %vm3624, %v3635, %v3637
    %v3639 = vshll.u32 %v3599, 8
    %v3640 = vmul.u32.u64.compose %v3639, %v3638
    %v3641 = vextract.low.u32 %v3640
    %v3642 = vextract.high.u32 %v3640
    %v3643 = vmul.u32.u64.compose %v3639, %v3634
    %v3644 = vextract.low.u32 %v3643
    %v3645 = vextract.high.u32 %v3643
    %v3646 = vmul.u32 %v3639, %v3630
    %v3647 = vadd.s32 %v3642, %v3644
    %vm3648 = vc.u32 %v3642, %v3644
    %v3649 = vadd.s32 %v3645, 1
    %v3650 = vsel %vm3648, %v3649, %v3645
    %v3651 = vadd.s32 %v3646, %v3650
    %v3652 = vadd.s32 %v3651, 536870912
    %v3653 = vshrl.u32 %v3652, 30
    %v3654 = vshll.u32 %v3653, 30
    %v3655 = vsub.s32 %v3651, %v3654
    %vm3656 = vcmp.lt.s32.totalorder %v3655, 0
    %v3657 = vsub.s32 0, %v3655
    %v3658 = vsel %vm3656, %v3657, %v3655
    %v3659 = vclz %v3658
    %v3660 = vsub.s32 %v3659, 2
    %vm3661 = vcmp.gt.s32.totalorder 0, %v3660
    %v3662 = vsel %vm3661, 0, %v3660
    %v3663 = vsub.s32 32, %v3662
    %v3664 = vshll.u32 %v3655, %v3662
    %v3665 = vshrl.u32 %v3647, %v3663
    %v3666 = vor.u32 %v3664, %v3665
    %v3667 = vsub.s32 4294967266, %v3662
    %v3668 = vadd.s32 %v3667, 127
    %v3669 = vshll.u32 %v3668, 23
    %v3670 = vor.u32 4788187, %v3669
    %v3671 = vand.u32 2147483647, %v3670
    %v3673 = vcvt.s32.f32 %v3666
    %v3674 = vmul.f32 %v3673, %v3671
    %v3675 = vxor.u32 %v3674, 2147483648
    %v3676 = vsel %vm3593, %v3675, %v3674
    %v3677 = vsub.s32 4, %v3653
    %v3678 = vsel %vm3593, %v3677, %v3653
    %v3679 = vsel %vm3592, %v3165, %v3676
    %v3680 = vsel %vm3592, 0, %v3678
    %v3681 = vcosq.f32.pop %v3679
    %v3682 = vsinq.f32.pop %v3679
    %vm3683 = vweird.f32 %v3165
    %v3684 = vadd.s32 %v3680, 3
    %v3685 = vand.u32 %v3684, 3
    %vm3686 = vcmp.lt.s32.totalorder %v3685, 2
    %vm3687 = vcmp.eq.s32.totalorder %v3685, 0
    %v3688 = vxor.u32 %v3682, 2147483648
    %v3689 = vsel %vm3687, %v3681, %v3688
    %vm3690 = vcmp.eq.s32.totalorder %v3685, 2
    %v3691 = vxor.u32 %v3681, 2147483648
    %v3692 = vsel %vm3690, %v3691, %v3682
    %v3693 = vsel %vm3686, %v3689, %v3692
    %v3694 = vsel %vm3683, nan, %v3693
    %v3695 = vand.u32 2147483647, %v3167
    %vm3696 = vcmp.le.f32.partialorder %v3695, 0.7853982
    %vm3697 = vcmp.lt.s32.totalorder %v3167, 0
    %v3698 = vand.u32 %v3167, 2139095040
    %v3699 = vshrl.u32 %v3698, 23
    %v3700 = vsub.s32 %v3699, 127
    %v3701 = vand.u32 2147483647, %v3167
    %v3702 = vand.u32 %v3701, 8388607
    %v3703 = vor.u32 %v3702, 8388608
    %v3704 = vsub.s32 0, %v3703
    %v3705 = vadd.s32 %v3700, 1
    %vm3706 = vcmp.gt.s32.totalorder %v3705, 0
    %v3707 = vsel %vm3706, %v3705, 0
    %v3708 = vshrl.u32 %v3707, 5
    %v3709 = vand.u32 %v3707, 31
    %v3710 = vsub.s32 32, %v3709
    %v3711 = vshrl.u32 683565275, %v3710
    %v3712 = vshll.u32 683565275, %v3709
    %v3713 = vshrl.u32 2475754826, %v3710
    %v3714 = vor.u32 %v3712, %v3713
    %v3715 = vshll.u32 2475754826, %v3709
    %v3716 = vshrl.u32 2131351028, %v3710
    %v3717 = vor.u32 %v3715, %v3716
    %v3718 = vshll.u32 2131351028, %v3709
    %v3719 = vshrl.u32 2102212464, %v3710
    %v3720 = vor.u32 %v3718, %v3719
    %v3721 = vshll.u32 2102212464, %v3709
    %v3722 = vshrl.u32 920167782, %v3710
    %v3723 = vor.u32 %v3721, %v3722
    %v3724 = vshll.u32 920167782, %v3709
    %v3725 = vshrl.u32 1326507024, %v3710
    %v3726 = vor.u32 %v3724, %v3725
    %vm3727 = vcmp.lt.s32.totalorder %v3708, 1
    %vm3728 = vcmp.lt.s32.totalorder %v3708, 2
    %vm3729 = vcmp.lt.s32.totalorder %v3708, 3
    %vm3730 = vcmp.lt.s32.totalorder %v3708, 4
    %v3731 = vsel %vm3727, %v3711, %v3714
    %v3732 = vsel %vm3730, %v3720, 2102212464
    %v3733 = vsel %vm3729, %v3717, %v3732
    %v3734 = vsel %vm3728, %v3731, %v3733
    %v3735 = vsel %vm3727, %v3714, %v3717
    %v3736 = vsel %vm3730, %v3723, 920167782
    %v3737 = vsel %vm3729, %v3720, %v3736
    %v3738 = vsel %vm3728, %v3735, %v3737
    %v3739 = vsel %vm3727, %v3717, %v3720
    %v3740 = vsel %vm3730, %v3726, 1326507024
    %v3741 = vsel %vm3729, %v3723, %v3740
    %v3742 = vsel %vm3728, %v3739, %v3741
    %v3743 = vshll.u32 %v3703, 8
    %v3744 = vmul.u32.u64.compose %v3743, %v3742
    %v3745 = vextract.low.u32 %v3744
    %v3746 = vextract.high.u32 %v3744
    %v3747 = vmul.u32.u64.compose %v3743, %v3738
    %v3748 = vextract.low.u32 %v3747
    %v3749 = vextract.high.u32 %v3747
    %v3750 = vmul.u32 %v3743, %v3734
    %v3751 = vadd.s32 %v3746, %v3748
    %vm3752 = vc.u32 %v3746, %v3748
    %v3753 = vadd.s32 %v3749, 1
    %v3754 = vsel %vm3752, %v3753, %v3749
    %v3755 = vadd.s32 %v3750, %v3754
    %v3756 = vadd.s32 %v3755, 536870912
    %v3757 = vshrl.u32 %v3756, 30
    %v3758 = vshll.u32 %v3757, 30
    %v3759 = vsub.s32 %v3755, %v3758
    %vm3760 = vcmp.lt.s32.totalorder %v3759, 0
    %v3761 = vsub.s32 0, %v3759
    %v3762 = vsel %vm3760, %v3761, %v3759
    %v3763 = vclz %v3762
    %v3764 = vsub.s32 %v3763, 2
    %vm3765 = vcmp.gt.s32.totalorder 0, %v3764
    %v3766 = vsel %vm3765, 0, %v3764
    %v3767 = vsub.s32 32, %v3766
    %v3768 = vshll.u32 %v3759, %v3766
    %v3769 = vshrl.u32 %v3751, %v3767
    %v3770 = vor.u32 %v3768, %v3769
    %v3771 = vsub.s32 4294967266, %v3766
    %v3772 = vadd.s32 %v3771, 127
    %v3773 = vshll.u32 %v3772, 23
    %v3774 = vor.u32 4788187, %v3773
    %v3775 = vand.u32 2147483647, %v3774
    %v3777 = vcvt.s32.f32 %v3770
    %v3778 = vmul.f32 %v3777, %v3775
    %v3779 = vxor.u32 %v3778, 2147483648
    %v3780 = vsel %vm3697, %v3779, %v3778
    %v3781 = vsub.s32 4, %v3757
    %v3782 = vsel %vm3697, %v3781, %v3757
    %v3783 = vsel %vm3696, %v3167, %v3780
    %v3784 = vsel %vm3696, 0, %v3782
    %v3785 = vcosq.f32.pop %v3783
    %v3786 = vsinq.f32.pop %v3783
    %vm3787 = vweird.f32 %v3167
    %v3788 = vadd.s32 %v3784, 3
    %v3789 = vand.u32 %v3788, 3
    %vm3790 = vcmp.lt.s32.totalorder %v3789, 2
    %vm3791 = vcmp.eq.s32.totalorder %v3789, 0
    %v3792 = vxor.u32 %v3786, 2147483648
    %v3793 = vsel %vm3791, %v3785, %v3792
    %vm3794 = vcmp.eq.s32.totalorder %v3789, 2
    %v3795 = vxor.u32 %v3785, 2147483648
    %v3796 = vsel %vm3794, %v3795, %v3786
    %v3797 = vsel %vm3790, %v3793, %v3796
    %v3798 = vsel %vm3787, nan, %v3797
    %v3799 = vand.u32 2147483647, %v3171
    %vm3800 = vcmp.le.f32.partialorder %v3799, 0.7853982
    %vm3801 = vcmp.lt.s32.totalorder %v3171, 0
    %v3802 = vand.u32 %v3171, 2139095040
    %v3803 = vshrl.u32 %v3802, 23
    %v3804 = vsub.s32 %v3803, 127
    %v3805 = vand.u32 2147483647, %v3171
    %v3806 = vand.u32 %v3805, 8388607
    %v3807 = vor.u32 %v3806, 8388608
    %v3808 = vsub.s32 0, %v3807
    %v3809 = vadd.s32 %v3804, 1
    %vm3810 = vcmp.gt.s32.totalorder %v3809, 0
    %v3811 = vsel %vm3810, %v3809, 0
    %v3812 = vshrl.u32 %v3811, 5
    %v3813 = vand.u32 %v3811, 31
    %v3814 = vsub.s32 32, %v3813
    %v3815 = vshrl.u32 683565275, %v3814
    %v3816 = vshll.u32 683565275, %v3813
    %v3817 = vshrl.u32 2475754826, %v3814
    %v3818 = vor.u32 %v3816, %v3817
    %v3819 = vshll.u32 2475754826, %v3813
    %v3820 = vshrl.u32 2131351028, %v3814
    %v3821 = vor.u32 %v3819, %v3820
    %v3822 = vshll.u32 2131351028, %v3813
    %v3823 = vshrl.u32 2102212464, %v3814
    %v3824 = vor.u32 %v3822, %v3823
    %v3825 = vshll.u32 2102212464, %v3813
    %v3826 = vshrl.u32 920167782, %v3814
    %v3827 = vor.u32 %v3825, %v3826
    %v3828 = vshll.u32 920167782, %v3813
    %v3829 = vshrl.u32 1326507024, %v3814
    %v3830 = vor.u32 %v3828, %v3829
    %vm3831 = vcmp.lt.s32.totalorder %v3812, 1
    %vm3832 = vcmp.lt.s32.totalorder %v3812, 2
    %vm3833 = vcmp.lt.s32.totalorder %v3812, 3
    %vm3834 = vcmp.lt.s32.totalorder %v3812, 4
    %v3835 = vsel %vm3831, %v3815, %v3818
    %v3836 = vsel %vm3834, %v3824, 2102212464
    %v3837 = vsel %vm3833, %v3821, %v3836
    %v3838 = vsel %vm3832, %v3835, %v3837
    %v3839 = vsel %vm3831, %v3818, %v3821
    %v3840 = vsel %vm3834, %v3827, 920167782
    %v3841 = vsel %vm3833, %v3824, %v3840
    %v3842 = vsel %vm3832, %v3839, %v3841
    %v3843 = vsel %vm3831, %v3821, %v3824
    %v3844 = vsel %vm3834, %v3830, 1326507024
    %v3845 = vsel %vm3833, %v3827, %v3844
    %v3846 = vsel %vm3832, %v3843, %v3845
    %v3847 = vshll.u32 %v3807, 8
    %v3848 = vmul.u32.u64.compose %v3847, %v3846
    %v3849 = vextract.low.u32 %v3848
    %v3850 = vextract.high.u32 %v3848
    %v3851 = vmul.u32.u64.compose %v3847, %v3842
    %v3852 = vextract.low.u32 %v3851
    %v3853 = vextract.high.u32 %v3851
    %v3854 = vmul.u32 %v3847, %v3838
    %v3855 = vadd.s32 %v3850, %v3852
    %vm3856 = vc.u32 %v3850, %v3852
    %v3857 = vadd.s32 %v3853, 1
    %v3858 = vsel %vm3856, %v3857, %v3853
    %v3859 = vadd.s32 %v3854, %v3858
    %v3860 = vadd.s32 %v3859, 536870912
    %v3861 = vshrl.u32 %v3860, 30
    %v3862 = vshll.u32 %v3861, 30
    %v3863 = vsub.s32 %v3859, %v3862
    %vm3864 = vcmp.lt.s32.totalorder %v3863, 0
    %v3865 = vsub.s32 0, %v3863
    %v3866 = vsel %vm3864, %v3865, %v3863
    %v3867 = vclz %v3866
    %v3868 = vsub.s32 %v3867, 2
    %vm3869 = vcmp.gt.s32.totalorder 0, %v3868
    %v3870 = vsel %vm3869, 0, %v3868
    %v3871 = vsub.s32 32, %v3870
    %v3872 = vshll.u32 %v3863, %v3870
    %v3873 = vshrl.u32 %v3855, %v3871
    %v3874 = vor.u32 %v3872, %v3873
    %v3875 = vsub.s32 4294967266, %v3870
    %v3876 = vadd.s32 %v3875, 127
    %v3877 = vshll.u32 %v3876, 23
    %v3878 = vor.u32 4788187, %v3877
    %v3879 = vand.u32 2147483647, %v3878
    %v3881 = vcvt.s32.f32 %v3874
    %v3882 = vmul.f32 %v3881, %v3879
    %v3883 = vxor.u32 %v3882, 2147483648
    %v3884 = vsel %vm3801, %v3883, %v3882
    %v3885 = vsub.s32 4, %v3861
    %v3886 = vsel %vm3801, %v3885, %v3861
    %v3887 = vsel %vm3800, %v3171, %v3884
    %v3888 = vsel %vm3800, 0, %v3886
    %v3889 = vcosq.f32.pop %v3887
    %v3890 = vsinq.f32.pop %v3887
    %vm3891 = vweird.f32 %v3171
    %v3892 = vadd.s32 %v3888, 3
    %v3893 = vand.u32 %v3892, 3
    %vm3894 = vcmp.lt.s32.totalorder %v3893, 2
    %vm3895 = vcmp.eq.s32.totalorder %v3893, 0
    %v3896 = vxor.u32 %v3890, 2147483648
    %v3897 = vsel %vm3895, %v3889, %v3896
    %vm3898 = vcmp.eq.s32.totalorder %v3893, 2
    %v3899 = vxor.u32 %v3889, 2147483648
    %v3900 = vsel %vm3898, %v3899, %v3890
    %v3901 = vsel %vm3894, %v3897, %v3900
    %v3902 = vsel %vm3891, nan, %v3901
    %v3903 = vand.u32 2147483647, %v3173
    %vm3904 = vcmp.le.f32.partialorder %v3903, 0.7853982
    %vm3905 = vcmp.lt.s32.totalorder %v3173, 0
    %v3906 = vand.u32 %v3173, 2139095040
    %v3907 = vshrl.u32 %v3906, 23
    %v3908 = vsub.s32 %v3907, 127
    %v3909 = vand.u32 2147483647, %v3173
    %v3910 = vand.u32 %v3909, 8388607
    %v3911 = vor.u32 %v3910, 8388608
    %v3912 = vsub.s32 0, %v3911
    %v3913 = vadd.s32 %v3908, 1
    %vm3914 = vcmp.gt.s32.totalorder %v3913, 0
    %v3915 = vsel %vm3914, %v3913, 0
    %v3916 = vshrl.u32 %v3915, 5
    %v3917 = vand.u32 %v3915, 31
    %v3918 = vsub.s32 32, %v3917
    %v3919 = vshrl.u32 683565275, %v3918
    %v3920 = vshll.u32 683565275, %v3917
    %v3921 = vshrl.u32 2475754826, %v3918
    %v3922 = vor.u32 %v3920, %v3921
    %v3923 = vshll.u32 2475754826, %v3917
    %v3924 = vshrl.u32 2131351028, %v3918
    %v3925 = vor.u32 %v3923, %v3924
    %v3926 = vshll.u32 2131351028, %v3917
    %v3927 = vshrl.u32 2102212464, %v3918
    %v3928 = vor.u32 %v3926, %v3927
    %v3929 = vshll.u32 2102212464, %v3917
    %v3930 = vshrl.u32 920167782, %v3918
    %v3931 = vor.u32 %v3929, %v3930
    %v3932 = vshll.u32 920167782, %v3917
    %v3933 = vshrl.u32 1326507024, %v3918
    %v3934 = vor.u32 %v3932, %v3933
    %vm3935 = vcmp.lt.s32.totalorder %v3916, 1
    %vm3936 = vcmp.lt.s32.totalorder %v3916, 2
    %vm3937 = vcmp.lt.s32.totalorder %v3916, 3
    %vm3938 = vcmp.lt.s32.totalorder %v3916, 4
    %v3939 = vsel %vm3935, %v3919, %v3922
    %v3940 = vsel %vm3938, %v3928, 2102212464
    %v3941 = vsel %vm3937, %v3925, %v3940
    %v3942 = vsel %vm3936, %v3939, %v3941
    %v3943 = vsel %vm3935, %v3922, %v3925
    %v3944 = vsel %vm3938, %v3931, 920167782
    %v3945 = vsel %vm3937, %v3928, %v3944
    %v3946 = vsel %vm3936, %v3943, %v3945
    %v3947 = vsel %vm3935, %v3925, %v3928
    %v3948 = vsel %vm3938, %v3934, 1326507024
    %v3949 = vsel %vm3937, %v3931, %v3948
    %v3950 = vsel %vm3936, %v3947, %v3949
    %v3951 = vshll.u32 %v3911, 8
    %v3952 = vmul.u32.u64.compose %v3951, %v3950
    %v3953 = vextract.low.u32 %v3952
    %v3954 = vextract.high.u32 %v3952
    %v3955 = vmul.u32.u64.compose %v3951, %v3946
    %v3956 = vextract.low.u32 %v3955
    %v3957 = vextract.high.u32 %v3955
    %v3958 = vmul.u32 %v3951, %v3942
    %v3959 = vadd.s32 %v3954, %v3956
    %vm3960 = vc.u32 %v3954, %v3956
    %v3961 = vadd.s32 %v3957, 1
    %v3962 = vsel %vm3960, %v3961, %v3957
    %v3963 = vadd.s32 %v3958, %v3962
    %v3964 = vadd.s32 %v3963, 536870912
    %v3965 = vshrl.u32 %v3964, 30
    %v3966 = vshll.u32 %v3965, 30
    %v3967 = vsub.s32 %v3963, %v3966
    %vm3968 = vcmp.lt.s32.totalorder %v3967, 0
    %v3969 = vsub.s32 0, %v3967
    %v3970 = vsel %vm3968, %v3969, %v3967
    %v3971 = vclz %v3970
    %v3972 = vsub.s32 %v3971, 2
    %vm3973 = vcmp.gt.s32.totalorder 0, %v3972
    %v3974 = vsel %vm3973, 0, %v3972
    %v3975 = vsub.s32 32, %v3974
    %v3976 = vshll.u32 %v3967, %v3974
    %v3977 = vshrl.u32 %v3959, %v3975
    %v3978 = vor.u32 %v3976, %v3977
    %v3979 = vsub.s32 4294967266, %v3974
    %v3980 = vadd.s32 %v3979, 127
    %v3981 = vshll.u32 %v3980, 23
    %v3982 = vor.u32 4788187, %v3981
    %v3983 = vand.u32 2147483647, %v3982
    %v3985 = vcvt.s32.f32 %v3978
    %v3986 = vmul.f32 %v3985, %v3983
    %v3987 = vxor.u32 %v3986, 2147483648
    %v3988 = vsel %vm3905, %v3987, %v3986
    %v3989 = vsub.s32 4, %v3965
    %v3990 = vsel %vm3905, %v3989, %v3965
    %v3991 = vsel %vm3904, %v3173, %v3988
    %v3992 = vsel %vm3904, 0, %v3990
    %v3993 = vcosq.f32.pop %v3991
    %v3994 = vsinq.f32.pop %v3991
    %vm3995 = vweird.f32 %v3173
    %v3996 = vadd.s32 %v3992, 3
    %v3997 = vand.u32 %v3996, 3
    %vm3998 = vcmp.lt.s32.totalorder %v3997, 2
    %vm3999 = vcmp.eq.s32.totalorder %v3997, 0
    %v4000 = vxor.u32 %v3994, 2147483648
    %v4001 = vsel %vm3999, %v3993, %v4000
    %vm4002 = vcmp.eq.s32.totalorder %v3997, 2
    %v4003 = vxor.u32 %v3993, 2147483648
    %v4004 = vsel %vm4002, %v4003, %v3994
    %v4005 = vsel %vm3998, %v4001, %v4004
    %v4006 = vsel %vm3995, nan, %v4005
    %v4007 = vld [vmem:[%s5] sm:$0x1]
    %v4008 = vld [vmem:[#allocation2] sm:$0x1]
    %4010 = vset.pattern.permute.xlu0 0
    %4011 = vperm.xlu0 %4010, %v4008
    %v4012 = vpop.permute.xlu0 %4011
    %v4014 = vlaneseq
    %v4015 = vshrl.u32 %v4014, 7
    %v4016 = vsub.s32 0, %v4015
    %v4017 = vrot.slane %v4012, %v4016
    %v4019 = vsel %vm1147, %v4007, 0
    %4021 = vmatprep.subr.mxu0 %v3382
    %4022 = vmatpush1.msra.mxu0 %v3278
    %4023 = vmatprep.subr.mxu0 %v3590
    %4024 = vmatpush1.msra.mxu0 %v3486
    %4025 = vmatprep.subr.mxu0 %v3798
    %4026 = vmatpush1.msra.mxu0 %v3694
    %4027 = vmatprep.subr.mxu0 %v4006
    %4028 = vmatpush1.msra.mxu0 %v3902
    %4029 = vmatprep.subr.mxu0 0.0
    %4030 = vmatpush1.msra.mxu0 0.0
    %4031 = vmatprep.subr.mxu0 0.0
    %4032 = vmatpush1.msra.mxu0 0.0
    %4033 = vmatprep.subr.mxu0 0.0
    %4034 = vmatpush1.msra.mxu0 0.0
    %4035 = vmatprep.subr.mxu0 0.0
    %4036 = vmatpush1.msra.mxu0 0.0
    %4037 = vmatprep.subr.mxu0 0.0
    %4038 = vmatpush1.msra.mxu0 0.0
    %4039 = vmatprep.subr.mxu0 0.0
    %4040 = vmatpush1.msra.mxu0 0.0
    %4041 = vmatprep.subr.mxu0 0.0
    %4042 = vmatpush1.msra.mxu0 0.0
    %4043 = vmatprep.subr.mxu0 0.0
    %4044 = vmatpush1.msra.mxu0 0.0
    %4045 = vmatprep.subr.mxu0 0.0
    %4046 = vmatpush1.msra.mxu0 0.0
    %4047 = vmatprep.subr.mxu0 0.0
    %4048 = vmatpush1.msra.mxu0 0.0
    %4049 = vmatprep.subr.mxu0 0.0
    %4050 = vmatpush1.msra.mxu0 0.0
    %4051 = vmatprep.subr.mxu0 0.0
    %4052 = vmatpush1.msra.mxu0 0.0
    %4053 = vmatprep.subr.mxu0 0.0
    %4054 = vmatpush1.msra.mxu0 0.0
    %4055 = vmatprep.subr.mxu0 0.0
    %4056 = vmatpush1.msra.mxu0 0.0
    %4057 = vmatprep.subr.mxu0 0.0
    %4058 = vmatpush1.msra.mxu0 0.0
    %4059 = vmatprep.subr.mxu0 0.0
    %4060 = vmatpush1.msra.mxu0 0.0
    %4061 = vmatprep.subr.mxu0 0.0
    %4062 = vmatpush1.msra.mxu0 0.0
    %4063 = vmatprep.subr.mxu0 0.0
    %4064 = vmatpush1.msra.mxu0 0.0
    %4065 = vmatprep.subr.mxu0 0.0
    %4066 = vmatpush1.msra.mxu0 0.0
    %4067 = vmatprep.subr.mxu0 0.0
    %4068 = vmatpush1.msra.mxu0 0.0
    %4069 = vmatprep.subr.mxu0 0.0
    %4070 = vmatpush1.msra.mxu0 0.0
    %4071 = vmatprep.subr.mxu0 0.0
    %4072 = vmatpush1.msra.mxu0 0.0
    %4073 = vmatprep.subr.mxu0 0.0
    %4074 = vmatpush1.msra.mxu0 0.0
    %4075 = vmatprep.subr.mxu0 0.0
    %4076 = vmatpush1.msra.mxu0 0.0
    %4077 = vmatprep.subr.mxu0 0.0
    %4078 = vmatpush1.msra.mxu0 0.0
    %4079 = vmatprep.subr.mxu0 0.0
    %4080 = vmatpush1.msra.mxu0 0.0
    %4081 = vmatprep.subr.mxu0 0.0
    %4082 = vmatpush1.msra.mxu0 0.0
    %4083 = vmatprep.subr.mxu0 0.0
    %4084 = vmatpush1.msra.mxu0 0.0
    %4085 = vmatprep.mubr.f32.mxu0 0.0
    %4086 = vmatmul.mubr.f32.gmra.mrb[0].mxu0 %v4019
    %v4087 = vpop.f32.mrb[0].mxu0
    %v4088 = vadd.f32 %v4017, %v4087
    %v4089 = vpop.f32.mrb[0].mxu0
    %v4090 = vadd.f32 %v4017, %v4089
    %4091 = vdwg.mxu0
    %v4094 = vcombine.low %v4088, %v4090
    %v4096 = vunpack.c.l.s4 1966171168
    %v4097 = vunpack.c.0.s8 %v4096
    %v4098 = vlaneseq
    %v4099 = vshrl.u32 %v4098, 7
    %v4100 = vsub.s32 %v4097, %v4099
    %v4101 = vrot.slane %v4094, %v4100
    %v4103 = vunpack.c.l.s4 1966171168
    %v4104 = vunpack.c.0.s8 %v4103
    %v4105 = vlaneseq
    %v4106 = vshrl.u32 %v4105, 7
    %v4107 = vsub.s32 %v4104, %v4106
    %v4108 = vrot.slane %v4101, %v4107
    %v4110 = vlaneseq
    %vm4111 = vcmp.ge.s32.totalorder %v4110, 0
    %vm4112 = vcmp.lt.s32.totalorder %v4110, 256
    %vm4113 = vmand %vm4111, %vm4112
    %4114 = vst.msk [vmem:[#allocation3] sm:$0x3] %vm4113, %v4108
    // Predicated region
    $region30: #{dnn_forward.1} parent=1 // pred_check
      _
    $region31: #{dnn_forward.1} parent=1 // pred_check_branch
      %4116 = sbr.rel (0) target = $region33
    $region32: #{dnn_forward.1} parent=1 // pred_region
      %s4118 = ssub.s32 32, 32
      %4119 = vsyncadd [#allocation4], %s4118
      %s4121 = sshll.u32 [#allocation3], 4
      %s4122 = int_to_ptr.vmem [resolvable:$true] %s4121
      %4124 = dma.vmem_to_hbm [thread:$0]  %s4122, 32, %s7, [#allocation4]
    $region33: #{dnn_forward.1} parent=1 // pred_fallthru
      _
    // Predicated region
    $region34: #{dnn_forward.1} parent=1 // pred_check
      _
    $region35: #{dnn_forward.1} parent=1 // pred_check_branch
      %4126 = sbr.rel (0) target = $region37
    $region36: #{dnn_forward.1} parent=1 // pred_region
      %4127 = dma.done [#allocation4], 32
    $region37: #{dnn_forward.1} parent=1 // pred_fallthru
      _
    %4128 = vsyncpa [#allocation4], 1

</llo_original>
